<compile_context>
chip_gen: v5e
topology: v5e:2x2
jax: 0.10.0
libtpu: 0.0.40
codegen_flags: <defaults>
</compile_context>

<pallas_src>
import functools

import numpy as np
import jax
import jax.numpy as jnp
from jax.experimental import pallas as pl
from jax.experimental.pallas import tpu as pltpu


LANES = 128
MIB = 1024 * 1024


# ----------------------------- sizing helpers -------------------------------

def _round_up(x, m):
    return -(-x // m) * m


def _lanes(c):
    return _round_up(max(int(c), 1), LANES)


def _nbytes(x):
    return int(np.prod(x.shape)) * int(jnp.dtype(x.dtype).itemsize)


def _vmem_capacity_bytes():
    try:
        return int(pltpu.get_tpu_info().vmem_capacity_bytes)
    except Exception:
        return 64 * MIB                      # conservative default (v7x per-TC VMEM)


def _vmem_limit_bytes():
    # ~75% of physical VMEM, always leaving >=16 MiB for the compiler:
    #   v5e/v6e (128 MiB) -> 96 MiB,  v7x (64 MiB/TC) -> 48 MiB.
    cap = _vmem_capacity_bytes()
    return int(min(cap * 3 // 4, cap - 16 * MIB))


def _divisor_tiles(N):
    tiles = [t for t in range(8, N + 1, 8) if N % t == 0]
    return sorted(tiles, reverse=True) if tiles else [N]


def _choose_tile_n(B, N, M, dm, d_in, d_out_p, vmem_limit):
    """Largest divisor tile over N that fits kernel-2's VMEM budget, preferring
    >=4 pipeline steps per TensorCore (grid=(B, N//tile) sharded over 2 TCs)."""
    budget = vmem_limit - 4 * MIB                     # headroom: weights, sems, misc
    fitting = []
    for t in _divisor_tiles(N):
        rows = t * M
        stream = 2 * (t * _lanes(d_in) * 4            # feature (f32), double-buffered
                      + t * _lanes(dm) * 4            # q       (f32)
                      + 2 * rows * _lanes(dm) * 2     # nbr k, v (bf16)
                      + rows * _lanes(3) * 4          # rel pos (f32)
                      + t * _lanes(d_out_p) * 4)      # output  (f32)
        live = 8 * rows * _lanes(dm) * 4              # in-kernel f32 intermediates
        if stream + live <= budget:
            fitting.append(t)
    if not fitting:
        return _divisor_tiles(N)[-1]                  # smallest tile; never oversize
    for t in fitting:                                 # biggest tile with >=8 grid steps
        if B * (N // t) >= 8:
            return t
    return fitting[0]                                 # problem too small to pipeline


# --------------------- kernel 1: fused (fc1 ∘ q/k/v) projections -------------

def _qkv_kernel(feat_ref, wq_ref, bq_ref, wk_ref, bk_ref, wv_ref, bv_ref,
                q_ref, k_ref, v_ref):
    feat = feat_ref[0].astype(jnp.bfloat16)           # (T, d_in)

    def proj(w_ref, b_ref):                           # bf16 MXU operands, f32 acc
        return jnp.dot(feat, w_ref[...],
                       preferred_element_type=jnp.float32) + b_ref[...]

    q_ref[0] = proj(wq_ref, bq_ref)                               # f32
    k_ref[0] = proj(wk_ref, bk_ref).astype(k_ref.dtype)           # bf16 (Mx-expanded)
    v_ref[0] = proj(wv_ref, bv_ref).astype(v_ref.dtype)           # bf16


def point_projections_pallas(feature, packed, tile_n, vmem_limit):
    B, N, d_in = feature.shape
    dm = packed["wq"].shape[1]
    names = ("wq", "bq", "wk", "bk", "wv", "bv")
    weights = [packed[n] for n in names]

    def dspec(c):
        return pl.BlockSpec((1, tile_n, c), lambda b, n: (b, n, 0))

    def wspec(shape):
        nd = len(shape)
        return pl.BlockSpec(shape, lambda b, n, _nd=nd: (0,) * _nd)

    cost = pl.CostEstimate(
        flops=int(2 * B * N * d_in * 3 * dm),
        transcendentals=0,
        bytes_accessed=int(_nbytes(feature) + sum(_nbytes(w) for w in weights)
                           + B * N * dm * (4 + 2 + 2)),
    )
    return pl.pallas_call(
        _qkv_kernel,
        out_shape=(jax.ShapeDtypeStruct((B, N, dm), jnp.float32),
                   jax.ShapeDtypeStruct((B, N, dm), jnp.bfloat16),
                   jax.ShapeDtypeStruct((B, N, dm), jnp.bfloat16)),
        grid_spec=pltpu.PrefetchScalarGridSpec(
            num_scalar_prefetch=0,
            grid=(B, N // tile_n),
            in_specs=[dspec(d_in)] + [wspec(w.shape) for w in weights],
            out_specs=[dspec(dm), dspec(dm), dspec(dm)],
        ),
        compiler_params=pltpu.CompilerParams(
            dimension_semantics=("parallel", "parallel"),
            vmem_limit_bytes=vmem_limit),
        cost_estimate=cost,
    )(feature, *weights)


# ------------------ kernel 2: neighbor attention + fc2/shortcut --------------

def _attn_kernel(feat_ref, q_ref, k_ref, v_ref, rel_ref,
                 d1_w_ref, d1_b_ref, d2_w_ref, d2_b_ref,
                 g1_w_ref, g1_b_ref, g2_w_ref, g2_b_ref,
                 fc2_w_ref, sc_w_ref, out_b_ref,
                 out_ref, *, nneighbor):
    M = nneighbor
    q = q_ref[0]                                   # (T, dm)    f32
    k = k_ref[0].astype(jnp.float32)               # (T*M, dm)  bf16 in HBM -> f32
    v = v_ref[0].astype(jnp.float32)               # (T*M, dm)
    rel = rel_ref[0]                               # (T*M, 3)   f32
    T, dm = q.shape

    def mxu(a, w_ref):                             # bf16 MXU operands, f32 acc
        return jnp.dot(a.astype(jnp.bfloat16), w_ref[...],
                       preferred_element_type=jnp.float32)

    # fc_delta layer 1: K=3 contraction as three VPU broadcast FMAs
    # (keeps the MXU/vex slot free, avoids a lane-sparse 3-wide operand).
    d1_w = d1_w_ref[...]
    h = (rel[:, 0:1] * d1_w[0:1, :]
         + rel[:, 1:2] * d1_w[1:2, :]
         + rel[:, 2:3] * d1_w[2:3, :]
         + d1_b_ref[...])
    pos = mxu(jnp.maximum(h, 0.0), d2_w_ref) + d2_b_ref[...]          # (T*M, dm)

    # fc_gamma(q - k + pos); 1/sqrt(dm) is folded into g2_w / g2_b at pack time.
    pre = (q[:, None, :] - k.reshape(T, M, dm)
           + pos.reshape(T, M, dm)).reshape(T * M, dm)
    gh = jnp.maximum(mxu(pre, g1_w_ref) + g1_b_ref[...], 0.0)
    logits = (mxu(gh, g2_w_ref) + g2_b_ref[...]).reshape(T, M, dm)

    # per-channel softmax over the M neighbors (torch dim=-2)
    e = jnp.exp(logits - jnp.max(logits, axis=1, keepdims=True))
    attn = e * pl.reciprocal(jnp.sum(e, axis=1, keepdims=True), approx=True)

    # weighted aggregation over neighbors, then fc2 + shortcut (fused bias,
    # lane-dense d_out_p output).
    vp = (v + pos).reshape(T, M, dm)
    agg = jnp.sum(attn * vp, axis=1)                                   # (T, dm)
    out = mxu(agg, fc2_w_ref) + mxu(feat_ref[0], sc_w_ref) + out_b_ref[...]
    out_ref[0] = out.astype(out_ref.dtype)


_ATTN_PARAM_ORDER = ("d1_w", "d1_b", "d2_w", "d2_b", "g1_w", "g1_b",
                     "g2_w", "g2_b", "fc2_w", "sc_w", "out_b")


def neighbor_attention_pallas(feature, q, nbr_k, nbr_v, rel_pos, packed,
                              nneighbor, tile_n, vmem_limit):
    B, N, d_in = feature.shape
    dm = q.shape[-1]
    M = nneighbor
    d_out_p = packed["fc2_w"].shape[1]

    # Flatten the neighbor axis in HBM (contiguous, free) so in-kernel reshapes
    # stay within (8,128) tiles (M is a multiple of 8 here).
    nbr_k = nbr_k.reshape(B, N * M, dm)
    nbr_v = nbr_v.reshape(B, N * M, dm)
    rel = rel_pos.reshape(B, N * M, 3)

    def dspec(rows, c):
        return pl.BlockSpec((1, rows, c), lambda b, n: (b, n, 0))

    def wspec(shape):
        nd = len(shape)
        return pl.BlockSpec(shape, lambda b, n, _nd=nd: (0,) * _nd)

    weights = [packed[name] for name in _ATTN_PARAM_ORDER]

    cost = pl.CostEstimate(
        flops=int(2 * B * N * M * (3 * dm + 3 * dm * dm)
                  + 2 * B * N * (dm + d_in) * d_out_p),
        transcendentals=int(B * N * M * dm + B * N * dm),
        bytes_accessed=int(_nbytes(feature) + _nbytes(q) + _nbytes(nbr_k)
                           + _nbytes(nbr_v) + _nbytes(rel)
                           + sum(_nbytes(w) for w in weights)
                           + B * N * d_out_p * 4),
    )

    return pl.pallas_call(
        functools.partial(_attn_kernel, nneighbor=M),
        out_shape=jax.ShapeDtypeStruct((B, N, d_out_p), jnp.float32),
        grid_spec=pltpu.PrefetchScalarGridSpec(
            num_scalar_prefetch=0,
            grid=(B, N // tile_n),
            in_specs=[dspec(tile_n, d_in), dspec(tile_n, dm),
                      dspec(tile_n * M, dm), dspec(tile_n * M, dm),
                      dspec(tile_n * M, 3)]
                     + [wspec(w.shape) for w in weights],
            out_specs=dspec(tile_n, d_out_p),
        ),
        compiler_params=pltpu.CompilerParams(
            dimension_semantics=("parallel", "parallel"),
            vmem_limit_bytes=vmem_limit),
        cost_estimate=cost,
    )(feature, q, nbr_k, nbr_v, rel, *weights)


# ----------------------------- parameter packing -----------------------------

def pack_params(params):
    """Fold fc1 into q/k/v, fold the softmax scale into g2, fuse the output bias,
    cast MXU weights to bf16 and zero-pad output channels to 128 lanes."""
    bf = jnp.bfloat16
    dm = params["fc1_w"].shape[1]
    d_out = params["fc2_w"].shape[1]
    d_out_p = _round_up(d_out, LANES)
    scale = jnp.float32(1.0 / np.sqrt(dm))

    def pad_cols(w, cols):
        return jnp.zeros((w.shape[0], cols), jnp.float32).at[:, :w.shape[1]].set(w)

    # fc1 folded into q/k/v: (f @ fc1_w + fc1_b) @ W  ==  f @ (fc1_w @ W) + fc1_b @ W
    # (w_qs/w_ks/w_vs have no bias, no nonlinearity in between).
    wq_eff = params["fc1_w"] @ params["wq"]
    wk_eff = params["fc1_w"] @ params["wk"]
    wv_eff = params["fc1_w"] @ params["wv"]

    packed = {
        "wq": wq_eff.astype(bf), "bq": params["fc1_b"] @ params["wq"],
        "wk": wk_eff.astype(bf), "bk": params["fc1_b"] @ params["wk"],
        "wv": wv_eff.astype(bf), "bv": params["fc1_b"] @ params["wv"],
        "d1_w": params["d1_w"],                       # stays f32: VPU FMA path
        "d1_b": params["d1_b"],
        "d2_w": params["d2_w"].astype(bf),
        "d2_b": params["d2_b"],
        "g1_w": params["g1_w"].astype(bf),
        "g1_b": params["g1_b"],
        # 1/sqrt(dm) softmax scale folded into the last fc_gamma layer (exact fold).
        "g2_w": (params["g2_w"] * scale).astype(bf),
        "g2_b": params["g2_b"] * scale,
        "fc2_w": pad_cols(params["fc2_w"], d_out_p).astype(bf),
        "sc_w": pad_cols(params["sc_w"], d_out_p).astype(bf),
        "out_b": pad_cols(params["fc2_b"] + params["sc_b"], d_out_p),   # fused bias
    }
    return packed, d_out_p


# ------------------------------- JAX glue ------------------------------------

def knn_indices(xyz, k):
    # xyz: (B, N, 3) -> (B, N, k); includes the point itself (distance 0).
    d2 = jnp.sum((xyz[:, :, None, :] - xyz[:, None, :, :]) ** 2, axis=-1)
    _, idx = jax.lax.top_k(-d2, k)
    return idx


def index_points(points, idx):
    # points: (B, N, C), idx: (B, N, M) -> (B, N, M, C)
    return jax.vmap(lambda p, i: p[i])(points, idx)


def transformer_block_forward(xyz, feature, params, nneighbor):
    B, N, d_in = feature.shape
    dm = params["fc1_w"].shape[1]
    d_out = params["fc2_w"].shape[1]

    packed, d_out_p = pack_params(params)
    vmem_limit = _vmem_limit_bytes()
    tile_n = _choose_tile_n(B, N, nneighbor, dm, d_in, d_out_p, vmem_limit)

    # glue: knn + relative positions (data-dependent indexing stays in XLA)
    idx = knn_indices(xyz, nneighbor)                            # (B, N, M)
    rel_pos = xyz[:, :, None, :] - index_points(xyz, idx)        # (B, N, M, 3)

    # kernel 1: fc1 folded into q/k/v on N rows (no Mx-redundant matmuls),
    # k/v emitted bf16 so the Mx-expanded gather stream is half-width.
    q, k, v = point_projections_pallas(feature, packed, tile_n, vmem_limit)

    # glue: gather post-projection neighbor k/v (gather commutes with the linears).
    # If kernel 2 + this gather are HBM-bound (v5e), the gather can instead be done
    # in-kernel with scalar-prefetched idx and the per-batch k/v resident in VMEM.
    nbr_k = index_points(k, idx)                                 # (B, N, M, dm) bf16
    nbr_v = index_points(v, idx)                                 # (B, N, M, dm) bf16

    # kernel 2: pos-MLP + fc_gamma + softmax over M + aggregation + fc2/shortcut
    out = neighbor_attention_pallas(feature, q, nbr_k, nbr_v, rel_pos, packed,
                                    nneighbor, tile_n, vmem_limit)
    return out[:, :, :d_out]                                     # strip lane padding


# ---------------------------- init & reference --------------------------------

def init_params(key, d_in, d_model, d_out):
    keys = iter(jax.random.split(key, 32))

    def lin_w(fan_in, fan_out):
        bound = 1.0 / np.sqrt(fan_in)
        return jax.random.uniform(next(keys), (fan_in, fan_out),
                                  jnp.float32, -bound, bound)

    def lin_b(fan_in, fan_out):
        bound = 1.0 / np.sqrt(fan_in)
        return jax.random.uniform(next(keys), (1, fan_out),
                                  jnp.float32, -bound, bound)

    return {
        "fc1_w": lin_w(d_in, d_model), "fc1_b": lin_b(d_in, d_model),
        "wq": lin_w(d_model, d_model),
        "wk": lin_w(d_model, d_model),
        "wv": lin_w(d_model, d_model),
        "d1_w": lin_w(3, d_model), "d1_b": lin_b(3, d_model),
        "d2_w": lin_w(d_model, d_model), "d2_b": lin_b(d_model, d_model),
        "g1_w": lin_w(d_model, d_model), "g1_b": lin_b(d_model, d_model),
        "g2_w": lin_w(d_model, d_model), "g2_b": lin_b(d_model, d_model),
        "fc2_w": lin_w(d_model, d_out), "fc2_b": lin_b(d_model, d_out),
        "sc_w": lin_w(d_in, d_out), "sc_b": lin_b(d_in, d_out),
    }


def reference_forward(xyz, feature, params, nneighbor):
    # Pure-JAX f32 mirror of TransformerBlock.forward for verification.
    idx = knn_indices(xyz, nneighbor)
    rel_pos = xyz[:, :, None, :] - index_points(xyz, idx)
    f1 = feature @ params["fc1_w"] + params["fc1_b"]
    knn_f = index_points(f1, idx)
    q = f1 @ params["wq"]
    k = knn_f @ params["wk"]
    v = knn_f @ params["wv"]
    pos = (jnp.maximum(rel_pos @ params["d1_w"] + params["d1_b"], 0.0)
           @ params["d2_w"] + params["d2_b"])
    pre = q[:, :, None, :] - k + pos
    logits = (jnp.maximum(pre @ params["g1_w"] + params["g1_b"], 0.0)
              @ params["g2_w"] + params["g2_b"])
    attn = jax.nn.softmax(logits / np.sqrt(q.shape[-1]), axis=-2)
    agg = jnp.einsum("bmnf,bmnf->bmf", attn, v + pos)
    return (agg @ params["fc2_w"] + params["fc2_b"]
            + feature @ params["sc_w"] + params["sc_b"])


# --------------------------------- main ---------------------------------------

if __name__ == "__main__":
    B, N, d_in, d_model, d_out, nneighbor = 2, 64, 8, 32, 16, 8

    key = jax.random.PRNGKey(0)
    k_xyz, k_feat, k_par = jax.random.split(key, 3)
    xyz = jax.random.normal(k_xyz, (B, N, 3), jnp.float32)
    feature = jax.random.normal(k_feat, (B, N, d_in), jnp.float32)
    params = init_params(k_par, d_in, d_model, d_out)

    fwd = jax.jit(transformer_block_forward, static_argnums=(3,))
    out = jax.block_until_ready(fwd(xyz, feature, params, nneighbor))

    ref = jax.block_until_ready(reference_forward(xyz, feature, params, nneighbor))
    # Tolerance accounts for bf16 MXU operands / bf16 k-v stream (f32 accumulation)
    # and the EUP approx reciprocal, vs the exact f32 reference.
    np.testing.assert_allclose(np.asarray(out), np.asarray(ref),
                               rtol=4e-2, atol=4e-2)

    print("KERNEL_OK")
</pallas_src>

<mosaic_0001>
module attributes {stable_mosaic.version = 11 : i64} {
  func.func @_qkv_kernel(%arg0: i32, %arg1: i32, %arg2: memref<1x16x8xf32, #tpu.memory_space<vmem>>, %arg3: memref<8x32xbf16, #tpu.memory_space<vmem>>, %arg4: memref<1x32xf32, #tpu.memory_space<vmem>>, %arg5: memref<8x32xbf16, #tpu.memory_space<vmem>>, %arg6: memref<1x32xf32, #tpu.memory_space<vmem>>, %arg7: memref<8x32xbf16, #tpu.memory_space<vmem>>, %arg8: memref<1x32xf32, #tpu.memory_space<vmem>>, %arg9: memref<1x16x32xf32, #tpu.memory_space<vmem>>, %arg10: memref<1x16x32xbf16, #tpu.memory_space<vmem>>, %arg11: memref<1x16x32xbf16, #tpu.memory_space<vmem>>) attributes {dimension_semantics = [#tpu.dimension_semantics<parallel>, #tpu.dimension_semantics<parallel>], iteration_bounds = array<i64: 2, 4>, scalar_prefetch = 0 : i64, scratch_operands = 0 : i64, tpu.core_type = #tpu.core_type<tc>, window_params = [{transform_indices = @transform_0, window_bounds = array<i64: 1, 16, 8>}, {pipeline_mode = #tpu.pipeline_mode<synchronous>, transform_indices = @transform_1, window_bounds = array<i64: 8, 32>}, {pipeline_mode = #tpu.pipeline_mode<synchronous>, transform_indices = @transform_2, window_bounds = array<i64: 1, 32>}, {pipeline_mode = #tpu.pipeline_mode<synchronous>, transform_indices = @transform_3, window_bounds = array<i64: 8, 32>}, {pipeline_mode = #tpu.pipeline_mode<synchronous>, transform_indices = @transform_4, window_bounds = array<i64: 1, 32>}, {pipeline_mode = #tpu.pipeline_mode<synchronous>, transform_indices = @transform_5, window_bounds = array<i64: 8, 32>}, {pipeline_mode = #tpu.pipeline_mode<synchronous>, transform_indices = @transform_6, window_bounds = array<i64: 1, 32>}, {transform_indices = @transform_7, window_bounds = array<i64: 1, 16, 32>}, {transform_indices = @transform_8, window_bounds = array<i64: 1, 16, 32>}, {transform_indices = @transform_9, window_bounds = array<i64: 1, 16, 32>}]} {
    %c0 = arith.constant 0 : index
    %c0_0 = arith.constant 0 : index
    %c0_1 = arith.constant 0 : index
    %0 = vector.load %arg2[%c0, %c0_0, %c0_1] : memref<1x16x8xf32, #tpu.memory_space<vmem>>, vector<1x16x8xf32>
    %1 = vector.shape_cast %0 : vector<1x16x8xf32> to vector<16x8xf32>
    %2 = arith.truncf %1 : vector<16x8xf32> to vector<16x8xbf16>
    %c0_2 = arith.constant 0 : index
    %c0_3 = arith.constant 0 : index
    %3 = vector.load %arg3[%c0_2, %c0_3] : memref<8x32xbf16, #tpu.memory_space<vmem>>, vector<8x32xbf16>
    %cst = arith.constant dense<0.000000e+00> : vector<16x32xf32>
    %4 = tpu.matmul %2, %3, %cst {dimension_numbers = #tpu.dot_dimension_numbers<[1], [0], [0], [1], [0, 0, 1, 1], [], []>} : vector<16x8xbf16>, vector<8x32xbf16>, vector<16x32xf32> -> vector<16x32xf32>
    %c0_4 = arith.constant 0 : index
    %c0_5 = arith.constant 0 : index
    %5 = vector.load %arg4[%c0_4, %c0_5] : memref<1x32xf32, #tpu.memory_space<vmem>>, vector<1x32xf32>
    %6 = vector.broadcast %5 : vector<1x32xf32> to vector<16x32xf32>
    %7 = arith.addf %4, %6 : vector<16x32xf32>
    %c0_6 = arith.constant 0 : index
    %c0_7 = arith.constant 0 : index
    %c0_8 = arith.constant 0 : index
    %8 = vector.load %arg9[%c0_6, %c0_7, %c0_8] : memref<1x16x32xf32, #tpu.memory_space<vmem>>, vector<1x16x32xf32>
    %9 = vector.shape_cast %8 : vector<1x16x32xf32> to vector<16x32xf32>
    %10 = vector.shape_cast %7 : vector<16x32xf32> to vector<1x16x32xf32>
    tpu.vector_store %arg9[%c0_6, %c0_7, %c0_8], %10 {strides = array<i32>} : memref<1x16x32xf32, #tpu.memory_space<vmem>>, vector<1x16x32xf32>,
    %c0_9 = arith.constant 0 : index
    %c0_10 = arith.constant 0 : index
    %11 = vector.load %arg5[%c0_9, %c0_10] : memref<8x32xbf16, #tpu.memory_space<vmem>>, vector<8x32xbf16>
    %cst_11 = arith.constant dense<0.000000e+00> : vector<16x32xf32>
    %12 = tpu.matmul %2, %11, %cst_11 {dimension_numbers = #tpu.dot_dimension_numbers<[1], [0], [0], [1], [0, 0, 1, 1], [], []>} : vector<16x8xbf16>, vector<8x32xbf16>, vector<16x32xf32> -> vector<16x32xf32>
    %c0_12 = arith.constant 0 : index
    %c0_13 = arith.constant 0 : index
    %13 = vector.load %arg6[%c0_12, %c0_13] : memref<1x32xf32, #tpu.memory_space<vmem>>, vector<1x32xf32>
    %14 = vector.broadcast %13 : vector<1x32xf32> to vector<16x32xf32>
    %15 = arith.addf %12, %14 : vector<16x32xf32>
    %16 = arith.truncf %15 : vector<16x32xf32> to vector<16x32xbf16>
    %c0_14 = arith.constant 0 : index
    %c0_15 = arith.constant 0 : index
    %c0_16 = arith.constant 0 : index
    %17 = vector.load %arg10[%c0_14, %c0_15, %c0_16] : memref<1x16x32xbf16, #tpu.memory_space<vmem>>, vector<1x16x32xbf16>
    %18 = vector.shape_cast %17 : vector<1x16x32xbf16> to vector<16x32xbf16>
    %19 = vector.shape_cast %16 : vector<16x32xbf16> to vector<1x16x32xbf16>
    tpu.vector_store %arg10[%c0_14, %c0_15, %c0_16], %19 {strides = array<i32>} : memref<1x16x32xbf16, #tpu.memory_space<vmem>>, vector<1x16x32xbf16>,
    %c0_17 = arith.constant 0 : index
    %c0_18 = arith.constant 0 : index
    %20 = vector.load %arg7[%c0_17, %c0_18] : memref<8x32xbf16, #tpu.memory_space<vmem>>, vector<8x32xbf16>
    %cst_19 = arith.constant dense<0.000000e+00> : vector<16x32xf32>
    %21 = tpu.matmul %2, %20, %cst_19 {dimension_numbers = #tpu.dot_dimension_numbers<[1], [0], [0], [1], [0, 0, 1, 1], [], []>} : vector<16x8xbf16>, vector<8x32xbf16>, vector<16x32xf32> -> vector<16x32xf32>
    %c0_20 = arith.constant 0 : index
    %c0_21 = arith.constant 0 : index
    %22 = vector.load %arg8[%c0_20, %c0_21] : memref<1x32xf32, #tpu.memory_space<vmem>>, vector<1x32xf32>
    %23 = vector.broadcast %22 : vector<1x32xf32> to vector<16x32xf32>
    %24 = arith.addf %21, %23 : vector<16x32xf32>
    %25 = arith.truncf %24 : vector<16x32xf32> to vector<16x32xbf16>
    %c0_22 = arith.constant 0 : index
    %c0_23 = arith.constant 0 : index
    %c0_24 = arith.constant 0 : index
    %26 = vector.load %arg11[%c0_22, %c0_23, %c0_24] : memref<1x16x32xbf16, #tpu.memory_space<vmem>>, vector<1x16x32xbf16>
    %27 = vector.shape_cast %26 : vector<1x16x32xbf16> to vector<16x32xbf16>
    %28 = vector.shape_cast %25 : vector<16x32xbf16> to vector<1x16x32xbf16>
    tpu.vector_store %arg11[%c0_22, %c0_23, %c0_24], %28 {strides = array<i32>} : memref<1x16x32xbf16, #tpu.memory_space<vmem>>, vector<1x16x32xbf16>,
    return
  }
  func.func @transform_0(%arg0: i32, %arg1: i32) -> (i32, i32, i32) {
    %c0_i32 = arith.constant 0 : i32
    %c0_i32_0 = arith.constant 0 : i32
    return %arg0, %arg1, %c0_i32 : i32, i32, i32
  }
  func.func @transform_1(%arg0: i32, %arg1: i32) -> (i32, i32) {
    %c0_i32 = arith.constant 0 : i32
    %c0_i32_0 = arith.constant 0 : i32
    %c0_i32_1 = arith.constant 0 : i32
    return %c0_i32, %c0_i32_0 : i32, i32
  }
  func.func @transform_2(%arg0: i32, %arg1: i32) -> (i32, i32) {
    %c0_i32 = arith.constant 0 : i32
    %c0_i32_0 = arith.constant 0 : i32
    %c0_i32_1 = arith.constant 0 : i32
    return %c0_i32, %c0_i32_0 : i32, i32
  }
  func.func @transform_3(%arg0: i32, %arg1: i32) -> (i32, i32) {
    %c0_i32 = arith.constant 0 : i32
    %c0_i32_0 = arith.constant 0 : i32
    %c0_i32_1 = arith.constant 0 : i32
    return %c0_i32, %c0_i32_0 : i32, i32
  }
  func.func @transform_4(%arg0: i32, %arg1: i32) -> (i32, i32) {
    %c0_i32 = arith.constant 0 : i32
    %c0_i32_0 = arith.constant 0 : i32
    %c0_i32_1 = arith.constant 0 : i32
    return %c0_i32, %c0_i32_0 : i32, i32
  }
  func.func @transform_5(%arg0: i32, %arg1: i32) -> (i32, i32) {
    %c0_i32 = arith.constant 0 : i32
    %c0_i32_0 = arith.constant 0 : i32
    %c0_i32_1 = arith.constant 0 : i32
    return %c0_i32, %c0_i32_0 : i32, i32
  }
  func.func @transform_6(%arg0: i32, %arg1: i32) -> (i32, i32) {
    %c0_i32 = arith.constant 0 : i32
    %c0_i32_0 = arith.constant 0 : i32
    %c0_i32_1 = arith.constant 0 : i32
    return %c0_i32, %c0_i32_0 : i32, i32
  }
  func.func @transform_7(%arg0: i32, %arg1: i32) -> (i32, i32, i32) {
    %c0_i32 = arith.constant 0 : i32
    %c0_i32_0 = arith.constant 0 : i32
    return %arg0, %arg1, %c0_i32 : i32, i32, i32
  }
  func.func @transform_8(%arg0: i32, %arg1: i32) -> (i32, i32, i32) {
    %c0_i32 = arith.constant 0 : i32
    %c0_i32_0 = arith.constant 0 : i32
    return %arg0, %arg1, %c0_i32 : i32, i32, i32
  }
  func.func @transform_9(%arg0: i32, %arg1: i32) -> (i32, i32, i32) {
    %c0_i32 = arith.constant 0 : i32
    %c0_i32_0 = arith.constant 0 : i32
    return %arg0, %arg1, %c0_i32 : i32, i32, i32
  }
}

module attributes {stable_mosaic.version = 11 : i64} {
  func.func @_attn_kernel(%arg0: i32, %arg1: i32, %arg2: memref<1x16x8xf32, #tpu.memory_space<vmem>>, %arg3: memref<1x16x32xf32, #tpu.memory_space<vmem>>, %arg4: memref<1x128x32xbf16, #tpu.memory_space<vmem>>, %arg5: memref<1x128x32xbf16, #tpu.memory_space<vmem>>, %arg6: memref<1x128x3xf32, #tpu.memory_space<vmem>>, %arg7: memref<3x32xf32, #tpu.memory_space<vmem>>, %arg8: memref<1x32xf32, #tpu.memory_space<vmem>>, %arg9: memref<32x32xbf16, #tpu.memory_space<vmem>>, %arg10: memref<1x32xf32, #tpu.memory_space<vmem>>, %arg11: memref<32x32xbf16, #tpu.memory_space<vmem>>, %arg12: memref<1x32xf32, #tpu.memory_space<vmem>>, %arg13: memref<32x32xbf16, #tpu.memory_space<vmem>>, %arg14: memref<1x32xf32, #tpu.memory_space<vmem>>, %arg15: memref<32x128xbf16, #tpu.memory_space<vmem>>, %arg16: memref<8x128xbf16, #tpu.memory_space<vmem>>, %arg17: memref<1x128xf32, #tpu.memory_space<vmem>>, %arg18: memref<1x16x128xf32, #tpu.memory_space<vmem>>) attributes {dimension_semantics = [#tpu.dimension_semantics<parallel>, #tpu.dimension_semantics<parallel>], iteration_bounds = array<i64: 2, 4>, scalar_prefetch = 0 : i64, scratch_operands = 0 : i64, tpu.core_type = #tpu.core_type<tc>, window_params = [{transform_indices = @transform_0, window_bounds = array<i64: 1, 16, 8>}, {transform_indices = @transform_1, window_bounds = array<i64: 1, 16, 32>}, {transform_indices = @transform_2, window_bounds = array<i64: 1, 128, 32>}, {transform_indices = @transform_3, window_bounds = array<i64: 1, 128, 32>}, {transform_indices = @transform_4, window_bounds = array<i64: 1, 128, 3>}, {pipeline_mode = #tpu.pipeline_mode<synchronous>, transform_indices = @transform_5, window_bounds = array<i64: 3, 32>}, {pipeline_mode = #tpu.pipeline_mode<synchronous>, transform_indices = @transform_6, window_bounds = array<i64: 1, 32>}, {pipeline_mode = #tpu.pipeline_mode<synchronous>, transform_indices = @transform_7, window_bounds = array<i64: 32, 32>}, {pipeline_mode = #tpu.pipeline_mode<synchronous>, transform_indices = @transform_8, window_bounds = array<i64: 1, 32>}, {pipeline_mode = #tpu.pipeline_mode<synchronous>, transform_indices = @transform_9, window_bounds = array<i64: 32, 32>}, {pipeline_mode = #tpu.pipeline_mode<synchronous>, transform_indices = @transform_10, window_bounds = array<i64: 1, 32>}, {pipeline_mode = #tpu.pipeline_mode<synchronous>, transform_indices = @transform_11, window_bounds = array<i64: 32, 32>}, {pipeline_mode = #tpu.pipeline_mode<synchronous>, transform_indices = @transform_12, window_bounds = array<i64: 1, 32>}, {pipeline_mode = #tpu.pipeline_mode<synchronous>, transform_indices = @transform_13, window_bounds = array<i64: 32, 128>}, {pipeline_mode = #tpu.pipeline_mode<synchronous>, transform_indices = @transform_14, window_bounds = array<i64: 8, 128>}, {pipeline_mode = #tpu.pipeline_mode<synchronous>, transform_indices = @transform_15, window_bounds = array<i64: 1, 128>}, {transform_indices = @transform_16, window_bounds = array<i64: 1, 16, 128>}]} {
    %c0 = arith.constant 0 : index
    %c0_0 = arith.constant 0 : index
    %c0_1 = arith.constant 0 : index
    %0 = vector.load %arg3[%c0, %c0_0, %c0_1] : memref<1x16x32xf32, #tpu.memory_space<vmem>>, vector<1x16x32xf32>
    %1 = vector.shape_cast %0 : vector<1x16x32xf32> to vector<16x32xf32>
    %c0_2 = arith.constant 0 : index
    %c0_3 = arith.constant 0 : index
    %c0_4 = arith.constant 0 : index
    %2 = vector.load %arg4[%c0_2, %c0_3, %c0_4] : memref<1x128x32xbf16, #tpu.memory_space<vmem>>, vector<1x128x32xbf16>
    %3 = vector.shape_cast %2 : vector<1x128x32xbf16> to vector<128x32xbf16>
    %4 = arith.extf %3 : vector<128x32xbf16> to vector<128x32xf32>
    %c0_5 = arith.constant 0 : index
    %c0_6 = arith.constant 0 : index
    %c0_7 = arith.constant 0 : index
    %5 = vector.load %arg5[%c0_5, %c0_6, %c0_7] : memref<1x128x32xbf16, #tpu.memory_space<vmem>>, vector<1x128x32xbf16>
    %6 = vector.shape_cast %5 : vector<1x128x32xbf16> to vector<128x32xbf16>
    %7 = arith.extf %6 : vector<128x32xbf16> to vector<128x32xf32>
    %c0_8 = arith.constant 0 : index
    %c0_9 = arith.constant 0 : index
    %c0_10 = arith.constant 0 : index
    %8 = vector.load %arg6[%c0_8, %c0_9, %c0_10] : memref<1x128x3xf32, #tpu.memory_space<vmem>>, vector<1x128x3xf32>
    %9 = vector.shape_cast %8 : vector<1x128x3xf32> to vector<128x3xf32>
    %c0_11 = arith.constant 0 : index
    %c0_12 = arith.constant 0 : index
    %10 = vector.load %arg7[%c0_11, %c0_12] : memref<3x32xf32, #tpu.memory_space<vmem>>, vector<3x32xf32>
    %11 = vector.extract_strided_slice %9 {offsets = [0, 0], sizes = [128, 1], strides = [1, 1]} : vector<128x3xf32> to vector<128x1xf32>
    %12 = vector.extract_strided_slice %10 {offsets = [0, 0], sizes = [1, 32], strides = [1, 1]} : vector<3x32xf32> to vector<1x32xf32>
    %13 = vector.broadcast %11 : vector<128x1xf32> to vector<128x32xf32>
    %14 = vector.broadcast %12 : vector<1x32xf32> to vector<128x32xf32>
    %15 = arith.mulf %13, %14 : vector<128x32xf32>
    %16 = vector.extract_strided_slice %9 {offsets = [0, 1], sizes = [128, 1], strides = [1, 1]} : vector<128x3xf32> to vector<128x1xf32>
    %17 = vector.extract_strided_slice %10 {offsets = [1, 0], sizes = [1, 32], strides = [1, 1]} : vector<3x32xf32> to vector<1x32xf32>
    %18 = vector.broadcast %16 : vector<128x1xf32> to vector<128x32xf32>
    %19 = vector.broadcast %17 : vector<1x32xf32> to vector<128x32xf32>
    %20 = arith.mulf %18, %19 : vector<128x32xf32>
    %21 = arith.addf %15, %20 : vector<128x32xf32>
    %22 = vector.extract_strided_slice %9 {offsets = [0, 2], sizes = [128, 1], strides = [1, 1]} : vector<128x3xf32> to vector<128x1xf32>
    %23 = vector.extract_strided_slice %10 {offsets = [2, 0], sizes = [1, 32], strides = [1, 1]} : vector<3x32xf32> to vector<1x32xf32>
    %24 = vector.broadcast %22 : vector<128x1xf32> to vector<128x32xf32>
    %25 = vector.broadcast %23 : vector<1x32xf32> to vector<128x32xf32>
    %26 = arith.mulf %24, %25 : vector<128x32xf32>
    %27 = arith.addf %21, %26 : vector<128x32xf32>
    %c0_13 = arith.constant 0 : index
    %c0_14 = arith.constant 0 : index
    %28 = vector.load %arg8[%c0_13, %c0_14] : memref<1x32xf32, #tpu.memory_space<vmem>>, vector<1x32xf32>
    %29 = vector.broadcast %28 : vector<1x32xf32> to vector<128x32xf32>
    %30 = arith.addf %27, %29 : vector<128x32xf32>
    %cst = arith.constant 0.000000e+00 : f32
    %31 = vector.broadcast %cst : f32 to vector<128x32xf32>
    %32 = arith.maximumf %30, %31 : vector<128x32xf32>
    %33 = arith.truncf %32 : vector<128x32xf32> to vector<128x32xbf16>
    %c0_15 = arith.constant 0 : index
    %c0_16 = arith.constant 0 : index
    %34 = vector.load %arg9[%c0_15, %c0_16] : memref<32x32xbf16, #tpu.memory_space<vmem>>, vector<32x32xbf16>
    %cst_17 = arith.constant dense<0.000000e+00> : vector<128x32xf32>
    %35 = tpu.matmul %33, %34, %cst_17 {dimension_numbers = #tpu.dot_dimension_numbers<[1], [0], [0], [1], [0, 0, 1, 1], [], []>} : vector<128x32xbf16>, vector<32x32xbf16>, vector<128x32xf32> -> vector<128x32xf32>
    %c0_18 = arith.constant 0 : index
    %c0_19 = arith.constant 0 : index
    %36 = vector.load %arg10[%c0_18, %c0_19] : memref<1x32xf32, #tpu.memory_space<vmem>>, vector<1x32xf32>
    %37 = vector.broadcast %36 : vector<1x32xf32> to vector<128x32xf32>
    %38 = arith.addf %35, %37 : vector<128x32xf32>
    %39 = vector.shape_cast %1 : vector<16x32xf32> to vector<16x1x32xf32>
    %40 = vector.shape_cast %4 : vector<128x32xf32> to vector<16x8x32xf32>
    %41 = vector.broadcast %39 : vector<16x1x32xf32> to vector<16x8x32xf32>
    %42 = arith.subf %41, %40 : vector<16x8x32xf32>
    %43 = vector.shape_cast %38 : vector<128x32xf32> to vector<16x8x32xf32>
    %44 = arith.addf %42, %43 : vector<16x8x32xf32>
    %45 = vector.shape_cast %44 : vector<16x8x32xf32> to vector<128x32xf32>
    %46 = arith.truncf %45 : vector<128x32xf32> to vector<128x32xbf16>
    %c0_20 = arith.constant 0 : index
    %c0_21 = arith.constant 0 : index
    %47 = vector.load %arg11[%c0_20, %c0_21] : memref<32x32xbf16, #tpu.memory_space<vmem>>, vector<32x32xbf16>
    %cst_22 = arith.constant dense<0.000000e+00> : vector<128x32xf32>
    %48 = tpu.matmul %46, %47, %cst_22 {dimension_numbers = #tpu.dot_dimension_numbers<[1], [0], [0], [1], [0, 0, 1, 1], [], []>} : vector<128x32xbf16>, vector<32x32xbf16>, vector<128x32xf32> -> vector<128x32xf32>
    %c0_23 = arith.constant 0 : index
    %c0_24 = arith.constant 0 : index
    %49 = vector.load %arg12[%c0_23, %c0_24] : memref<1x32xf32, #tpu.memory_space<vmem>>, vector<1x32xf32>
    %50 = vector.broadcast %49 : vector<1x32xf32> to vector<128x32xf32>
    %51 = arith.addf %48, %50 : vector<128x32xf32>
    %cst_25 = arith.constant 0.000000e+00 : f32
    %52 = vector.broadcast %cst_25 : f32 to vector<128x32xf32>
    %53 = arith.maximumf %51, %52 : vector<128x32xf32>
    %54 = arith.truncf %53 : vector<128x32xf32> to vector<128x32xbf16>
    %c0_26 = arith.constant 0 : index
    %c0_27 = arith.constant 0 : index
    %55 = vector.load %arg13[%c0_26, %c0_27] : memref<32x32xbf16, #tpu.memory_space<vmem>>, vector<32x32xbf16>
    %cst_28 = arith.constant dense<0.000000e+00> : vector<128x32xf32>
    %56 = tpu.matmul %54, %55, %cst_28 {dimension_numbers = #tpu.dot_dimension_numbers<[1], [0], [0], [1], [0, 0, 1, 1], [], []>} : vector<128x32xbf16>, vector<32x32xbf16>, vector<128x32xf32> -> vector<128x32xf32>
    %c0_29 = arith.constant 0 : index
    %c0_30 = arith.constant 0 : index
    %57 = vector.load %arg14[%c0_29, %c0_30] : memref<1x32xf32, #tpu.memory_space<vmem>>, vector<1x32xf32>
    %58 = vector.broadcast %57 : vector<1x32xf32> to vector<128x32xf32>
    %59 = arith.addf %56, %58 : vector<128x32xf32>
    %60 = vector.shape_cast %59 : vector<128x32xf32> to vector<16x8x32xf32>
    %cst_31 = arith.constant dense<0xFF800000> : vector<16x32xf32>
    %61 = vector.multi_reduction <maximumf>, %60, %cst_31 [1] : vector<16x8x32xf32> to vector<16x32xf32>
    %62 = vector.shape_cast %61 : vector<16x32xf32> to vector<16x1x32xf32>
    %63 = vector.broadcast %62 : vector<16x1x32xf32> to vector<16x8x32xf32>
    %64 = arith.subf %60, %63 : vector<16x8x32xf32>
    %65 = math.exp %64 : vector<16x8x32xf32>
    %cst_32 = arith.constant dense<0.000000e+00> : vector<16x32xf32>
    %66 = vector.multi_reduction <add>, %65, %cst_32 [1] : vector<16x8x32xf32> to vector<16x32xf32>
    %67 = vector.shape_cast %66 : vector<16x32xf32> to vector<16x1x32xf32>
    %68 = tpu.reciprocal %67 {approx = true} : vector<16x1x32xf32> -> vector<16x1x32xf32>
    %69 = vector.broadcast %68 : vector<16x1x32xf32> to vector<16x8x32xf32>
    %70 = arith.mulf %65, %69 : vector<16x8x32xf32>
    %71 = arith.addf %7, %38 : vector<128x32xf32>
    %72 = vector.shape_cast %71 : vector<128x32xf32> to vector<16x8x32xf32>
    %73 = arith.mulf %70, %72 : vector<16x8x32xf32>
    %cst_33 = arith.constant dense<0.000000e+00> : vector<16x32xf32>
    %74 = vector.multi_reduction <add>, %73, %cst_33 [1] : vector<16x8x32xf32> to vector<16x32xf32>
    %75 = arith.truncf %74 : vector<16x32xf32> to vector<16x32xbf16>
    %c0_34 = arith.constant 0 : index
    %c0_35 = arith.constant 0 : index
    %76 = vector.load %arg15[%c0_34, %c0_35] : memref<32x128xbf16, #tpu.memory_space<vmem>>, vector<32x128xbf16>
    %cst_36 = arith.constant dense<0.000000e+00> : vector<16x128xf32>
    %77 = tpu.matmul %75, %76, %cst_36 {dimension_numbers = #tpu.dot_dimension_numbers<[1], [0], [0], [1], [0, 0, 1, 1], [], []>} : vector<16x32xbf16>, vector<32x128xbf16>, vector<16x128xf32> -> vector<16x128xf32>
    %c0_37 = arith.constant 0 : index
    %c0_38 = arith.constant 0 : index
    %c0_39 = arith.constant 0 : index
    %78 = vector.load %arg2[%c0_37, %c0_38, %c0_39] : memref<1x16x8xf32, #tpu.memory_space<vmem>>, vector<1x16x8xf32>
    %79 = vector.shape_cast %78 : vector<1x16x8xf32> to vector<16x8xf32>
    %80 = arith.truncf %79 : vector<16x8xf32> to vector<16x8xbf16>
    %c0_40 = arith.constant 0 : index
    %c0_41 = arith.constant 0 : index
    %81 = vector.load %arg16[%c0_40, %c0_41] : memref<8x128xbf16, #tpu.memory_space<vmem>>, vector<8x128xbf16>
    %cst_42 = arith.constant dense<0.000000e+00> : vector<16x128xf32>
    %82 = tpu.matmul %80, %81, %cst_42 {dimension_numbers = #tpu.dot_dimension_numbers<[1], [0], [0], [1], [0, 0, 1, 1], [], []>} : vector<16x8xbf16>, vector<8x128xbf16>, vector<16x128xf32> -> vector<16x128xf32>
    %83 = arith.addf %77, %82 : vector<16x128xf32>
    %c0_43 = arith.constant 0 : index
    %c0_44 = arith.constant 0 : index
    %84 = vector.load %arg17[%c0_43, %c0_44] : memref<1x128xf32, #tpu.memory_space<vmem>>, vector<1x128xf32>
    %85 = vector.broadcast %84 : vector<1x128xf32> to vector<16x128xf32>
    %86 = arith.addf %83, %85 : vector<16x128xf32>
    %c0_45 = arith.constant 0 : index
    %c0_46 = arith.constant 0 : index
    %c0_47 = arith.constant 0 : index
    %87 = vector.load %arg18[%c0_45, %c0_46, %c0_47] : memref<1x16x128xf32, #tpu.memory_space<vmem>>, vector<1x16x128xf32>
    %88 = vector.shape_cast %87 : vector<1x16x128xf32> to vector<16x128xf32>
    %89 = vector.shape_cast %86 : vector<16x128xf32> to vector<1x16x128xf32>
    tpu.vector_store %arg18[%c0_45, %c0_46, %c0_47], %89 {strides = array<i32>} : memref<1x16x128xf32, #tpu.memory_space<vmem>>, vector<1x16x128xf32>,
    return
  }
  func.func @transform_0(%arg0: i32, %arg1: i32) -> (i32, i32, i32) {
    %c0_i32 = arith.constant 0 : i32
    %c0_i32_0 = arith.constant 0 : i32
    return %arg0, %arg1, %c0_i32 : i32, i32, i32
  }
  func.func @transform_1(%arg0: i32, %arg1: i32) -> (i32, i32, i32) {
    %c0_i32 = arith.constant 0 : i32
    %c0_i32_0 = arith.constant 0 : i32
    return %arg0, %arg1, %c0_i32 : i32, i32, i32
  }
  func.func @transform_2(%arg0: i32, %arg1: i32) -> (i32, i32, i32) {
    %c0_i32 = arith.constant 0 : i32
    %c0_i32_0 = arith.constant 0 : i32
    return %arg0, %arg1, %c0_i32 : i32, i32, i32
  }
  func.func @transform_3(%arg0: i32, %arg1: i32) -> (i32, i32, i32) {
    %c0_i32 = arith.constant 0 : i32
    %c0_i32_0 = arith.constant 0 : i32
    return %arg0, %arg1, %c0_i32 : i32, i32, i32
  }
  func.func @transform_4(%arg0: i32, %arg1: i32) -> (i32, i32, i32) {
    %c0_i32 = arith.constant 0 : i32
    %c0_i32_0 = arith.constant 0 : i32
    return %arg0, %arg1, %c0_i32 : i32, i32, i32
  }
  func.func @transform_5(%arg0: i32, %arg1: i32) -> (i32, i32) {
    %c0_i32 = arith.constant 0 : i32
    %c0_i32_0 = arith.constant 0 : i32
    %c0_i32_1 = arith.constant 0 : i32
    return %c0_i32, %c0_i32_0 : i32, i32
  }
  func.func @transform_6(%arg0: i32, %arg1: i32) -> (i32, i32) {
    %c0_i32 = arith.constant 0 : i32
    %c0_i32_0 = arith.constant 0 : i32
    %c0_i32_1 = arith.constant 0 : i32
    return %c0_i32, %c0_i32_0 : i32, i32
  }
  func.func @transform_7(%arg0: i32, %arg1: i32) -> (i32, i32) {
    %c0_i32 = arith.constant 0 : i32
    %c0_i32_0 = arith.constant 0 : i32
    %c0_i32_1 = arith.constant 0 : i32
    return %c0_i32, %c0_i32_0 : i32, i32
  }
  func.func @transform_8(%arg0: i32, %arg1: i32) -> (i32, i32) {
    %c0_i32 = arith.constant 0 : i32
    %c0_i32_0 = arith.constant 0 : i32
    %c0_i32_1 = arith.constant 0 : i32
    return %c0_i32, %c0_i32_0 : i32, i32
  }
  func.func @transform_9(%arg0: i32, %arg1: i32) -> (i32, i32) {
    %c0_i32 = arith.constant 0 : i32
    %c0_i32_0 = arith.constant 0 : i32
    %c0_i32_1 = arith.constant 0 : i32
    return %c0_i32, %c0_i32_0 : i32, i32
  }
  func.func @transform_10(%arg0: i32, %arg1: i32) -> (i32, i32) {
    %c0_i32 = arith.constant 0 : i32
    %c0_i32_0 = arith.constant 0 : i32
    %c0_i32_1 = arith.constant 0 : i32
    return %c0_i32, %c0_i32_0 : i32, i32
  }
  func.func @transform_11(%arg0: i32, %arg1: i32) -> (i32, i32) {
    %c0_i32 = arith.constant 0 : i32
    %c0_i32_0 = arith.constant 0 : i32
    %c0_i32_1 = arith.constant 0 : i32
    return %c0_i32, %c0_i32_0 : i32, i32
  }
  func.func @transform_12(%arg0: i32, %arg1: i32) -> (i32, i32) {
    %c0_i32 = arith.constant 0 : i32
    %c0_i32_0 = arith.constant 0 : i32
    %c0_i32_1 = arith.constant 0 : i32
    return %c0_i32, %c0_i32_0 : i32, i32
  }
  func.func @transform_13(%arg0: i32, %arg1: i32) -> (i32, i32) {
    %c0_i32 = arith.constant 0 : i32
    %c0_i32_0 = arith.constant 0 : i32
    %c0_i32_1 = arith.constant 0 : i32
    return %c0_i32, %c0_i32_0 : i32, i32
  }
  func.func @transform_14(%arg0: i32, %arg1: i32) -> (i32, i32) {
    %c0_i32 = arith.constant 0 : i32
    %c0_i32_0 = arith.constant 0 : i32
    %c0_i32_1 = arith.constant 0 : i32
    return %c0_i32, %c0_i32_0 : i32, i32
  }
  func.func @transform_15(%arg0: i32, %arg1: i32) -> (i32, i32) {
    %c0_i32 = arith.constant 0 : i32
    %c0_i32_0 = arith.constant 0 : i32
    %c0_i32_1 = arith.constant 0 : i32
    return %c0_i32, %c0_i32_0 : i32, i32
  }
  func.func @transform_16(%arg0: i32, %arg1: i32) -> (i32, i32, i32) {
    %c0_i32 = arith.constant 0 : i32
    %c0_i32_0 = arith.constant 0 : i32
    return %arg0, %arg1, %c0_i32 : i32, i32, i32
  }
}

</mosaic_0001>

<llo_original>
// kernel: neg.1
$region0: #{neg.1}
  #allocation0 [shape = 's32[1]{0}', space=sflag, size = 0x4, scoped, tag = 'scoped memory for neg.1']
  %s0 = inlined_call_operand.vmem [shape: f32[2,64,64], index: 0, kind: input, shape index: {}]
  %s1 = inlined_call_operand.vmem [shape: f32[2,64,64], index: 1, kind: output, shape index: {}]
  %v2 = vld [vmem:[%s0] sm:$0xff]
  %3 = xla_tuple %v2
  %4 = xla_tuple %3
  %v5 = vxor.u32 %v2, 2147483648
  %6 = xla_tuple %v5
  %7 = vst [vmem:[%s1] sm:$0xff] %v5
  %s8 = scalar_lea.vmem %s0, 64
  %v9 = vld [vmem:[%s8] sm:$0xff]
  %10 = xla_tuple %v9
  %11 = xla_tuple %10
  %v12 = vxor.u32 %v9, 2147483648
  %13 = xla_tuple %v12
  %s14 = scalar_lea.vmem %s1, 64
  %15 = vst [vmem:[%s14] sm:$0xff] %v12
  %s16 = scalar_lea.vmem %s0, 8
  %v17 = vld [vmem:[%s16] sm:$0xff]
  %18 = xla_tuple %v17
  %19 = xla_tuple %18
  %v20 = vxor.u32 %v17, 2147483648
  %21 = xla_tuple %v20
  %s22 = scalar_lea.vmem %s1, 8
  %23 = vst [vmem:[%s22] sm:$0xff] %v20
  %s24 = scalar_lea.vmem %s0, 72
  %v25 = vld [vmem:[%s24] sm:$0xff]
  %26 = xla_tuple %v25
  %27 = xla_tuple %26
  %v28 = vxor.u32 %v25, 2147483648
  %29 = xla_tuple %v28
  %s30 = scalar_lea.vmem %s1, 72
  %31 = vst [vmem:[%s30] sm:$0xff] %v28
  %s32 = scalar_lea.vmem %s0, 16
  %v33 = vld [vmem:[%s32] sm:$0xff]
  %34 = xla_tuple %v33
  %35 = xla_tuple %34
  %v36 = vxor.u32 %v33, 2147483648
  %37 = xla_tuple %v36
  %s38 = scalar_lea.vmem %s1, 16
  %39 = vst [vmem:[%s38] sm:$0xff] %v36
  %s40 = scalar_lea.vmem %s0, 80
  %v41 = vld [vmem:[%s40] sm:$0xff]
  %42 = xla_tuple %v41
  %43 = xla_tuple %42
  %v44 = vxor.u32 %v41, 2147483648
  %45 = xla_tuple %v44
  %s46 = scalar_lea.vmem %s1, 80
  %47 = vst [vmem:[%s46] sm:$0xff] %v44
  %s48 = scalar_lea.vmem %s0, 24
  %v49 = vld [vmem:[%s48] sm:$0xff]
  %50 = xla_tuple %v49
  %51 = xla_tuple %50
  %v52 = vxor.u32 %v49, 2147483648
  %53 = xla_tuple %v52
  %s54 = scalar_lea.vmem %s1, 24
  %55 = vst [vmem:[%s54] sm:$0xff] %v52
  %s56 = scalar_lea.vmem %s0, 88
  %v57 = vld [vmem:[%s56] sm:$0xff]
  %58 = xla_tuple %v57
  %59 = xla_tuple %58
  %v60 = vxor.u32 %v57, 2147483648
  %61 = xla_tuple %v60
  %s62 = scalar_lea.vmem %s1, 88
  %63 = vst [vmem:[%s62] sm:$0xff] %v60
  %s64 = scalar_lea.vmem %s0, 32
  %v65 = vld [vmem:[%s64] sm:$0xff]
  %66 = xla_tuple %v65
  %67 = xla_tuple %66
  %v68 = vxor.u32 %v65, 2147483648
  %69 = xla_tuple %v68
  %s70 = scalar_lea.vmem %s1, 32
  %71 = vst [vmem:[%s70] sm:$0xff] %v68
  %s72 = scalar_lea.vmem %s0, 96
  %v73 = vld [vmem:[%s72] sm:$0xff]
  %74 = xla_tuple %v73
  %75 = xla_tuple %74
  %v76 = vxor.u32 %v73, 2147483648
  %77 = xla_tuple %v76
  %s78 = scalar_lea.vmem %s1, 96
  %79 = vst [vmem:[%s78] sm:$0xff] %v76
  %s80 = scalar_lea.vmem %s0, 40
  %v81 = vld [vmem:[%s80] sm:$0xff]
  %82 = xla_tuple %v81
  %83 = xla_tuple %82
  %v84 = vxor.u32 %v81, 2147483648
  %85 = xla_tuple %v84
  %s86 = scalar_lea.vmem %s1, 40
  %87 = vst [vmem:[%s86] sm:$0xff] %v84
  %s88 = scalar_lea.vmem %s0, 104
  %v89 = vld [vmem:[%s88] sm:$0xff]
  %90 = xla_tuple %v89
  %91 = xla_tuple %90
  %v92 = vxor.u32 %v89, 2147483648
  %93 = xla_tuple %v92
  %s94 = scalar_lea.vmem %s1, 104
  %95 = vst [vmem:[%s94] sm:$0xff] %v92
  %s96 = scalar_lea.vmem %s0, 48
  %v97 = vld [vmem:[%s96] sm:$0xff]
  %98 = xla_tuple %v97
  %99 = xla_tuple %98
  %v100 = vxor.u32 %v97, 2147483648
  %101 = xla_tuple %v100
  %s102 = scalar_lea.vmem %s1, 48
  %103 = vst [vmem:[%s102] sm:$0xff] %v100
  %s104 = scalar_lea.vmem %s0, 112
  %v105 = vld [vmem:[%s104] sm:$0xff]
  %106 = xla_tuple %v105
  %107 = xla_tuple %106
  %v108 = vxor.u32 %v105, 2147483648
  %109 = xla_tuple %v108
  %s110 = scalar_lea.vmem %s1, 112
  %111 = vst [vmem:[%s110] sm:$0xff] %v108
  %s112 = scalar_lea.vmem %s0, 56
  %v113 = vld [vmem:[%s112] sm:$0xff]
  %114 = xla_tuple %v113
  %115 = xla_tuple %114
  %v116 = vxor.u32 %v113, 2147483648
  %117 = xla_tuple %v116
  %s118 = scalar_lea.vmem %s1, 56
  %119 = vst [vmem:[%s118] sm:$0xff] %v116
  %s120 = scalar_lea.vmem %s0, 120
  %v121 = vld [vmem:[%s120] sm:$0xff]
  %122 = xla_tuple %v121
  %123 = xla_tuple %122
  %v124 = vxor.u32 %v121, 2147483648
  %125 = xla_tuple %v124
  %s126 = scalar_lea.vmem %s1, 120
  %127 = vst [vmem:[%s126] sm:$0xff] %v124

// kernel: transformer_block_forward.2
$region0: #{transformer_block_forward.2}
  #allocation0 [shape = 'u32[]', space=smem, size = 0x4, offset = 0x4, fixed_abs, tag = 'smem constant byte address 0x4 - core index']
  #allocation1 [shape = 'u32[72,128]{1,0:T(1,128)}', space=vmem, size = 0x9000, scoped, tag = 'internal scratch']
  %s0 = inlined_call_operand.vmem [shape: f32[2,64,8], index: 0, kind: input, shape index: {}]
  %s1 = inlined_call_operand.vmem [shape: bf16[8,32], index: 1, kind: input, shape index: {}]
  %s2 = inlined_call_operand.vmem [shape: f32[1,32], index: 2, kind: input, shape index: {}]
  %s3 = inlined_call_operand.vmem [shape: bf16[8,32], index: 3, kind: input, shape index: {}]
  %s4 = inlined_call_operand.vmem [shape: f32[1,32], index: 4, kind: input, shape index: {}]
  %s5 = inlined_call_operand.vmem [shape: bf16[8,32], index: 5, kind: input, shape index: {}]
  %s6 = inlined_call_operand.vmem [shape: f32[1,32], index: 6, kind: input, shape index: {}]
  %s7 = inlined_call_operand.vmem [shape: f32[2,64,32], index: 7, kind: output, shape index: {0}]
  %s8 = inlined_call_operand.vmem [shape: bf16[2,64,32], index: 8, kind: output, shape index: {1}]
  %s9 = inlined_call_operand.vmem [shape: bf16[2,64,32], index: 9, kind: output, shape index: {2}]
  %10 = xla_tuple %s7, %s8, %s9
  %s11 = sld [smem:[#allocation0]]
  $region77: #{transformer_block_forward.2} parent=0
    _
  %s13 = ssub.s32 1, %s11
  %s14 = scalar_select 0, %s13, %s11
  loop: start=0, step=1, limit=10
  $region2: #{transformer_block_forward.2} parent=0 // loop_pre_header
    _
  $region3: #{transformer_block_forward.2} parent=0 // loop_header
    %s16 = sphi 0, %s20
    %p17 = scmp.ge.s32.totalorder %s16, 10
    %s23 = sphi 0, %s35
    %s24 = sphi 0, %s31
    %s25 = sphi 0, %s23
    %s26 = sphi 0, %s24
    %s27 = sphi 0, %s25
    %s28 = sphi 0, %s26
    %s40 = sphi 0, %s42
    %s43 = sphi 0, %s40
    %s44 = sphi 0, %s43
    %s60 = sphi 0, %s44
    %s64 = sphi 0, %s64
    %s66 = sphi 0, %s64
    %s67 = sphi 0, %s66
    %s81 = sphi 0, %s67
    %s85 = sphi 0, %s85
    %s87 = sphi 0, %s85
    %s88 = sphi 0, %s87
    %s102 = sphi 0, %s88
    %s106 = sphi 0, %s106
    %s108 = sphi 0, %s106
    %s109 = sphi 0, %s108
    %s123 = sphi 0, %s109
    %s127 = sphi 0, %s127
    %s129 = sphi 0, %s127
    %s130 = sphi 0, %s129
    %s144 = sphi 0, %s130
    %s148 = sphi 0, %s148
    %s150 = sphi 0, %s148
    %s151 = sphi 0, %s150
    %s165 = sphi 0, %s151
    %s169 = sphi 0, %s169
    %s171 = sphi 0, %s169
    %s172 = sphi 0, %s171
    %s186 = sphi 0, %s172
    %s194 = sphi 0, %s196
    %s197 = sphi 0, %s194
    %s198 = sphi 0, %s197
    %s214 = sphi 0, %s198
    %s222 = sphi 0, %s224
    %s225 = sphi 0, %s222
    %s226 = sphi 0, %s225
    %s242 = sphi 0, %s226
    %s250 = sphi 0, %s252
    %s253 = sphi 0, %s250
    %s254 = sphi 0, %s253
    %s270 = sphi 0, %s254
  $region4: #{transformer_block_forward.2} parent=0 // loop_header_branch
    %19 = sbr.rel (%p17) target = $region8
  $region5: #{transformer_block_forward.2} parent=0 // loop_body
    %s21 = ssub.s32 %s16, 1
    %s22 = ssub.s32 %s16, 2
    %s29 = sadd.s32 1, %s24
    %p30 = scmp.ge.s32.totalorder %s29, 4
    %s31 = scalar_select %p30, 0, %s29
    %s32 = sadd.s32 1, %s23
    %s33 = scalar_select %p30, %s32, %s23
    %p34 = scmp.ge.s32.totalorder %s33, 2
    %s35 = scalar_select %p34, 0, %s33
    %s36 = ssub.s32 %s23, %s35
    %s37 = ssub.s32 %s24, %s31
    %s38 = sor.u32 %s36, %s37
    %p39 = scmp.eq.s32.totalorder %s38, 0
    %s41 = sadd.s32 %s40, 1
    %s42 = scalar_select %p39, %s40, %s41
    %p45 = pneg %p39
    %p46 = scmp.eq.s32.totalorder %s16, 7
    %p47 = por %p45, %p46
    %p48 = scmp.ne.s32.totalorder %s40, %s43
    %p49 = scmp.eq.s32.totalorder %s16, 0
    %p50 = por %p48, %p49
    %p51 = scmp.ne.s32.totalorder %s40, %s43
    %p52 = scmp.eq.s32.totalorder %s21, 7
    %p53 = por %p51, %p52
    %p54 = scmp.ne.s32.totalorder %s43, %s44
    %p55 = scmp.eq.s32.totalorder %s21, 0
    %p56 = por %p54, %p55
    %p57 = scmp.ne.s32.totalorder %s43, %s44
    %p58 = scmp.eq.s32.totalorder %s22, 7
    %p59 = por %p57, %p58
    %p61 = scmp.ne.s32.totalorder %s44, %s60
    %p62 = scmp.eq.s32.totalorder %s22, 0
    %p63 = por %p61, %p62
    %s65 = sadd.s32 %s64, 1
    %p68 = scmp.eq.s32.totalorder %s16, 7
    %p69 = scmp.ne.s32.totalorder %s64, %s66
    %p70 = scmp.eq.s32.totalorder %s16, 0
    %p71 = por %p69, %p70
    %p72 = scmp.ne.s32.totalorder %s64, %s66
    %p73 = scmp.eq.s32.totalorder %s21, 7
    %p74 = por %p72, %p73
    %p75 = scmp.ne.s32.totalorder %s66, %s67
    %p76 = scmp.eq.s32.totalorder %s21, 0
    %p77 = por %p75, %p76
    %p78 = scmp.ne.s32.totalorder %s66, %s67
    %p79 = scmp.eq.s32.totalorder %s22, 7
    %p80 = por %p78, %p79
    %p82 = scmp.ne.s32.totalorder %s67, %s81
    %p83 = scmp.eq.s32.totalorder %s22, 0
    %p84 = por %p82, %p83
    %s86 = sadd.s32 %s85, 1
    %p89 = scmp.eq.s32.totalorder %s16, 7
    %p90 = scmp.ne.s32.totalorder %s85, %s87
    %p91 = scmp.eq.s32.totalorder %s16, 0
    %p92 = por %p90, %p91
    %p93 = scmp.ne.s32.totalorder %s85, %s87
    %p94 = scmp.eq.s32.totalorder %s21, 7
    %p95 = por %p93, %p94
    %p96 = scmp.ne.s32.totalorder %s87, %s88
    %p97 = scmp.eq.s32.totalorder %s21, 0
    %p98 = por %p96, %p97
    %p99 = scmp.ne.s32.totalorder %s87, %s88
    %p100 = scmp.eq.s32.totalorder %s22, 7
    %p101 = por %p99, %p100
    %p103 = scmp.ne.s32.totalorder %s88, %s102
    %p104 = scmp.eq.s32.totalorder %s22, 0
    %p105 = por %p103, %p104
    %s107 = sadd.s32 %s106, 1
    %p110 = scmp.eq.s32.totalorder %s16, 7
    %p111 = scmp.ne.s32.totalorder %s106, %s108
    %p112 = scmp.eq.s32.totalorder %s16, 0
    %p113 = por %p111, %p112
    %p114 = scmp.ne.s32.totalorder %s106, %s108
    %p115 = scmp.eq.s32.totalorder %s21, 7
    %p116 = por %p114, %p115
    %p117 = scmp.ne.s32.totalorder %s108, %s109
    %p118 = scmp.eq.s32.totalorder %s21, 0
    %p119 = por %p117, %p118
    %p120 = scmp.ne.s32.totalorder %s108, %s109
    %p121 = scmp.eq.s32.totalorder %s22, 7
    %p122 = por %p120, %p121
    %p124 = scmp.ne.s32.totalorder %s109, %s123
    %p125 = scmp.eq.s32.totalorder %s22, 0
    %p126 = por %p124, %p125
    %s128 = sadd.s32 %s127, 1
    %p131 = scmp.eq.s32.totalorder %s16, 7
    %p132 = scmp.ne.s32.totalorder %s127, %s129
    %p133 = scmp.eq.s32.totalorder %s16, 0
    %p134 = por %p132, %p133
    %p135 = scmp.ne.s32.totalorder %s127, %s129
    %p136 = scmp.eq.s32.totalorder %s21, 7
    %p137 = por %p135, %p136
    %p138 = scmp.ne.s32.totalorder %s129, %s130
    %p139 = scmp.eq.s32.totalorder %s21, 0
    %p140 = por %p138, %p139
    %p141 = scmp.ne.s32.totalorder %s129, %s130
    %p142 = scmp.eq.s32.totalorder %s22, 7
    %p143 = por %p141, %p142
    %p145 = scmp.ne.s32.totalorder %s130, %s144
    %p146 = scmp.eq.s32.totalorder %s22, 0
    %p147 = por %p145, %p146
    %s149 = sadd.s32 %s148, 1
    %p152 = scmp.eq.s32.totalorder %s16, 7
    %p153 = scmp.ne.s32.totalorder %s148, %s150
    %p154 = scmp.eq.s32.totalorder %s16, 0
    %p155 = por %p153, %p154
    %p156 = scmp.ne.s32.totalorder %s148, %s150
    %p157 = scmp.eq.s32.totalorder %s21, 7
    %p158 = por %p156, %p157
    %p159 = scmp.ne.s32.totalorder %s150, %s151
    %p160 = scmp.eq.s32.totalorder %s21, 0
    %p161 = por %p159, %p160
    %p162 = scmp.ne.s32.totalorder %s150, %s151
    %p163 = scmp.eq.s32.totalorder %s22, 7
    %p164 = por %p162, %p163
    %p166 = scmp.ne.s32.totalorder %s151, %s165
    %p167 = scmp.eq.s32.totalorder %s22, 0
    %p168 = por %p166, %p167
    %s170 = sadd.s32 %s169, 1
    %p173 = scmp.eq.s32.totalorder %s16, 7
    %p174 = scmp.ne.s32.totalorder %s169, %s171
    %p175 = scmp.eq.s32.totalorder %s16, 0
    %p176 = por %p174, %p175
    %p177 = scmp.ne.s32.totalorder %s169, %s171
    %p178 = scmp.eq.s32.totalorder %s21, 7
    %p179 = por %p177, %p178
    %p180 = scmp.ne.s32.totalorder %s171, %s172
    %p181 = scmp.eq.s32.totalorder %s21, 0
    %p182 = por %p180, %p181
    %p183 = scmp.ne.s32.totalorder %s171, %s172
    %p184 = scmp.eq.s32.totalorder %s22, 7
    %p185 = por %p183, %p184
    %p187 = scmp.ne.s32.totalorder %s172, %s186
    %p188 = scmp.eq.s32.totalorder %s22, 0
    %p189 = por %p187, %p188
    %s190 = ssub.s32 %s23, %s35
    %s191 = ssub.s32 %s24, %s31
    %s192 = sor.u32 %s190, %s191
    %p193 = scmp.eq.s32.totalorder %s192, 0
    %s195 = sadd.s32 %s194, 1
    %s196 = scalar_select %p193, %s194, %s195
    %p199 = pneg %p193
    %p200 = scmp.eq.s32.totalorder %s16, 7
    %p201 = por %p199, %p200
    %p202 = scmp.ne.s32.totalorder %s194, %s197
    %p203 = scmp.eq.s32.totalorder %s16, 0
    %p204 = por %p202, %p203
    %p205 = scmp.ne.s32.totalorder %s194, %s197
    %p206 = scmp.eq.s32.totalorder %s21, 7
    %p207 = por %p205, %p206
    %p208 = scmp.ne.s32.totalorder %s197, %s198
    %p209 = scmp.eq.s32.totalorder %s21, 0
    %p210 = por %p208, %p209
    %p211 = scmp.ne.s32.totalorder %s197, %s198
    %p212 = scmp.eq.s32.totalorder %s22, 7
    %p213 = por %p211, %p212
    %p215 = scmp.ne.s32.totalorder %s198, %s214
    %p216 = scmp.eq.s32.totalorder %s22, 0
    %p217 = por %p215, %p216
    %s218 = ssub.s32 %s23, %s35
    %s219 = ssub.s32 %s24, %s31
    %s220 = sor.u32 %s218, %s219
    %p221 = scmp.eq.s32.totalorder %s220, 0
    %s223 = sadd.s32 %s222, 1
    %s224 = scalar_select %p221, %s222, %s223
    %p227 = pneg %p221
    %p228 = scmp.eq.s32.totalorder %s16, 7
    %p229 = por %p227, %p228
    %p230 = scmp.ne.s32.totalorder %s222, %s225
    %p231 = scmp.eq.s32.totalorder %s16, 0
    %p232 = por %p230, %p231
    %p233 = scmp.ne.s32.totalorder %s222, %s225
    %p234 = scmp.eq.s32.totalorder %s21, 7
    %p235 = por %p233, %p234
    %p236 = scmp.ne.s32.totalorder %s225, %s226
    %p237 = scmp.eq.s32.totalorder %s21, 0
    %p238 = por %p236, %p237
    %p239 = scmp.ne.s32.totalorder %s225, %s226
    %p240 = scmp.eq.s32.totalorder %s22, 7
    %p241 = por %p239, %p240
    %p243 = scmp.ne.s32.totalorder %s226, %s242
    %p244 = scmp.eq.s32.totalorder %s22, 0
    %p245 = por %p243, %p244
    %s246 = ssub.s32 %s23, %s35
    %s247 = ssub.s32 %s24, %s31
    %s248 = sor.u32 %s246, %s247
    %p249 = scmp.eq.s32.totalorder %s248, 0
    %s251 = sadd.s32 %s250, 1
    %s252 = scalar_select %p249, %s250, %s251
    %p255 = pneg %p249
    %p256 = scmp.eq.s32.totalorder %s16, 7
    %p257 = por %p255, %p256
    %p258 = scmp.ne.s32.totalorder %s250, %s253
    %p259 = scmp.eq.s32.totalorder %s16, 0
    %p260 = por %p258, %p259
    %p261 = scmp.ne.s32.totalorder %s250, %s253
    %p262 = scmp.eq.s32.totalorder %s21, 7
    %p263 = por %p261, %p262
    %p264 = scmp.ne.s32.totalorder %s253, %s254
    %p265 = scmp.eq.s32.totalorder %s21, 0
    %p266 = por %p264, %p265
    %p267 = scmp.ne.s32.totalorder %s253, %s254
    %p268 = scmp.eq.s32.totalorder %s22, 7
    %p269 = por %p267, %p268
    %p271 = scmp.ne.s32.totalorder %s254, %s270
    %p272 = scmp.eq.s32.totalorder %s22, 0
    %p273 = por %p271, %p272
    %p274 = scmp.le.s32.totalorder 1, %s16
    %p275 = scmp.lt.s32.totalorder %s16, 9
    %p276 = pnand %p274, %p275
    %p277 = pneg %p276
    // Predicated region
    $region9: #{transformer_block_forward.2} parent=5 // pred_check
      _
    $region10: #{transformer_block_forward.2} parent=5 // pred_check_branch
      %279 = sbr.rel (%p276) target = $region12
    $region11: #{transformer_block_forward.2} parent=5 // pred_region
      %s280 = ssub.s32 %s16, 1
      // Predicated region
      $region13: #{transformer_block_forward.2} parent=11 // pred_check
        %p281 = pneg %p77
      $region14: #{transformer_block_forward.2} parent=11 // pred_check_branch
        %283 = sbr.rel (%p281) target = $region16
      $region15: #{transformer_block_forward.2} parent=11 // pred_region
        _
      $region16: #{transformer_block_forward.2} parent=11 // pred_fallthru
        _
      // Predicated region
      $region17: #{transformer_block_forward.2} parent=11 // pred_check
        %p284 = pneg %p98
      $region18: #{transformer_block_forward.2} parent=11 // pred_check_branch
        %286 = sbr.rel (%p284) target = $region20
      $region19: #{transformer_block_forward.2} parent=11 // pred_region
        _
      $region20: #{transformer_block_forward.2} parent=11 // pred_fallthru
        _
      // Predicated region
      $region21: #{transformer_block_forward.2} parent=11 // pred_check
        %p287 = pneg %p119
      $region22: #{transformer_block_forward.2} parent=11 // pred_check_branch
        %289 = sbr.rel (%p287) target = $region24
      $region23: #{transformer_block_forward.2} parent=11 // pred_region
        _
      $region24: #{transformer_block_forward.2} parent=11 // pred_fallthru
        _
      // Predicated region
      $region25: #{transformer_block_forward.2} parent=11 // pred_check
        %p290 = pneg %p140
      $region26: #{transformer_block_forward.2} parent=11 // pred_check_branch
        %292 = sbr.rel (%p290) target = $region28
      $region27: #{transformer_block_forward.2} parent=11 // pred_region
        _
      $region28: #{transformer_block_forward.2} parent=11 // pred_fallthru
        _
      // Predicated region
      $region29: #{transformer_block_forward.2} parent=11 // pred_check
        %p293 = pneg %p161
      $region30: #{transformer_block_forward.2} parent=11 // pred_check_branch
        %295 = sbr.rel (%p293) target = $region32
      $region31: #{transformer_block_forward.2} parent=11 // pred_region
        _
      $region32: #{transformer_block_forward.2} parent=11 // pred_fallthru
        _
      // Predicated region
      $region33: #{transformer_block_forward.2} parent=11 // pred_check
        %p296 = pneg %p182
      $region34: #{transformer_block_forward.2} parent=11 // pred_check_branch
        %298 = sbr.rel (%p296) target = $region36
      $region35: #{transformer_block_forward.2} parent=11 // pred_region
        _
      $region36: #{transformer_block_forward.2} parent=11 // pred_fallthru
        _
    $region12: #{transformer_block_forward.2} parent=5 // pred_fallthru
      _
    %p299 = scmp.lt.s32.totalorder %s16, 8
    // Predicated region
    $region37: #{transformer_block_forward.2} parent=5 // pred_check
      %p300 = pneg %p299
    $region38: #{transformer_block_forward.2} parent=5 // pred_check_branch
      %302 = sbr.rel (%p300) target = $region40
    $region39: #{transformer_block_forward.2} parent=5 // pred_region
      // Predicated region
      $region41: #{transformer_block_forward.2} parent=39 // pred_check
        %p303 = pneg %p50
      $region42: #{transformer_block_forward.2} parent=39 // pred_check_branch
        %305 = sbr.rel (%p303) target = $region44
      $region43: #{transformer_block_forward.2} parent=39 // pred_region
        %s306 = smul.u32 2, %s24
        %p307 = scmp.lt.s32.totalorder %s23, 1
        %s308 = scalar_select %p307, %s23, 1
        %p309 = scmp.lt.s32.totalorder %s306, 7
        %s310 = scalar_select %p309, %s306, 7
        %s311 = smul.addr %s308, 8
        %s312 = sadd.s32 %s310, %s311
        %s313 = smul.addr %s312, 8
        %s314 = scalar_lea.vmem %s0, %s313
        %s315 = smul.u32 2, %s24
      $region44: #{transformer_block_forward.2} parent=39 // pred_fallthru
        _
    $region40: #{transformer_block_forward.2} parent=5 // pred_fallthru
      _
    %p316 = scmp.le.s32.totalorder 1, %s16
    %p317 = scmp.lt.s32.totalorder %s16, 9
    %p318 = pnand %p316, %p317
    %p319 = pneg %p318
    // Predicated region
    $region45: #{transformer_block_forward.2} parent=5 // pred_check
      _
    $region46: #{transformer_block_forward.2} parent=5 // pred_check_branch
      %321 = sbr.rel (%p318) target = $region48
    $region47: #{transformer_block_forward.2} parent=5 // pred_region
      %s322 = ssub.s32 %s16, 1
      %s323 = smul.u32 2, %s26
      %p324 = scmp.lt.s32.totalorder %s25, 1
      %s325 = scalar_select %p324, %s25, 1
      %p326 = scmp.lt.s32.totalorder %s323, 7
      %s327 = scalar_select %p326, %s323, 7
      %s328 = smul.addr %s325, 8
      %s329 = sadd.s32 %s327, %s328
      %s330 = smul.addr %s329, 8
      %s331 = scalar_lea.vmem %s0, %s330
      %p332 = pneg %p56
      %p333 = pneg %p53
      %p334 = pneg %p77
      %p335 = pneg %p74
      %p336 = pneg %p98
      %p337 = pneg %p95
      %p338 = pneg %p119
      %p339 = pneg %p116
      %p340 = pneg %p140
      %p341 = pneg %p137
      %p342 = pneg %p161
      %p343 = pneg %p158
      %p344 = pneg %p182
      %p345 = pneg %p179
      %p346 = pneg %p210
      %p347 = pneg %p207
      %s348 = smul.u32 2, %s26
      %p349 = scmp.lt.s32.totalorder %s25, 1
      %s350 = scalar_select %p349, %s25, 1
      %p351 = scmp.lt.s32.totalorder %s348, 7
      %s352 = scalar_select %p351, %s348, 7
      %s353 = smul.addr %s350, 8
      %s354 = sadd.s32 %s352, %s353
      %s355 = smul.addr %s354, 8
      %s356 = scalar_lea.vmem %s7, %s355
      %p357 = pneg %p238
      %p358 = pneg %p235
      %s359 = smul.u32 2, %s26
      %p360 = scmp.lt.s32.totalorder %s25, 1
      %s361 = scalar_select %p360, %s25, 1
      %p362 = scmp.lt.s32.totalorder %s359, 7
      %s363 = scalar_select %p362, %s359, 7
      %s364 = smul.addr %s361, 8
      %s365 = sadd.s32 %s363, %s364
      %s366 = smul.addr %s365, 4
      %s367 = scalar_lea.vmem %s8, %s366
      %p368 = pneg %p266
      %p369 = pneg %p263
      %s370 = smul.u32 2, %s26
      %p371 = scmp.lt.s32.totalorder %s25, 1
      %s372 = scalar_select %p371, %s25, 1
      %p373 = scmp.lt.s32.totalorder %s370, 7
      %s374 = scalar_select %p373, %s370, 7
      %s375 = smul.addr %s372, 8
      %s376 = sadd.s32 %s374, %s375
      %s377 = smul.addr %s376, 4
      %s378 = scalar_lea.vmem %s9, %s377
      %s379 = smul.u32 2, %s26
      %p380 = scmp.lt.s32.totalorder %s25, 1
      %s381 = scalar_select %p380, %s25, 1
      %p382 = scmp.lt.s32.totalorder %s379, 7
      %s383 = scalar_select %p382, %s379, 7
      %s384 = smul.addr %s381, 8
      %s385 = sadd.s32 %s383, %s384
      %s386 = smul.addr %s385, 8
      %s387 = scalar_lea.vmem %s0, %s386
      %s388 = smul.u32 2, %s26
      %s389 = smul.u32 2, %s26
      %p390 = scmp.lt.s32.totalorder %s25, 1
      %s391 = scalar_select %p390, %s25, 1
      %p392 = scmp.lt.s32.totalorder %s389, 7
      %s393 = scalar_select %p392, %s389, 7
      %s394 = smul.addr %s391, 8
      %s395 = sadd.s32 %s393, %s394
      %s396 = smul.addr %s395, 8
      %s397 = scalar_lea.vmem %s7, %s396
      %s398 = smul.u32 2, %s26
      %s399 = smul.u32 2, %s26
      %p400 = scmp.lt.s32.totalorder %s25, 1
      %s401 = scalar_select %p400, %s25, 1
      %p402 = scmp.lt.s32.totalorder %s399, 7
      %s403 = scalar_select %p402, %s399, 7
      %s404 = smul.addr %s401, 8
      %s405 = sadd.s32 %s403, %s404
      %s406 = smul.addr %s405, 4
      %s407 = scalar_lea.vmem %s8, %s406
      %s408 = smul.u32 2, %s26
      %s409 = smul.u32 2, %s26
      %p410 = scmp.lt.s32.totalorder %s25, 1
      %s411 = scalar_select %p410, %s25, 1
      %p412 = scmp.lt.s32.totalorder %s409, 7
      %s413 = scalar_select %p412, %s409, 7
      %s414 = smul.addr %s411, 8
      %s415 = sadd.s32 %s413, %s414
      %s416 = smul.addr %s415, 4
      %s417 = scalar_lea.vmem %s9, %s416
      %s418 = smul.u32 2, %s26
      %v420 = vld [vmem:[%s387] sm:$0xff]
      %v421 = vld [vmem:[%s387 + $0x8] sm:$0xff]
      %v422 = vpack.c.bf16 %v421, %v420
      %v423 = vld [vmem:[%s1] sm:$0xf]
      %v424 = vld [vmem:[%s2] sm:$0x1]
      %v426 = vperm.slane %v424, 0
      %vm428 = vcmask 64512
      %v430 = vsel %vm428, %v422, 0
      %vm432 = vcmask 1043456
      %v434 = vsel %vm432, %v423, 0
      %436 = vmatpush.bf16.msra.mxu0 0
      %437 = vmatpush.bf16.msra.mxu0 0
      %438 = vmatpush.bf16.msra.mxu0 0
      %439 = vmatpush.bf16.msra.mxu0 0
      %440 = vmatpush.bf16.msra.mxu0 0
      %441 = vmatpush.bf16.msra.mxu0 0
      %442 = vmatpush.bf16.msra.mxu0 0
      %443 = vmatpush.bf16.msra.mxu0 %v434
      %444 = vmatmul.bf16.gmra.mxu0 %v430
      %v445 = vpop.f32.mrf.mxu0
      %v446 = vadd.f32 %v426, %v445
      %v447 = vpop.f32.mrf.mxu0
      %v448 = vadd.f32 %v426, %v447
      %449 = vdwg.mxu0
      %vm450 = vcmask 261120
      %451 = vst.msk [vmem:[%s397] sm:$0xff] %vm450, %v446
      %452 = vst.msk [vmem:[%s397 + $0x8] sm:$0xff] %vm450, %v448
      %v453 = vld [vmem:[%s3] sm:$0xf]
      %v454 = vld [vmem:[%s4] sm:$0x1]
      %v456 = vperm.slane %v454, 0
      %v459 = vsel %vm432, %v453, 0
      %461 = vmatpush.bf16.msra.mxu0 0
      %462 = vmatpush.bf16.msra.mxu0 0
      %463 = vmatpush.bf16.msra.mxu0 0
      %464 = vmatpush.bf16.msra.mxu0 0
      %465 = vmatpush.bf16.msra.mxu0 0
      %466 = vmatpush.bf16.msra.mxu0 0
      %467 = vmatpush.bf16.msra.mxu0 0
      %468 = vmatpush.bf16.msra.mxu0 %v459
      %469 = vmatmul.bf16.gmra.mxu0 %v430
      %v470 = vpop.f32.mrf.mxu0
      %v471 = vadd.f32 %v456, %v470
      %v472 = vpop.f32.mrf.mxu0
      %v473 = vadd.f32 %v456, %v472
      %474 = vdwg.mxu0
      %v475 = vpack.c.bf16 %v471, %v471
      %v476 = vpack.c.bf16 %v473, %v473
      %vm477 = vcmask 257024
      %478 = vst.msk [vmem:[%s407] sm:$0xf] %vm477, %v475
      %479 = vst.msk [vmem:[%s407 + $0x4] sm:$0xf] %vm477, %v476
      %v480 = vld [vmem:[%s5] sm:$0xf]
      %v481 = vld [vmem:[%s6] sm:$0x1]
      %v483 = vperm.slane %v481, 0
      %v486 = vsel %vm432, %v480, 0
      %488 = vmatpush.bf16.msra.mxu0 0
      %489 = vmatpush.bf16.msra.mxu0 0
      %490 = vmatpush.bf16.msra.mxu0 0
      %491 = vmatpush.bf16.msra.mxu0 0
      %492 = vmatpush.bf16.msra.mxu0 0
      %493 = vmatpush.bf16.msra.mxu0 0
      %494 = vmatpush.bf16.msra.mxu0 0
      %495 = vmatpush.bf16.msra.mxu0 %v486
      %496 = vmatmul.bf16.gmra.mxu0 %v430
      %v497 = vpop.f32.mrf.mxu0
      %v498 = vadd.f32 %v483, %v497
      %v499 = vpop.f32.mrf.mxu0
      %v500 = vadd.f32 %v483, %v499
      %501 = vdwg.mxu0
      %v502 = vpack.c.bf16 %v498, %v498
      %v503 = vpack.c.bf16 %v500, %v500
      %504 = vst.msk [vmem:[%s417] sm:$0xf] %vm477, %v502
      %505 = vst.msk [vmem:[%s417 + $0x4] sm:$0xf] %vm477, %v503
      %s506 = smul.u32 2, %s26
      %p507 = scmp.lt.s32.totalorder %s25, 1
      %s508 = scalar_select %p507, %s25, 1
      %p509 = scmp.lt.s32.totalorder %s506, 7
      %s510 = scalar_select %p509, %s506, 7
      %s511 = smul.addr %s508, 8
      %s512 = sadd.s32 %s510, %s511
      %s513 = smul.addr %s512, 8
      %s514 = scalar_lea.vmem %s7, %s513
      %s515 = smul.u32 2, %s26
      %p516 = scmp.lt.s32.totalorder %s25, 1
      %s517 = scalar_select %p516, %s25, 1
      %p518 = scmp.lt.s32.totalorder %s515, 7
      %s519 = scalar_select %p518, %s515, 7
      %s520 = smul.addr %s517, 8
      %s521 = sadd.s32 %s519, %s520
      %s522 = smul.addr %s521, 4
      %s523 = scalar_lea.vmem %s8, %s522
      %s524 = smul.u32 2, %s26
      %p525 = scmp.lt.s32.totalorder %s25, 1
      %s526 = scalar_select %p525, %s25, 1
      %p527 = scmp.lt.s32.totalorder %s524, 7
      %s528 = scalar_select %p527, %s524, 7
      %s529 = smul.addr %s526, 8
      %s530 = sadd.s32 %s528, %s529
      %s531 = smul.addr %s530, 4
      %s532 = scalar_lea.vmem %s9, %s531
      // Predicated region
      $region49: #{transformer_block_forward.2} parent=47 // pred_check
        %p533 = pneg %p207
      $region50: #{transformer_block_forward.2} parent=47 // pred_check_branch
        %535 = sbr.rel (%p533) target = $region52
      $region51: #{transformer_block_forward.2} parent=47 // pred_region
        %s536 = smul.u32 2, %s26
      $region52: #{transformer_block_forward.2} parent=47 // pred_fallthru
        _
      // Predicated region
      $region53: #{transformer_block_forward.2} parent=47 // pred_check
        %p537 = pneg %p235
      $region54: #{transformer_block_forward.2} parent=47 // pred_check_branch
        %539 = sbr.rel (%p537) target = $region56
      $region55: #{transformer_block_forward.2} parent=47 // pred_region
        %s540 = smul.u32 2, %s26
      $region56: #{transformer_block_forward.2} parent=47 // pred_fallthru
        _
      // Predicated region
      $region57: #{transformer_block_forward.2} parent=47 // pred_check
        %p541 = pneg %p263
      $region58: #{transformer_block_forward.2} parent=47 // pred_check_branch
        %543 = sbr.rel (%p541) target = $region60
      $region59: #{transformer_block_forward.2} parent=47 // pred_region
        %s544 = smul.u32 2, %s26
      $region60: #{transformer_block_forward.2} parent=47 // pred_fallthru
        _
    $region48: #{transformer_block_forward.2} parent=5 // pred_fallthru
      _
    %p545 = scmp.le.s32.totalorder 2, %s16
    // Predicated region
    $region61: #{transformer_block_forward.2} parent=5 // pred_check
      %p546 = pneg %p545
    $region62: #{transformer_block_forward.2} parent=5 // pred_check_branch
      %548 = sbr.rel (%p546) target = $region64
    $region63: #{transformer_block_forward.2} parent=5 // pred_region
      %s549 = ssub.s32 %s16, 2
      // Predicated region
      $region65: #{transformer_block_forward.2} parent=63 // pred_check
        %p550 = pneg %p213
      $region66: #{transformer_block_forward.2} parent=63 // pred_check_branch
        %552 = sbr.rel (%p550) target = $region68
      $region67: #{transformer_block_forward.2} parent=63 // pred_region
        %s553 = smul.u32 2, %s28
        %p554 = scmp.lt.s32.totalorder %s27, 1
        %s555 = scalar_select %p554, %s27, 1
        %p556 = scmp.lt.s32.totalorder %s553, 7
        %s557 = scalar_select %p556, %s553, 7
        %s558 = smul.addr %s555, 8
        %s559 = sadd.s32 %s557, %s558
        %s560 = smul.addr %s559, 8
        %s561 = scalar_lea.vmem %s7, %s560
      $region68: #{transformer_block_forward.2} parent=63 // pred_fallthru
        _
      // Predicated region
      $region69: #{transformer_block_forward.2} parent=63 // pred_check
        %p562 = pneg %p241
      $region70: #{transformer_block_forward.2} parent=63 // pred_check_branch
        %564 = sbr.rel (%p562) target = $region72
      $region71: #{transformer_block_forward.2} parent=63 // pred_region
        %s565 = smul.u32 2, %s28
        %p566 = scmp.lt.s32.totalorder %s27, 1
        %s567 = scalar_select %p566, %s27, 1
        %p568 = scmp.lt.s32.totalorder %s565, 7
        %s569 = scalar_select %p568, %s565, 7
        %s570 = smul.addr %s567, 8
        %s571 = sadd.s32 %s569, %s570
        %s572 = smul.addr %s571, 4
        %s573 = scalar_lea.vmem %s8, %s572
      $region72: #{transformer_block_forward.2} parent=63 // pred_fallthru
        _
      // Predicated region
      $region73: #{transformer_block_forward.2} parent=63 // pred_check
        %p574 = pneg %p269
      $region74: #{transformer_block_forward.2} parent=63 // pred_check_branch
        %576 = sbr.rel (%p574) target = $region76
      $region75: #{transformer_block_forward.2} parent=63 // pred_region
        %s577 = smul.u32 2, %s28
        %p578 = scmp.lt.s32.totalorder %s27, 1
        %s579 = scalar_select %p578, %s27, 1
        %p580 = scmp.lt.s32.totalorder %s577, 7
        %s581 = scalar_select %p580, %s577, 7
        %s582 = smul.addr %s579, 8
        %s583 = sadd.s32 %s581, %s582
        %s584 = smul.addr %s583, 4
        %s585 = scalar_lea.vmem %s9, %s584
      $region76: #{transformer_block_forward.2} parent=63 // pred_fallthru
        _
    $region64: #{transformer_block_forward.2} parent=5 // pred_fallthru
      _
  $region6: #{transformer_block_forward.2} parent=0 // loop_footer
    %s20 = sadd.s32 1, %s16
  $region7: #{transformer_block_forward.2} parent=0 // loop_footer_branch
    %15 = sbr.rel target = $region3
  $region8: #{transformer_block_forward.2} parent=0 // loop_exit
    _

// kernel: transformer_block_forward.3
$region0: #{transformer_block_forward.3}
  #allocation0 [shape = 'u32[]', space=smem, size = 0x4, offset = 0x4, fixed_abs, tag = 'smem constant byte address 0x4 - core index']
  #allocation1 [shape = 'u32[72,128]{1,0:T(1,128)}', space=vmem, size = 0x9000, scoped, tag = 'internal scratch']
  %s0 = inlined_call_operand.vmem [shape: f32[2,64,8], index: 0, kind: input, shape index: {}]
  %s1 = inlined_call_operand.vmem [shape: f32[2,64,32], index: 1, kind: input, shape index: {}]
  %s2 = inlined_call_operand.vmem [shape: bf16[2,512,32], index: 2, kind: input, shape index: {}]
  %s3 = inlined_call_operand.vmem [shape: bf16[2,512,32], index: 3, kind: input, shape index: {}]
  %s4 = inlined_call_operand.vmem [shape: f32[2,512,3], index: 4, kind: input, shape index: {}]
  %s5 = inlined_call_operand.vmem [shape: f32[3,32], index: 5, kind: input, shape index: {}]
  %s6 = inlined_call_operand.vmem [shape: f32[1,32], index: 6, kind: input, shape index: {}]
  %s7 = inlined_call_operand.vmem [shape: bf16[32,32], index: 7, kind: input, shape index: {}]
  %s8 = inlined_call_operand.vmem [shape: f32[1,32], index: 8, kind: input, shape index: {}]
  %s9 = inlined_call_operand.vmem [shape: bf16[32,32], index: 9, kind: input, shape index: {}]
  %s10 = inlined_call_operand.vmem [shape: f32[1,32], index: 10, kind: input, shape index: {}]
  %s11 = inlined_call_operand.vmem [shape: bf16[32,32], index: 11, kind: input, shape index: {}]
  %s12 = inlined_call_operand.vmem [shape: f32[1,32], index: 12, kind: input, shape index: {}]
  %s13 = inlined_call_operand.vmem [shape: bf16[32,128], index: 13, kind: input, shape index: {}]
  %s14 = inlined_call_operand.vmem [shape: bf16[8,128], index: 14, kind: input, shape index: {}]
  %s15 = inlined_call_operand.vmem [shape: f32[1,128], index: 15, kind: input, shape index: {}]
  %s16 = inlined_call_operand.vmem [shape: f32[2,64,128], index: 16, kind: output, shape index: {}]
  %s17 = sld [smem:[#allocation0]]
  $region97: #{transformer_block_forward.3} parent=0
    _
  %s19 = ssub.s32 1, %s17
  %s20 = scalar_select 0, %s19, %s17
  loop: start=0, step=1, limit=10
  $region2: #{transformer_block_forward.3} parent=0 // loop_pre_header
    _
  $region3: #{transformer_block_forward.3} parent=0 // loop_header
    %s22 = sphi 0, %s26
    %p23 = scmp.ge.s32.totalorder %s22, 10
    %s29 = sphi 0, %s41
    %s30 = sphi 0, %s37
    %s31 = sphi 0, %s29
    %s32 = sphi 0, %s30
    %s33 = sphi 0, %s31
    %s34 = sphi 0, %s32
    %s46 = sphi 0, %s48
    %s49 = sphi 0, %s46
    %s50 = sphi 0, %s49
    %s66 = sphi 0, %s50
    %s74 = sphi 0, %s76
    %s77 = sphi 0, %s74
    %s78 = sphi 0, %s77
    %s94 = sphi 0, %s78
    %s102 = sphi 0, %s104
    %s105 = sphi 0, %s102
    %s106 = sphi 0, %s105
    %s122 = sphi 0, %s106
    %s130 = sphi 0, %s132
    %s133 = sphi 0, %s130
    %s134 = sphi 0, %s133
    %s150 = sphi 0, %s134
    %s158 = sphi 0, %s160
    %s161 = sphi 0, %s158
    %s162 = sphi 0, %s161
    %s178 = sphi 0, %s162
    %s182 = sphi 0, %s182
    %s184 = sphi 0, %s182
    %s185 = sphi 0, %s184
    %s199 = sphi 0, %s185
    %s203 = sphi 0, %s203
    %s205 = sphi 0, %s203
    %s206 = sphi 0, %s205
    %s220 = sphi 0, %s206
    %s224 = sphi 0, %s224
    %s226 = sphi 0, %s224
    %s227 = sphi 0, %s226
    %s241 = sphi 0, %s227
    %s245 = sphi 0, %s245
    %s247 = sphi 0, %s245
    %s248 = sphi 0, %s247
    %s262 = sphi 0, %s248
    %s266 = sphi 0, %s266
    %s268 = sphi 0, %s266
    %s269 = sphi 0, %s268
    %s283 = sphi 0, %s269
    %s287 = sphi 0, %s287
    %s289 = sphi 0, %s287
    %s290 = sphi 0, %s289
    %s304 = sphi 0, %s290
    %s308 = sphi 0, %s308
    %s310 = sphi 0, %s308
    %s311 = sphi 0, %s310
    %s325 = sphi 0, %s311
    %s329 = sphi 0, %s329
    %s331 = sphi 0, %s329
    %s332 = sphi 0, %s331
    %s346 = sphi 0, %s332
    %s350 = sphi 0, %s350
    %s352 = sphi 0, %s350
    %s353 = sphi 0, %s352
    %s367 = sphi 0, %s353
    %s371 = sphi 0, %s371
    %s373 = sphi 0, %s371
    %s374 = sphi 0, %s373
    %s388 = sphi 0, %s374
    %s392 = sphi 0, %s392
    %s394 = sphi 0, %s392
    %s395 = sphi 0, %s394
    %s409 = sphi 0, %s395
    %s417 = sphi 0, %s419
    %s420 = sphi 0, %s417
    %s421 = sphi 0, %s420
    %s437 = sphi 0, %s421
  $region4: #{transformer_block_forward.3} parent=0 // loop_header_branch
    %25 = sbr.rel (%p23) target = $region8
  $region5: #{transformer_block_forward.3} parent=0 // loop_body
    %s27 = ssub.s32 %s22, 1
    %s28 = ssub.s32 %s22, 2
    %s35 = sadd.s32 1, %s30
    %p36 = scmp.ge.s32.totalorder %s35, 4
    %s37 = scalar_select %p36, 0, %s35
    %s38 = sadd.s32 1, %s29
    %s39 = scalar_select %p36, %s38, %s29
    %p40 = scmp.ge.s32.totalorder %s39, 2
    %s41 = scalar_select %p40, 0, %s39
    %s42 = ssub.s32 %s29, %s41
    %s43 = ssub.s32 %s30, %s37
    %s44 = sor.u32 %s42, %s43
    %p45 = scmp.eq.s32.totalorder %s44, 0
    %s47 = sadd.s32 %s46, 1
    %s48 = scalar_select %p45, %s46, %s47
    %p51 = pneg %p45
    %p52 = scmp.eq.s32.totalorder %s22, 7
    %p53 = por %p51, %p52
    %p54 = scmp.ne.s32.totalorder %s46, %s49
    %p55 = scmp.eq.s32.totalorder %s22, 0
    %p56 = por %p54, %p55
    %p57 = scmp.ne.s32.totalorder %s46, %s49
    %p58 = scmp.eq.s32.totalorder %s27, 7
    %p59 = por %p57, %p58
    %p60 = scmp.ne.s32.totalorder %s49, %s50
    %p61 = scmp.eq.s32.totalorder %s27, 0
    %p62 = por %p60, %p61
    %p63 = scmp.ne.s32.totalorder %s49, %s50
    %p64 = scmp.eq.s32.totalorder %s28, 7
    %p65 = por %p63, %p64
    %p67 = scmp.ne.s32.totalorder %s50, %s66
    %p68 = scmp.eq.s32.totalorder %s28, 0
    %p69 = por %p67, %p68
    %s70 = ssub.s32 %s29, %s41
    %s71 = ssub.s32 %s30, %s37
    %s72 = sor.u32 %s70, %s71
    %p73 = scmp.eq.s32.totalorder %s72, 0
    %s75 = sadd.s32 %s74, 1
    %s76 = scalar_select %p73, %s74, %s75
    %p79 = pneg %p73
    %p80 = scmp.eq.s32.totalorder %s22, 7
    %p81 = por %p79, %p80
    %p82 = scmp.ne.s32.totalorder %s74, %s77
    %p83 = scmp.eq.s32.totalorder %s22, 0
    %p84 = por %p82, %p83
    %p85 = scmp.ne.s32.totalorder %s74, %s77
    %p86 = scmp.eq.s32.totalorder %s27, 7
    %p87 = por %p85, %p86
    %p88 = scmp.ne.s32.totalorder %s77, %s78
    %p89 = scmp.eq.s32.totalorder %s27, 0
    %p90 = por %p88, %p89
    %p91 = scmp.ne.s32.totalorder %s77, %s78
    %p92 = scmp.eq.s32.totalorder %s28, 7
    %p93 = por %p91, %p92
    %p95 = scmp.ne.s32.totalorder %s78, %s94
    %p96 = scmp.eq.s32.totalorder %s28, 0
    %p97 = por %p95, %p96
    %s98 = ssub.s32 %s29, %s41
    %s99 = ssub.s32 %s30, %s37
    %s100 = sor.u32 %s98, %s99
    %p101 = scmp.eq.s32.totalorder %s100, 0
    %s103 = sadd.s32 %s102, 1
    %s104 = scalar_select %p101, %s102, %s103
    %p107 = pneg %p101
    %p108 = scmp.eq.s32.totalorder %s22, 7
    %p109 = por %p107, %p108
    %p110 = scmp.ne.s32.totalorder %s102, %s105
    %p111 = scmp.eq.s32.totalorder %s22, 0
    %p112 = por %p110, %p111
    %p113 = scmp.ne.s32.totalorder %s102, %s105
    %p114 = scmp.eq.s32.totalorder %s27, 7
    %p115 = por %p113, %p114
    %p116 = scmp.ne.s32.totalorder %s105, %s106
    %p117 = scmp.eq.s32.totalorder %s27, 0
    %p118 = por %p116, %p117
    %p119 = scmp.ne.s32.totalorder %s105, %s106
    %p120 = scmp.eq.s32.totalorder %s28, 7
    %p121 = por %p119, %p120
    %p123 = scmp.ne.s32.totalorder %s106, %s122
    %p124 = scmp.eq.s32.totalorder %s28, 0
    %p125 = por %p123, %p124
    %s126 = ssub.s32 %s29, %s41
    %s127 = ssub.s32 %s30, %s37
    %s128 = sor.u32 %s126, %s127
    %p129 = scmp.eq.s32.totalorder %s128, 0
    %s131 = sadd.s32 %s130, 1
    %s132 = scalar_select %p129, %s130, %s131
    %p135 = pneg %p129
    %p136 = scmp.eq.s32.totalorder %s22, 7
    %p137 = por %p135, %p136
    %p138 = scmp.ne.s32.totalorder %s130, %s133
    %p139 = scmp.eq.s32.totalorder %s22, 0
    %p140 = por %p138, %p139
    %p141 = scmp.ne.s32.totalorder %s130, %s133
    %p142 = scmp.eq.s32.totalorder %s27, 7
    %p143 = por %p141, %p142
    %p144 = scmp.ne.s32.totalorder %s133, %s134
    %p145 = scmp.eq.s32.totalorder %s27, 0
    %p146 = por %p144, %p145
    %p147 = scmp.ne.s32.totalorder %s133, %s134
    %p148 = scmp.eq.s32.totalorder %s28, 7
    %p149 = por %p147, %p148
    %p151 = scmp.ne.s32.totalorder %s134, %s150
    %p152 = scmp.eq.s32.totalorder %s28, 0
    %p153 = por %p151, %p152
    %s154 = ssub.s32 %s29, %s41
    %s155 = ssub.s32 %s30, %s37
    %s156 = sor.u32 %s154, %s155
    %p157 = scmp.eq.s32.totalorder %s156, 0
    %s159 = sadd.s32 %s158, 1
    %s160 = scalar_select %p157, %s158, %s159
    %p163 = pneg %p157
    %p164 = scmp.eq.s32.totalorder %s22, 7
    %p165 = por %p163, %p164
    %p166 = scmp.ne.s32.totalorder %s158, %s161
    %p167 = scmp.eq.s32.totalorder %s22, 0
    %p168 = por %p166, %p167
    %p169 = scmp.ne.s32.totalorder %s158, %s161
    %p170 = scmp.eq.s32.totalorder %s27, 7
    %p171 = por %p169, %p170
    %p172 = scmp.ne.s32.totalorder %s161, %s162
    %p173 = scmp.eq.s32.totalorder %s27, 0
    %p174 = por %p172, %p173
    %p175 = scmp.ne.s32.totalorder %s161, %s162
    %p176 = scmp.eq.s32.totalorder %s28, 7
    %p177 = por %p175, %p176
    %p179 = scmp.ne.s32.totalorder %s162, %s178
    %p180 = scmp.eq.s32.totalorder %s28, 0
    %p181 = por %p179, %p180
    %s183 = sadd.s32 %s182, 1
    %p186 = scmp.eq.s32.totalorder %s22, 7
    %p187 = scmp.ne.s32.totalorder %s182, %s184
    %p188 = scmp.eq.s32.totalorder %s22, 0
    %p189 = por %p187, %p188
    %p190 = scmp.ne.s32.totalorder %s182, %s184
    %p191 = scmp.eq.s32.totalorder %s27, 7
    %p192 = por %p190, %p191
    %p193 = scmp.ne.s32.totalorder %s184, %s185
    %p194 = scmp.eq.s32.totalorder %s27, 0
    %p195 = por %p193, %p194
    %p196 = scmp.ne.s32.totalorder %s184, %s185
    %p197 = scmp.eq.s32.totalorder %s28, 7
    %p198 = por %p196, %p197
    %p200 = scmp.ne.s32.totalorder %s185, %s199
    %p201 = scmp.eq.s32.totalorder %s28, 0
    %p202 = por %p200, %p201
    %s204 = sadd.s32 %s203, 1
    %p207 = scmp.eq.s32.totalorder %s22, 7
    %p208 = scmp.ne.s32.totalorder %s203, %s205
    %p209 = scmp.eq.s32.totalorder %s22, 0
    %p210 = por %p208, %p209
    %p211 = scmp.ne.s32.totalorder %s203, %s205
    %p212 = scmp.eq.s32.totalorder %s27, 7
    %p213 = por %p211, %p212
    %p214 = scmp.ne.s32.totalorder %s205, %s206
    %p215 = scmp.eq.s32.totalorder %s27, 0
    %p216 = por %p214, %p215
    %p217 = scmp.ne.s32.totalorder %s205, %s206
    %p218 = scmp.eq.s32.totalorder %s28, 7
    %p219 = por %p217, %p218
    %p221 = scmp.ne.s32.totalorder %s206, %s220
    %p222 = scmp.eq.s32.totalorder %s28, 0
    %p223 = por %p221, %p222
    %s225 = sadd.s32 %s224, 1
    %p228 = scmp.eq.s32.totalorder %s22, 7
    %p229 = scmp.ne.s32.totalorder %s224, %s226
    %p230 = scmp.eq.s32.totalorder %s22, 0
    %p231 = por %p229, %p230
    %p232 = scmp.ne.s32.totalorder %s224, %s226
    %p233 = scmp.eq.s32.totalorder %s27, 7
    %p234 = por %p232, %p233
    %p235 = scmp.ne.s32.totalorder %s226, %s227
    %p236 = scmp.eq.s32.totalorder %s27, 0
    %p237 = por %p235, %p236
    %p238 = scmp.ne.s32.totalorder %s226, %s227
    %p239 = scmp.eq.s32.totalorder %s28, 7
    %p240 = por %p238, %p239
    %p242 = scmp.ne.s32.totalorder %s227, %s241
    %p243 = scmp.eq.s32.totalorder %s28, 0
    %p244 = por %p242, %p243
    %s246 = sadd.s32 %s245, 1
    %p249 = scmp.eq.s32.totalorder %s22, 7
    %p250 = scmp.ne.s32.totalorder %s245, %s247
    %p251 = scmp.eq.s32.totalorder %s22, 0
    %p252 = por %p250, %p251
    %p253 = scmp.ne.s32.totalorder %s245, %s247
    %p254 = scmp.eq.s32.totalorder %s27, 7
    %p255 = por %p253, %p254
    %p256 = scmp.ne.s32.totalorder %s247, %s248
    %p257 = scmp.eq.s32.totalorder %s27, 0
    %p258 = por %p256, %p257
    %p259 = scmp.ne.s32.totalorder %s247, %s248
    %p260 = scmp.eq.s32.totalorder %s28, 7
    %p261 = por %p259, %p260
    %p263 = scmp.ne.s32.totalorder %s248, %s262
    %p264 = scmp.eq.s32.totalorder %s28, 0
    %p265 = por %p263, %p264
    %s267 = sadd.s32 %s266, 1
    %p270 = scmp.eq.s32.totalorder %s22, 7
    %p271 = scmp.ne.s32.totalorder %s266, %s268
    %p272 = scmp.eq.s32.totalorder %s22, 0
    %p273 = por %p271, %p272
    %p274 = scmp.ne.s32.totalorder %s266, %s268
    %p275 = scmp.eq.s32.totalorder %s27, 7
    %p276 = por %p274, %p275
    %p277 = scmp.ne.s32.totalorder %s268, %s269
    %p278 = scmp.eq.s32.totalorder %s27, 0
    %p279 = por %p277, %p278
    %p280 = scmp.ne.s32.totalorder %s268, %s269
    %p281 = scmp.eq.s32.totalorder %s28, 7
    %p282 = por %p280, %p281
    %p284 = scmp.ne.s32.totalorder %s269, %s283
    %p285 = scmp.eq.s32.totalorder %s28, 0
    %p286 = por %p284, %p285
    %s288 = sadd.s32 %s287, 1
    %p291 = scmp.eq.s32.totalorder %s22, 7
    %p292 = scmp.ne.s32.totalorder %s287, %s289
    %p293 = scmp.eq.s32.totalorder %s22, 0
    %p294 = por %p292, %p293
    %p295 = scmp.ne.s32.totalorder %s287, %s289
    %p296 = scmp.eq.s32.totalorder %s27, 7
    %p297 = por %p295, %p296
    %p298 = scmp.ne.s32.totalorder %s289, %s290
    %p299 = scmp.eq.s32.totalorder %s27, 0
    %p300 = por %p298, %p299
    %p301 = scmp.ne.s32.totalorder %s289, %s290
    %p302 = scmp.eq.s32.totalorder %s28, 7
    %p303 = por %p301, %p302
    %p305 = scmp.ne.s32.totalorder %s290, %s304
    %p306 = scmp.eq.s32.totalorder %s28, 0
    %p307 = por %p305, %p306
    %s309 = sadd.s32 %s308, 1
    %p312 = scmp.eq.s32.totalorder %s22, 7
    %p313 = scmp.ne.s32.totalorder %s308, %s310
    %p314 = scmp.eq.s32.totalorder %s22, 0
    %p315 = por %p313, %p314
    %p316 = scmp.ne.s32.totalorder %s308, %s310
    %p317 = scmp.eq.s32.totalorder %s27, 7
    %p318 = por %p316, %p317
    %p319 = scmp.ne.s32.totalorder %s310, %s311
    %p320 = scmp.eq.s32.totalorder %s27, 0
    %p321 = por %p319, %p320
    %p322 = scmp.ne.s32.totalorder %s310, %s311
    %p323 = scmp.eq.s32.totalorder %s28, 7
    %p324 = por %p322, %p323
    %p326 = scmp.ne.s32.totalorder %s311, %s325
    %p327 = scmp.eq.s32.totalorder %s28, 0
    %p328 = por %p326, %p327
    %s330 = sadd.s32 %s329, 1
    %p333 = scmp.eq.s32.totalorder %s22, 7
    %p334 = scmp.ne.s32.totalorder %s329, %s331
    %p335 = scmp.eq.s32.totalorder %s22, 0
    %p336 = por %p334, %p335
    %p337 = scmp.ne.s32.totalorder %s329, %s331
    %p338 = scmp.eq.s32.totalorder %s27, 7
    %p339 = por %p337, %p338
    %p340 = scmp.ne.s32.totalorder %s331, %s332
    %p341 = scmp.eq.s32.totalorder %s27, 0
    %p342 = por %p340, %p341
    %p343 = scmp.ne.s32.totalorder %s331, %s332
    %p344 = scmp.eq.s32.totalorder %s28, 7
    %p345 = por %p343, %p344
    %p347 = scmp.ne.s32.totalorder %s332, %s346
    %p348 = scmp.eq.s32.totalorder %s28, 0
    %p349 = por %p347, %p348
    %s351 = sadd.s32 %s350, 1
    %p354 = scmp.eq.s32.totalorder %s22, 7
    %p355 = scmp.ne.s32.totalorder %s350, %s352
    %p356 = scmp.eq.s32.totalorder %s22, 0
    %p357 = por %p355, %p356
    %p358 = scmp.ne.s32.totalorder %s350, %s352
    %p359 = scmp.eq.s32.totalorder %s27, 7
    %p360 = por %p358, %p359
    %p361 = scmp.ne.s32.totalorder %s352, %s353
    %p362 = scmp.eq.s32.totalorder %s27, 0
    %p363 = por %p361, %p362
    %p364 = scmp.ne.s32.totalorder %s352, %s353
    %p365 = scmp.eq.s32.totalorder %s28, 7
    %p366 = por %p364, %p365
    %p368 = scmp.ne.s32.totalorder %s353, %s367
    %p369 = scmp.eq.s32.totalorder %s28, 0
    %p370 = por %p368, %p369
    %s372 = sadd.s32 %s371, 1
    %p375 = scmp.eq.s32.totalorder %s22, 7
    %p376 = scmp.ne.s32.totalorder %s371, %s373
    %p377 = scmp.eq.s32.totalorder %s22, 0
    %p378 = por %p376, %p377
    %p379 = scmp.ne.s32.totalorder %s371, %s373
    %p380 = scmp.eq.s32.totalorder %s27, 7
    %p381 = por %p379, %p380
    %p382 = scmp.ne.s32.totalorder %s373, %s374
    %p383 = scmp.eq.s32.totalorder %s27, 0
    %p384 = por %p382, %p383
    %p385 = scmp.ne.s32.totalorder %s373, %s374
    %p386 = scmp.eq.s32.totalorder %s28, 7
    %p387 = por %p385, %p386
    %p389 = scmp.ne.s32.totalorder %s374, %s388
    %p390 = scmp.eq.s32.totalorder %s28, 0
    %p391 = por %p389, %p390
    %s393 = sadd.s32 %s392, 1
    %p396 = scmp.eq.s32.totalorder %s22, 7
    %p397 = scmp.ne.s32.totalorder %s392, %s394
    %p398 = scmp.eq.s32.totalorder %s22, 0
    %p399 = por %p397, %p398
    %p400 = scmp.ne.s32.totalorder %s392, %s394
    %p401 = scmp.eq.s32.totalorder %s27, 7
    %p402 = por %p400, %p401
    %p403 = scmp.ne.s32.totalorder %s394, %s395
    %p404 = scmp.eq.s32.totalorder %s27, 0
    %p405 = por %p403, %p404
    %p406 = scmp.ne.s32.totalorder %s394, %s395
    %p407 = scmp.eq.s32.totalorder %s28, 7
    %p408 = por %p406, %p407
    %p410 = scmp.ne.s32.totalorder %s395, %s409
    %p411 = scmp.eq.s32.totalorder %s28, 0
    %p412 = por %p410, %p411
    %s413 = ssub.s32 %s29, %s41
    %s414 = ssub.s32 %s30, %s37
    %s415 = sor.u32 %s413, %s414
    %p416 = scmp.eq.s32.totalorder %s415, 0
    %s418 = sadd.s32 %s417, 1
    %s419 = scalar_select %p416, %s417, %s418
    %p422 = pneg %p416
    %p423 = scmp.eq.s32.totalorder %s22, 7
    %p424 = por %p422, %p423
    %p425 = scmp.ne.s32.totalorder %s417, %s420
    %p426 = scmp.eq.s32.totalorder %s22, 0
    %p427 = por %p425, %p426
    %p428 = scmp.ne.s32.totalorder %s417, %s420
    %p429 = scmp.eq.s32.totalorder %s27, 7
    %p430 = por %p428, %p429
    %p431 = scmp.ne.s32.totalorder %s420, %s421
    %p432 = scmp.eq.s32.totalorder %s27, 0
    %p433 = por %p431, %p432
    %p434 = scmp.ne.s32.totalorder %s420, %s421
    %p435 = scmp.eq.s32.totalorder %s28, 7
    %p436 = por %p434, %p435
    %p438 = scmp.ne.s32.totalorder %s421, %s437
    %p439 = scmp.eq.s32.totalorder %s28, 0
    %p440 = por %p438, %p439
    %p441 = scmp.le.s32.totalorder 1, %s22
    %p442 = scmp.lt.s32.totalorder %s22, 9
    %p443 = pnand %p441, %p442
    %p444 = pneg %p443
    // Predicated region
    $region9: #{transformer_block_forward.3} parent=5 // pred_check
      _
    $region10: #{transformer_block_forward.3} parent=5 // pred_check_branch
      %446 = sbr.rel (%p443) target = $region12
    $region11: #{transformer_block_forward.3} parent=5 // pred_region
      %s447 = ssub.s32 %s22, 1
      // Predicated region
      $region13: #{transformer_block_forward.3} parent=11 // pred_check
        %p448 = pneg %p195
      $region14: #{transformer_block_forward.3} parent=11 // pred_check_branch
        %450 = sbr.rel (%p448) target = $region16
      $region15: #{transformer_block_forward.3} parent=11 // pred_region
        _
      $region16: #{transformer_block_forward.3} parent=11 // pred_fallthru
        _
      // Predicated region
      $region17: #{transformer_block_forward.3} parent=11 // pred_check
        %p451 = pneg %p216
      $region18: #{transformer_block_forward.3} parent=11 // pred_check_branch
        %453 = sbr.rel (%p451) target = $region20
      $region19: #{transformer_block_forward.3} parent=11 // pred_region
        _
      $region20: #{transformer_block_forward.3} parent=11 // pred_fallthru
        _
      // Predicated region
      $region21: #{transformer_block_forward.3} parent=11 // pred_check
        %p454 = pneg %p237
      $region22: #{transformer_block_forward.3} parent=11 // pred_check_branch
        %456 = sbr.rel (%p454) target = $region24
      $region23: #{transformer_block_forward.3} parent=11 // pred_region
        _
      $region24: #{transformer_block_forward.3} parent=11 // pred_fallthru
        _
      // Predicated region
      $region25: #{transformer_block_forward.3} parent=11 // pred_check
        %p457 = pneg %p258
      $region26: #{transformer_block_forward.3} parent=11 // pred_check_branch
        %459 = sbr.rel (%p457) target = $region28
      $region27: #{transformer_block_forward.3} parent=11 // pred_region
        _
      $region28: #{transformer_block_forward.3} parent=11 // pred_fallthru
        _
      // Predicated region
      $region29: #{transformer_block_forward.3} parent=11 // pred_check
        %p460 = pneg %p279
      $region30: #{transformer_block_forward.3} parent=11 // pred_check_branch
        %462 = sbr.rel (%p460) target = $region32
      $region31: #{transformer_block_forward.3} parent=11 // pred_region
        _
      $region32: #{transformer_block_forward.3} parent=11 // pred_fallthru
        _
      // Predicated region
      $region33: #{transformer_block_forward.3} parent=11 // pred_check
        %p463 = pneg %p300
      $region34: #{transformer_block_forward.3} parent=11 // pred_check_branch
        %465 = sbr.rel (%p463) target = $region36
      $region35: #{transformer_block_forward.3} parent=11 // pred_region
        _
      $region36: #{transformer_block_forward.3} parent=11 // pred_fallthru
        _
      // Predicated region
      $region37: #{transformer_block_forward.3} parent=11 // pred_check
        %p466 = pneg %p321
      $region38: #{transformer_block_forward.3} parent=11 // pred_check_branch
        %468 = sbr.rel (%p466) target = $region40
      $region39: #{transformer_block_forward.3} parent=11 // pred_region
        _
      $region40: #{transformer_block_forward.3} parent=11 // pred_fallthru
        _
      // Predicated region
      $region41: #{transformer_block_forward.3} parent=11 // pred_check
        %p469 = pneg %p342
      $region42: #{transformer_block_forward.3} parent=11 // pred_check_branch
        %471 = sbr.rel (%p469) target = $region44
      $region43: #{transformer_block_forward.3} parent=11 // pred_region
        _
      $region44: #{transformer_block_forward.3} parent=11 // pred_fallthru
        _
      // Predicated region
      $region45: #{transformer_block_forward.3} parent=11 // pred_check
        %p472 = pneg %p363
      $region46: #{transformer_block_forward.3} parent=11 // pred_check_branch
        %474 = sbr.rel (%p472) target = $region48
      $region47: #{transformer_block_forward.3} parent=11 // pred_region
        _
      $region48: #{transformer_block_forward.3} parent=11 // pred_fallthru
        _
      // Predicated region
      $region49: #{transformer_block_forward.3} parent=11 // pred_check
        %p475 = pneg %p384
      $region50: #{transformer_block_forward.3} parent=11 // pred_check_branch
        %477 = sbr.rel (%p475) target = $region52
      $region51: #{transformer_block_forward.3} parent=11 // pred_region
        _
      $region52: #{transformer_block_forward.3} parent=11 // pred_fallthru
        _
      // Predicated region
      $region53: #{transformer_block_forward.3} parent=11 // pred_check
        %p478 = pneg %p405
      $region54: #{transformer_block_forward.3} parent=11 // pred_check_branch
        %480 = sbr.rel (%p478) target = $region56
      $region55: #{transformer_block_forward.3} parent=11 // pred_region
        _
      $region56: #{transformer_block_forward.3} parent=11 // pred_fallthru
        _
    $region12: #{transformer_block_forward.3} parent=5 // pred_fallthru
      _
    %p481 = scmp.lt.s32.totalorder %s22, 8
    // Predicated region
    $region57: #{transformer_block_forward.3} parent=5 // pred_check
      %p482 = pneg %p481
    $region58: #{transformer_block_forward.3} parent=5 // pred_check_branch
      %484 = sbr.rel (%p482) target = $region60
    $region59: #{transformer_block_forward.3} parent=5 // pred_region
      // Predicated region
      $region61: #{transformer_block_forward.3} parent=59 // pred_check
        %p485 = pneg %p56
      $region62: #{transformer_block_forward.3} parent=59 // pred_check_branch
        %487 = sbr.rel (%p485) target = $region64
      $region63: #{transformer_block_forward.3} parent=59 // pred_region
        %s488 = smul.u32 2, %s30
        %p489 = scmp.lt.s32.totalorder %s29, 1
        %s490 = scalar_select %p489, %s29, 1
        %p491 = scmp.lt.s32.totalorder %s488, 7
        %s492 = scalar_select %p491, %s488, 7
        %s493 = smul.addr %s490, 8
        %s494 = sadd.s32 %s492, %s493
        %s495 = smul.addr %s494, 8
        %s496 = scalar_lea.vmem %s0, %s495
        %s497 = smul.u32 2, %s30
      $region64: #{transformer_block_forward.3} parent=59 // pred_fallthru
        _
      // Predicated region
      $region65: #{transformer_block_forward.3} parent=59 // pred_check
        %p498 = pneg %p84
      $region66: #{transformer_block_forward.3} parent=59 // pred_check_branch
        %500 = sbr.rel (%p498) target = $region68
      $region67: #{transformer_block_forward.3} parent=59 // pred_region
        %s501 = smul.u32 2, %s30
        %p502 = scmp.lt.s32.totalorder %s29, 1
        %s503 = scalar_select %p502, %s29, 1
        %p504 = scmp.lt.s32.totalorder %s501, 7
        %s505 = scalar_select %p504, %s501, 7
        %s506 = smul.addr %s503, 8
        %s507 = sadd.s32 %s505, %s506
        %s508 = smul.addr %s507, 8
        %s509 = scalar_lea.vmem %s1, %s508
        %s510 = smul.u32 2, %s30
      $region68: #{transformer_block_forward.3} parent=59 // pred_fallthru
        _
      // Predicated region
      $region69: #{transformer_block_forward.3} parent=59 // pred_check
        %p511 = pneg %p112
      $region70: #{transformer_block_forward.3} parent=59 // pred_check_branch
        %513 = sbr.rel (%p511) target = $region72
      $region71: #{transformer_block_forward.3} parent=59 // pred_region
        %s514 = smul.u32 16, %s30
        %p515 = scmp.lt.s32.totalorder %s29, 1
        %s516 = scalar_select %p515, %s29, 1
        %p517 = scmp.lt.s32.totalorder %s514, 63
        %s518 = scalar_select %p517, %s514, 63
        %s519 = smul.addr %s516, 64
        %s520 = sadd.s32 %s518, %s519
        %s521 = smul.addr %s520, 4
        %s522 = scalar_lea.vmem %s2, %s521
        %s523 = smul.u32 16, %s30
      $region72: #{transformer_block_forward.3} parent=59 // pred_fallthru
        _
      // Predicated region
      $region73: #{transformer_block_forward.3} parent=59 // pred_check
        %p524 = pneg %p140
      $region74: #{transformer_block_forward.3} parent=59 // pred_check_branch
        %526 = sbr.rel (%p524) target = $region76
      $region75: #{transformer_block_forward.3} parent=59 // pred_region
        %s527 = smul.u32 16, %s30
        %p528 = scmp.lt.s32.totalorder %s29, 1
        %s529 = scalar_select %p528, %s29, 1
        %p530 = scmp.lt.s32.totalorder %s527, 63
        %s531 = scalar_select %p530, %s527, 63
        %s532 = smul.addr %s529, 64
        %s533 = sadd.s32 %s531, %s532
        %s534 = smul.addr %s533, 4
        %s535 = scalar_lea.vmem %s3, %s534
        %s536 = smul.u32 16, %s30
      $region76: #{transformer_block_forward.3} parent=59 // pred_fallthru
        _
      // Predicated region
      $region77: #{transformer_block_forward.3} parent=59 // pred_check
        %p537 = pneg %p168
      $region78: #{transformer_block_forward.3} parent=59 // pred_check_branch
        %539 = sbr.rel (%p537) target = $region80
      $region79: #{transformer_block_forward.3} parent=59 // pred_region
        %s540 = smul.u32 16, %s30
        %p541 = scmp.lt.s32.totalorder %s29, 1
        %s542 = scalar_select %p541, %s29, 1
        %p543 = scmp.lt.s32.totalorder %s540, 63
        %s544 = scalar_select %p543, %s540, 63
        %s545 = smul.addr %s542, 64
        %s546 = sadd.s32 %s544, %s545
        %s547 = smul.addr %s546, 8
        %s548 = scalar_lea.vmem %s4, %s547
        %s549 = smul.u32 16, %s30
      $region80: #{transformer_block_forward.3} parent=59 // pred_fallthru
        _
    $region60: #{transformer_block_forward.3} parent=5 // pred_fallthru
      _
    %p550 = scmp.le.s32.totalorder 1, %s22
    %p551 = scmp.lt.s32.totalorder %s22, 9
    %p552 = pnand %p550, %p551
    %p553 = pneg %p552
    // Predicated region
    $region81: #{transformer_block_forward.3} parent=5 // pred_check
      _
    $region82: #{transformer_block_forward.3} parent=5 // pred_check_branch
      %555 = sbr.rel (%p552) target = $region84
    $region83: #{transformer_block_forward.3} parent=5 // pred_region
      %s556 = ssub.s32 %s22, 1
      %s557 = smul.u32 2, %s32
      %p558 = scmp.lt.s32.totalorder %s31, 1
      %s559 = scalar_select %p558, %s31, 1
      %p560 = scmp.lt.s32.totalorder %s557, 7
      %s561 = scalar_select %p560, %s557, 7
      %s562 = smul.addr %s559, 8
      %s563 = sadd.s32 %s561, %s562
      %s564 = smul.addr %s563, 8
      %s565 = scalar_lea.vmem %s0, %s564
      %p566 = pneg %p62
      %p567 = pneg %p59
      %s568 = smul.u32 2, %s32
      %p569 = scmp.lt.s32.totalorder %s31, 1
      %s570 = scalar_select %p569, %s31, 1
      %p571 = scmp.lt.s32.totalorder %s568, 7
      %s572 = scalar_select %p571, %s568, 7
      %s573 = smul.addr %s570, 8
      %s574 = sadd.s32 %s572, %s573
      %s575 = smul.addr %s574, 8
      %s576 = scalar_lea.vmem %s1, %s575
      %p577 = pneg %p90
      %p578 = pneg %p87
      %s579 = smul.u32 16, %s32
      %p580 = scmp.lt.s32.totalorder %s31, 1
      %s581 = scalar_select %p580, %s31, 1
      %p582 = scmp.lt.s32.totalorder %s579, 63
      %s583 = scalar_select %p582, %s579, 63
      %s584 = smul.addr %s581, 64
      %s585 = sadd.s32 %s583, %s584
      %s586 = smul.addr %s585, 4
      %s587 = scalar_lea.vmem %s2, %s586
      %p588 = pneg %p118
      %p589 = pneg %p115
      %s590 = smul.u32 16, %s32
      %p591 = scmp.lt.s32.totalorder %s31, 1
      %s592 = scalar_select %p591, %s31, 1
      %p593 = scmp.lt.s32.totalorder %s590, 63
      %s594 = scalar_select %p593, %s590, 63
      %s595 = smul.addr %s592, 64
      %s596 = sadd.s32 %s594, %s595
      %s597 = smul.addr %s596, 4
      %s598 = scalar_lea.vmem %s3, %s597
      %p599 = pneg %p146
      %p600 = pneg %p143
      %s601 = smul.u32 16, %s32
      %p602 = scmp.lt.s32.totalorder %s31, 1
      %s603 = scalar_select %p602, %s31, 1
      %p604 = scmp.lt.s32.totalorder %s601, 63
      %s605 = scalar_select %p604, %s601, 63
      %s606 = smul.addr %s603, 64
      %s607 = sadd.s32 %s605, %s606
      %s608 = smul.addr %s607, 8
      %s609 = scalar_lea.vmem %s4, %s608
      %p610 = pneg %p174
      %p611 = pneg %p171
      %p612 = pneg %p195
      %p613 = pneg %p192
      %p614 = pneg %p216
      %p615 = pneg %p213
      %p616 = pneg %p237
      %p617 = pneg %p234
      %p618 = pneg %p258
      %p619 = pneg %p255
      %p620 = pneg %p279
      %p621 = pneg %p276
      %p622 = pneg %p300
      %p623 = pneg %p297
      %p624 = pneg %p321
      %p625 = pneg %p318
      %p626 = pneg %p342
      %p627 = pneg %p339
      %p628 = pneg %p363
      %p629 = pneg %p360
      %p630 = pneg %p384
      %p631 = pneg %p381
      %p632 = pneg %p405
      %p633 = pneg %p402
      %p634 = pneg %p433
      %p635 = pneg %p430
      %s636 = smul.u32 2, %s32
      %p637 = scmp.lt.s32.totalorder %s31, 1
      %s638 = scalar_select %p637, %s31, 1
      %p639 = scmp.lt.s32.totalorder %s636, 7
      %s640 = scalar_select %p639, %s636, 7
      %s641 = smul.addr %s638, 8
      %s642 = sadd.s32 %s640, %s641
      %s643 = smul.addr %s642, 8
      %s644 = scalar_lea.vmem %s16, %s643
      %s645 = smul.u32 2, %s32
      %p646 = scmp.lt.s32.totalorder %s31, 1
      %s647 = scalar_select %p646, %s31, 1
      %p648 = scmp.lt.s32.totalorder %s645, 7
      %s649 = scalar_select %p648, %s645, 7
      %s650 = smul.addr %s647, 8
      %s651 = sadd.s32 %s649, %s650
      %s652 = smul.addr %s651, 8
      %s653 = scalar_lea.vmem %s0, %s652
      %s654 = smul.u32 2, %s32
      %s655 = smul.u32 2, %s32
      %p656 = scmp.lt.s32.totalorder %s31, 1
      %s657 = scalar_select %p656, %s31, 1
      %p658 = scmp.lt.s32.totalorder %s655, 7
      %s659 = scalar_select %p658, %s655, 7
      %s660 = smul.addr %s657, 8
      %s661 = sadd.s32 %s659, %s660
      %s662 = smul.addr %s661, 8
      %s663 = scalar_lea.vmem %s1, %s662
      %s664 = smul.u32 2, %s32
      %s665 = smul.u32 16, %s32
      %p666 = scmp.lt.s32.totalorder %s31, 1
      %s667 = scalar_select %p666, %s31, 1
      %p668 = scmp.lt.s32.totalorder %s665, 63
      %s669 = scalar_select %p668, %s665, 63
      %s670 = smul.addr %s667, 64
      %s671 = sadd.s32 %s669, %s670
      %s672 = smul.addr %s671, 4
      %s673 = scalar_lea.vmem %s2, %s672
      %s674 = smul.u32 16, %s32
      %s675 = smul.u32 16, %s32
      %p676 = scmp.lt.s32.totalorder %s31, 1
      %s677 = scalar_select %p676, %s31, 1
      %p678 = scmp.lt.s32.totalorder %s675, 63
      %s679 = scalar_select %p678, %s675, 63
      %s680 = smul.addr %s677, 64
      %s681 = sadd.s32 %s679, %s680
      %s682 = smul.addr %s681, 4
      %s683 = scalar_lea.vmem %s3, %s682
      %s684 = smul.u32 16, %s32
      %s685 = smul.u32 16, %s32
      %p686 = scmp.lt.s32.totalorder %s31, 1
      %s687 = scalar_select %p686, %s31, 1
      %p688 = scmp.lt.s32.totalorder %s685, 63
      %s689 = scalar_select %p688, %s685, 63
      %s690 = smul.addr %s687, 64
      %s691 = sadd.s32 %s689, %s690
      %s692 = smul.addr %s691, 8
      %s693 = scalar_lea.vmem %s4, %s692
      %s694 = smul.u32 16, %s32
      %s695 = smul.u32 2, %s32
      %p696 = scmp.lt.s32.totalorder %s31, 1
      %s697 = scalar_select %p696, %s31, 1
      %p698 = scmp.lt.s32.totalorder %s695, 7
      %s699 = scalar_select %p698, %s695, 7
      %s700 = smul.addr %s697, 8
      %s701 = sadd.s32 %s699, %s700
      %s702 = smul.addr %s701, 8
      %s703 = scalar_lea.vmem %s16, %s702
      %s704 = smul.u32 2, %s32
      %v706 = vld [vmem:[%s663] sm:$0xff]
      %v707 = vld [vmem:[%s663 + $0x8] sm:$0xff]
      %v708 = vld [vmem:[%s673] sm:$0xf]
      %v709 = vld [vmem:[%s673 + $0x4] sm:$0xf]
      %v710 = vld [vmem:[%s673 + $0x8] sm:$0xf]
      %v711 = vld [vmem:[%s673 + $0xc] sm:$0xf]
      %v712 = vld [vmem:[%s673 + $0x10] sm:$0xf]
      %v713 = vld [vmem:[%s673 + $0x14] sm:$0xf]
      %v714 = vld [vmem:[%s673 + $0x18] sm:$0xf]
      %v715 = vld [vmem:[%s673 + $0x1c] sm:$0xf]
      %v716 = vld [vmem:[%s673 + $0x20] sm:$0xf]
      %v717 = vld [vmem:[%s673 + $0x24] sm:$0xf]
      %v718 = vld [vmem:[%s673 + $0x28] sm:$0xf]
      %v719 = vld [vmem:[%s673 + $0x2c] sm:$0xf]
      %v720 = vld [vmem:[%s673 + $0x30] sm:$0xf]
      %v721 = vld [vmem:[%s673 + $0x34] sm:$0xf]
      %v722 = vld [vmem:[%s673 + $0x38] sm:$0xf]
      %v723 = vld [vmem:[%s673 + $0x3c] sm:$0xf]
      %v724 = vunpack.c.l.bf16 %v708
      %v725 = vunpack.c.l.bf16 %v709
      %v726 = vunpack.c.l.bf16 %v710
      %v727 = vunpack.c.l.bf16 %v711
      %v728 = vunpack.c.l.bf16 %v712
      %v729 = vunpack.c.l.bf16 %v713
      %v730 = vunpack.c.l.bf16 %v714
      %v731 = vunpack.c.l.bf16 %v715
      %v732 = vunpack.c.l.bf16 %v716
      %v733 = vunpack.c.l.bf16 %v717
      %v734 = vunpack.c.l.bf16 %v718
      %v735 = vunpack.c.l.bf16 %v719
      %v736 = vunpack.c.l.bf16 %v720
      %v737 = vunpack.c.l.bf16 %v721
      %v738 = vunpack.c.l.bf16 %v722
      %v739 = vunpack.c.l.bf16 %v723
      %v740 = vld [vmem:[%s683] sm:$0xf]
      %v741 = vld [vmem:[%s683 + $0x4] sm:$0xf]
      %v742 = vld [vmem:[%s683 + $0x8] sm:$0xf]
      %v743 = vld [vmem:[%s683 + $0xc] sm:$0xf]
      %v744 = vld [vmem:[%s683 + $0x10] sm:$0xf]
      %v745 = vld [vmem:[%s683 + $0x14] sm:$0xf]
      %v746 = vld [vmem:[%s683 + $0x18] sm:$0xf]
      %v747 = vld [vmem:[%s683 + $0x1c] sm:$0xf]
      %v748 = vld [vmem:[%s683 + $0x20] sm:$0xf]
      %v749 = vld [vmem:[%s683 + $0x24] sm:$0xf]
      %v750 = vld [vmem:[%s683 + $0x28] sm:$0xf]
      %v751 = vld [vmem:[%s683 + $0x2c] sm:$0xf]
      %v752 = vld [vmem:[%s683 + $0x30] sm:$0xf]
      %v753 = vld [vmem:[%s683 + $0x34] sm:$0xf]
      %v754 = vld [vmem:[%s683 + $0x38] sm:$0xf]
      %v755 = vld [vmem:[%s683 + $0x3c] sm:$0xf]
      %v756 = vunpack.c.l.bf16 %v740
      %v757 = vunpack.c.l.bf16 %v741
      %v758 = vunpack.c.l.bf16 %v742
      %v759 = vunpack.c.l.bf16 %v743
      %v760 = vunpack.c.l.bf16 %v744
      %v761 = vunpack.c.l.bf16 %v745
      %v762 = vunpack.c.l.bf16 %v746
      %v763 = vunpack.c.l.bf16 %v747
      %v764 = vunpack.c.l.bf16 %v748
      %v765 = vunpack.c.l.bf16 %v749
      %v766 = vunpack.c.l.bf16 %v750
      %v767 = vunpack.c.l.bf16 %v751
      %v768 = vunpack.c.l.bf16 %v752
      %v769 = vunpack.c.l.bf16 %v753
      %v770 = vunpack.c.l.bf16 %v754
      %v771 = vunpack.c.l.bf16 %v755
      %v772 = vld [vmem:[%s693] sm:$0xff]
      %v773 = vld [vmem:[%s693 + $0x8] sm:$0xff]
      %v774 = vld [vmem:[%s693 + $0x10] sm:$0xff]
      %v775 = vld [vmem:[%s693 + $0x18] sm:$0xff]
      %v776 = vld [vmem:[%s693 + $0x20] sm:$0xff]
      %v777 = vld [vmem:[%s693 + $0x28] sm:$0xff]
      %v778 = vld [vmem:[%s693 + $0x30] sm:$0xff]
      %v779 = vld [vmem:[%s693 + $0x38] sm:$0xff]
      %v780 = vld [vmem:[%s693 + $0x40] sm:$0xff]
      %v781 = vld [vmem:[%s693 + $0x48] sm:$0xff]
      %v782 = vld [vmem:[%s693 + $0x50] sm:$0xff]
      %v783 = vld [vmem:[%s693 + $0x58] sm:$0xff]
      %v784 = vld [vmem:[%s693 + $0x60] sm:$0xff]
      %v785 = vld [vmem:[%s693 + $0x68] sm:$0xff]
      %v786 = vld [vmem:[%s693 + $0x70] sm:$0xff]
      %v787 = vld [vmem:[%s693 + $0x78] sm:$0xff]
      %v788 = vld [vmem:[%s5] sm:$0x7]
      %790 = vset.pattern.permute.xlu0 0
      %791 = vperm.xlu0 %790, %v772
      %v792 = vpop.permute.xlu0 %791
      %795 = vset.pattern.permute.xlu0 0
      %796 = vperm.xlu0 %795, %v773
      %v797 = vpop.permute.xlu0 %796
      %800 = vset.pattern.permute.xlu0 0
      %801 = vperm.xlu0 %800, %v774
      %v802 = vpop.permute.xlu0 %801
      %805 = vset.pattern.permute.xlu0 0
      %806 = vperm.xlu0 %805, %v775
      %v807 = vpop.permute.xlu0 %806
      %810 = vset.pattern.permute.xlu0 0
      %811 = vperm.xlu0 %810, %v776
      %v812 = vpop.permute.xlu0 %811
      %815 = vset.pattern.permute.xlu0 0
      %816 = vperm.xlu0 %815, %v777
      %v817 = vpop.permute.xlu0 %816
      %820 = vset.pattern.permute.xlu0 0
      %821 = vperm.xlu0 %820, %v778
      %v822 = vpop.permute.xlu0 %821
      %825 = vset.pattern.permute.xlu0 0
      %826 = vperm.xlu0 %825, %v779
      %v827 = vpop.permute.xlu0 %826
      %830 = vset.pattern.permute.xlu0 0
      %831 = vperm.xlu0 %830, %v780
      %v832 = vpop.permute.xlu0 %831
      %835 = vset.pattern.permute.xlu0 0
      %836 = vperm.xlu0 %835, %v781
      %v837 = vpop.permute.xlu0 %836
      %840 = vset.pattern.permute.xlu0 0
      %841 = vperm.xlu0 %840, %v782
      %v842 = vpop.permute.xlu0 %841
      %845 = vset.pattern.permute.xlu0 0
      %846 = vperm.xlu0 %845, %v783
      %v847 = vpop.permute.xlu0 %846
      %850 = vset.pattern.permute.xlu0 0
      %851 = vperm.xlu0 %850, %v784
      %v852 = vpop.permute.xlu0 %851
      %855 = vset.pattern.permute.xlu0 0
      %856 = vperm.xlu0 %855, %v785
      %v857 = vpop.permute.xlu0 %856
      %860 = vset.pattern.permute.xlu0 0
      %861 = vperm.xlu0 %860, %v786
      %v862 = vpop.permute.xlu0 %861
      %865 = vset.pattern.permute.xlu0 0
      %866 = vperm.xlu0 %865, %v787
      %v867 = vpop.permute.xlu0 %866
      %v869 = vperm.slane %v788, 0
      %v870 = vmul.f32 %v792, %v869
      %v871 = vmul.f32 %v797, %v869
      %v872 = vmul.f32 %v802, %v869
      %v873 = vmul.f32 %v807, %v869
      %v874 = vmul.f32 %v812, %v869
      %v875 = vmul.f32 %v817, %v869
      %v876 = vmul.f32 %v822, %v869
      %v877 = vmul.f32 %v827, %v869
      %v878 = vmul.f32 %v832, %v869
      %v879 = vmul.f32 %v837, %v869
      %v880 = vmul.f32 %v842, %v869
      %v881 = vmul.f32 %v847, %v869
      %v882 = vmul.f32 %v852, %v869
      %v883 = vmul.f32 %v857, %v869
      %v884 = vmul.f32 %v862, %v869
      %v885 = vmul.f32 %v867, %v869
      %886 = vset.pattern.permute.xlu0 1
      %887 = vperm.xlu0 %886, %v772
      %v888 = vpop.permute.xlu0 %887
      %890 = vset.pattern.permute.xlu0 1
      %891 = vperm.xlu0 %890, %v773
      %v892 = vpop.permute.xlu0 %891
      %894 = vset.pattern.permute.xlu0 1
      %895 = vperm.xlu0 %894, %v774
      %v896 = vpop.permute.xlu0 %895
      %898 = vset.pattern.permute.xlu0 1
      %899 = vperm.xlu0 %898, %v775
      %v900 = vpop.permute.xlu0 %899
      %902 = vset.pattern.permute.xlu0 1
      %903 = vperm.xlu0 %902, %v776
      %v904 = vpop.permute.xlu0 %903
      %906 = vset.pattern.permute.xlu0 1
      %907 = vperm.xlu0 %906, %v777
      %v908 = vpop.permute.xlu0 %907
      %910 = vset.pattern.permute.xlu0 1
      %911 = vperm.xlu0 %910, %v778
      %v912 = vpop.permute.xlu0 %911
      %914 = vset.pattern.permute.xlu0 1
      %915 = vperm.xlu0 %914, %v779
      %v916 = vpop.permute.xlu0 %915
      %918 = vset.pattern.permute.xlu0 1
      %919 = vperm.xlu0 %918, %v780
      %v920 = vpop.permute.xlu0 %919
      %922 = vset.pattern.permute.xlu0 1
      %923 = vperm.xlu0 %922, %v781
      %v924 = vpop.permute.xlu0 %923
      %926 = vset.pattern.permute.xlu0 1
      %927 = vperm.xlu0 %926, %v782
      %v928 = vpop.permute.xlu0 %927
      %930 = vset.pattern.permute.xlu0 1
      %931 = vperm.xlu0 %930, %v783
      %v932 = vpop.permute.xlu0 %931
      %934 = vset.pattern.permute.xlu0 1
      %935 = vperm.xlu0 %934, %v784
      %v936 = vpop.permute.xlu0 %935
      %938 = vset.pattern.permute.xlu0 1
      %939 = vperm.xlu0 %938, %v785
      %v940 = vpop.permute.xlu0 %939
      %942 = vset.pattern.permute.xlu0 1
      %943 = vperm.xlu0 %942, %v786
      %v944 = vpop.permute.xlu0 %943
      %946 = vset.pattern.permute.xlu0 1
      %947 = vperm.xlu0 %946, %v787
      %v948 = vpop.permute.xlu0 %947
      %v950 = vperm.slane %v788, 1
      %v951 = vmul.f32 %v888, %v950
      %v952 = vmul.f32 %v892, %v950
      %v953 = vmul.f32 %v896, %v950
      %v954 = vmul.f32 %v900, %v950
      %v955 = vmul.f32 %v904, %v950
      %v956 = vmul.f32 %v908, %v950
      %v957 = vmul.f32 %v912, %v950
      %v958 = vmul.f32 %v916, %v950
      %v959 = vmul.f32 %v920, %v950
      %v960 = vmul.f32 %v924, %v950
      %v961 = vmul.f32 %v928, %v950
      %v962 = vmul.f32 %v932, %v950
      %v963 = vmul.f32 %v936, %v950
      %v964 = vmul.f32 %v940, %v950
      %v965 = vmul.f32 %v944, %v950
      %v966 = vmul.f32 %v948, %v950
      %v967 = vadd.f32 %v870, %v951
      %v968 = vadd.f32 %v871, %v952
      %v969 = vadd.f32 %v872, %v953
      %v970 = vadd.f32 %v873, %v954
      %v971 = vadd.f32 %v874, %v955
      %v972 = vadd.f32 %v875, %v956
      %v973 = vadd.f32 %v876, %v957
      %v974 = vadd.f32 %v877, %v958
      %v975 = vadd.f32 %v878, %v959
      %v976 = vadd.f32 %v879, %v960
      %v977 = vadd.f32 %v880, %v961
      %v978 = vadd.f32 %v881, %v962
      %v979 = vadd.f32 %v882, %v963
      %v980 = vadd.f32 %v883, %v964
      %v981 = vadd.f32 %v884, %v965
      %v982 = vadd.f32 %v885, %v966
      %983 = vset.pattern.permute.xlu0 2
      %984 = vperm.xlu0 %983, %v772
      %v985 = vpop.permute.xlu0 %984
      %987 = vset.pattern.permute.xlu0 2
      %988 = vperm.xlu0 %987, %v773
      %v989 = vpop.permute.xlu0 %988
      %991 = vset.pattern.permute.xlu0 2
      %992 = vperm.xlu0 %991, %v774
      %v993 = vpop.permute.xlu0 %992
      %995 = vset.pattern.permute.xlu0 2
      %996 = vperm.xlu0 %995, %v775
      %v997 = vpop.permute.xlu0 %996
      %999 = vset.pattern.permute.xlu0 2
      %1000 = vperm.xlu0 %999, %v776
      %v1001 = vpop.permute.xlu0 %1000
      %1003 = vset.pattern.permute.xlu0 2
      %1004 = vperm.xlu0 %1003, %v777
      %v1005 = vpop.permute.xlu0 %1004
      %1007 = vset.pattern.permute.xlu0 2
      %1008 = vperm.xlu0 %1007, %v778
      %v1009 = vpop.permute.xlu0 %1008
      %1011 = vset.pattern.permute.xlu0 2
      %1012 = vperm.xlu0 %1011, %v779
      %v1013 = vpop.permute.xlu0 %1012
      %1015 = vset.pattern.permute.xlu0 2
      %1016 = vperm.xlu0 %1015, %v780
      %v1017 = vpop.permute.xlu0 %1016
      %1019 = vset.pattern.permute.xlu0 2
      %1020 = vperm.xlu0 %1019, %v781
      %v1021 = vpop.permute.xlu0 %1020
      %1023 = vset.pattern.permute.xlu0 2
      %1024 = vperm.xlu0 %1023, %v782
      %v1025 = vpop.permute.xlu0 %1024
      %1027 = vset.pattern.permute.xlu0 2
      %1028 = vperm.xlu0 %1027, %v783
      %v1029 = vpop.permute.xlu0 %1028
      %1031 = vset.pattern.permute.xlu0 2
      %1032 = vperm.xlu0 %1031, %v784
      %v1033 = vpop.permute.xlu0 %1032
      %1035 = vset.pattern.permute.xlu0 2
      %1036 = vperm.xlu0 %1035, %v785
      %v1037 = vpop.permute.xlu0 %1036
      %1039 = vset.pattern.permute.xlu0 2
      %1040 = vperm.xlu0 %1039, %v786
      %v1041 = vpop.permute.xlu0 %1040
      %1043 = vset.pattern.permute.xlu0 2
      %1044 = vperm.xlu0 %1043, %v787
      %v1045 = vpop.permute.xlu0 %1044
      %v1047 = vperm.slane %v788, 2
      %v1048 = vmul.f32 %v985, %v1047
      %v1049 = vmul.f32 %v989, %v1047
      %v1050 = vmul.f32 %v993, %v1047
      %v1051 = vmul.f32 %v997, %v1047
      %v1052 = vmul.f32 %v1001, %v1047
      %v1053 = vmul.f32 %v1005, %v1047
      %v1054 = vmul.f32 %v1009, %v1047
      %v1055 = vmul.f32 %v1013, %v1047
      %v1056 = vmul.f32 %v1017, %v1047
      %v1057 = vmul.f32 %v1021, %v1047
      %v1058 = vmul.f32 %v1025, %v1047
      %v1059 = vmul.f32 %v1029, %v1047
      %v1060 = vmul.f32 %v1033, %v1047
      %v1061 = vmul.f32 %v1037, %v1047
      %v1062 = vmul.f32 %v1041, %v1047
      %v1063 = vmul.f32 %v1045, %v1047
      %v1064 = vadd.f32 %v967, %v1048
      %v1065 = vadd.f32 %v968, %v1049
      %v1066 = vadd.f32 %v969, %v1050
      %v1067 = vadd.f32 %v970, %v1051
      %v1068 = vadd.f32 %v971, %v1052
      %v1069 = vadd.f32 %v972, %v1053
      %v1070 = vadd.f32 %v973, %v1054
      %v1071 = vadd.f32 %v974, %v1055
      %v1072 = vadd.f32 %v975, %v1056
      %v1073 = vadd.f32 %v976, %v1057
      %v1074 = vadd.f32 %v977, %v1058
      %v1075 = vadd.f32 %v978, %v1059
      %v1076 = vadd.f32 %v979, %v1060
      %v1077 = vadd.f32 %v980, %v1061
      %v1078 = vadd.f32 %v981, %v1062
      %v1079 = vadd.f32 %v982, %v1063
      %v1080 = vld [vmem:[%s6] sm:$0x1]
      %v1082 = vperm.slane %v1080, 0
      %v1084 = vadd.f32 %v1064, %v1082
      %v1085 = vadd.f32 %v1065, %v1082
      %v1086 = vadd.f32 %v1066, %v1082
      %v1087 = vadd.f32 %v1067, %v1082
      %v1088 = vadd.f32 %v1068, %v1082
      %v1089 = vadd.f32 %v1069, %v1082
      %v1090 = vadd.f32 %v1070, %v1082
      %v1091 = vadd.f32 %v1071, %v1082
      %v1092 = vadd.f32 %v1072, %v1082
      %v1093 = vadd.f32 %v1073, %v1082
      %v1094 = vadd.f32 %v1074, %v1082
      %v1095 = vadd.f32 %v1075, %v1082
      %v1096 = vadd.f32 %v1076, %v1082
      %v1097 = vadd.f32 %v1077, %v1082
      %v1098 = vadd.f32 %v1078, %v1082
      %v1099 = vadd.f32 %v1079, %v1082
      %v1100 = vmax.f32 %v1084, 0.0
      %v1101 = vmax.f32 %v1085, 0.0
      %v1102 = vmax.f32 %v1086, 0.0
      %v1103 = vmax.f32 %v1087, 0.0
      %v1104 = vmax.f32 %v1088, 0.0
      %v1105 = vmax.f32 %v1089, 0.0
      %v1106 = vmax.f32 %v1090, 0.0
      %v1107 = vmax.f32 %v1091, 0.0
      %v1108 = vmax.f32 %v1092, 0.0
      %v1109 = vmax.f32 %v1093, 0.0
      %v1110 = vmax.f32 %v1094, 0.0
      %v1111 = vmax.f32 %v1095, 0.0
      %v1112 = vmax.f32 %v1096, 0.0
      %v1113 = vmax.f32 %v1097, 0.0
      %v1114 = vmax.f32 %v1098, 0.0
      %v1115 = vmax.f32 %v1099, 0.0
      %v1116 = vpack.c.bf16 %v1101, %v1100
      %v1117 = vpack.c.bf16 %v1103, %v1102
      %v1118 = vpack.c.bf16 %v1105, %v1104
      %v1119 = vpack.c.bf16 %v1107, %v1106
      %v1120 = vpack.c.bf16 %v1109, %v1108
      %v1121 = vpack.c.bf16 %v1111, %v1110
      %v1122 = vpack.c.bf16 %v1113, %v1112
      %v1123 = vpack.c.bf16 %v1115, %v1114
      %v1124 = vld [vmem:[%s7] sm:$0xf]
      %v1125 = vld [vmem:[%s7 + $0x4] sm:$0xf]
      %v1126 = vld [vmem:[%s7 + $0x8] sm:$0xf]
      %v1127 = vld [vmem:[%s7 + $0xc] sm:$0xf]
      %v1128 = vld [vmem:[%s8] sm:$0x1]
      %v1130 = vperm.slane %v1128, 0
      %v1136 = vunpack.c.l.b16 %v1124
      %v1137 = vunpack.c.l.b16 %v1125
      %v1138 = vunpack.c.l.b16 %v1126
      %v1139 = vunpack.c.l.b16 %v1127
      %v1140 = vpack.c.b16 %v1137, %v1136
      %v1141 = vpack.c.b16 %v1139, %v1138
      %vm1144 = vcmask 261120
      %v1146 = vsel %vm1144, %v1116, 0
      %v1149 = vsel %vm1144, %v1117, 0
      %v1152 = vsel %vm1144, %v1118, 0
      %v1155 = vsel %vm1144, %v1119, 0
      %v1158 = vsel %vm1144, %v1120, 0
      %v1161 = vsel %vm1144, %v1121, 0
      %v1164 = vsel %vm1144, %v1122, 0
      %v1167 = vsel %vm1144, %v1123, 0
      %1169 = vmatpush.bf16.msra.mxu0 0
      %1170 = vmatpush.bf16.msra.mxu0 0
      %1171 = vmatpush.bf16.msra.mxu0 0
      %1172 = vmatpush.bf16.msra.mxu0 0
      %1173 = vmatpush.bf16.msra.mxu0 0
      %1174 = vmatpush.bf16.msra.mxu0 0
      %1175 = vmatpush.bf16.msra.mxu0 %v1141
      %1176 = vmatpush.bf16.msra.mxu0 %v1140
      %1177 = vmatmul.bf16.gmra.mxu0 %v1146
      %v1178 = vpop.f32.mrf.mxu0
      %v1179 = vadd.f32 %v1130, %v1178
      %v1180 = vpop.f32.mrf.mxu0
      %v1181 = vadd.f32 %v1130, %v1180
      %1182 = vmatmul.bf16.gmra.mxu0 %v1149
      %v1183 = vpop.f32.mrf.mxu0
      %v1184 = vadd.f32 %v1130, %v1183
      %v1185 = vpop.f32.mrf.mxu0
      %v1186 = vadd.f32 %v1130, %v1185
      %1187 = vmatmul.bf16.gmra.mxu0 %v1152
      %v1188 = vpop.f32.mrf.mxu0
      %v1189 = vadd.f32 %v1130, %v1188
      %v1190 = vpop.f32.mrf.mxu0
      %v1191 = vadd.f32 %v1130, %v1190
      %1192 = vmatmul.bf16.gmra.mxu0 %v1155
      %v1193 = vpop.f32.mrf.mxu0
      %v1194 = vadd.f32 %v1130, %v1193
      %v1195 = vpop.f32.mrf.mxu0
      %v1196 = vadd.f32 %v1130, %v1195
      %1197 = vmatmul.bf16.gmra.mxu0 %v1158
      %v1198 = vpop.f32.mrf.mxu0
      %v1199 = vadd.f32 %v1130, %v1198
      %v1200 = vpop.f32.mrf.mxu0
      %v1201 = vadd.f32 %v1130, %v1200
      %1202 = vmatmul.bf16.gmra.mxu0 %v1161
      %v1203 = vpop.f32.mrf.mxu0
      %v1204 = vadd.f32 %v1130, %v1203
      %v1205 = vpop.f32.mrf.mxu0
      %v1206 = vadd.f32 %v1130, %v1205
      %1207 = vmatmul.bf16.gmra.mxu0 %v1164
      %v1208 = vpop.f32.mrf.mxu0
      %v1209 = vadd.f32 %v1130, %v1208
      %v1210 = vpop.f32.mrf.mxu0
      %v1211 = vadd.f32 %v1130, %v1210
      %1212 = vmatmul.bf16.gmra.mxu0 %v1167
      %v1213 = vpop.f32.mrf.mxu0
      %v1214 = vadd.f32 %v1130, %v1213
      %v1215 = vpop.f32.mrf.mxu0
      %v1216 = vadd.f32 %v1130, %v1215
      %1217 = vdwg.mxu0
      %v1220 = vrot.slane %v706, 1
      %v1221 = vrot.slane %v706, 2
      %v1222 = vrot.slane %v706, 3
      %v1223 = vrot.slane %v706, 4
      %v1224 = vrot.slane %v706, 5
      %v1225 = vrot.slane %v706, 6
      %v1226 = vrot.slane %v706, 7
      %v1227 = vrot.slane %v707, 1
      %v1228 = vrot.slane %v707, 2
      %v1229 = vrot.slane %v707, 3
      %v1230 = vrot.slane %v707, 4
      %v1231 = vrot.slane %v707, 5
      %v1232 = vrot.slane %v707, 6
      %v1233 = vrot.slane %v707, 7
      %v1234 = vperm.slane %v706, 0
      %v1235 = vperm.slane %v1220, 0
      %v1236 = vperm.slane %v1221, 0
      %v1237 = vperm.slane %v1222, 0
      %v1238 = vperm.slane %v1223, 0
      %v1239 = vperm.slane %v1224, 0
      %v1240 = vperm.slane %v1225, 0
      %v1241 = vperm.slane %v1226, 0
      %v1242 = vperm.slane %v707, 0
      %v1243 = vperm.slane %v1227, 0
      %v1244 = vperm.slane %v1228, 0
      %v1245 = vperm.slane %v1229, 0
      %v1246 = vperm.slane %v1230, 0
      %v1247 = vperm.slane %v1231, 0
      %v1248 = vperm.slane %v1232, 0
      %v1249 = vperm.slane %v1233, 0
      %v1266 = vsub.f32 %v1234, %v724
      %v1267 = vsub.f32 %v1235, %v725
      %v1268 = vsub.f32 %v1236, %v726
      %v1269 = vsub.f32 %v1237, %v727
      %v1270 = vsub.f32 %v1238, %v728
      %v1271 = vsub.f32 %v1239, %v729
      %v1272 = vsub.f32 %v1240, %v730
      %v1273 = vsub.f32 %v1241, %v731
      %v1274 = vsub.f32 %v1242, %v732
      %v1275 = vsub.f32 %v1243, %v733
      %v1276 = vsub.f32 %v1244, %v734
      %v1277 = vsub.f32 %v1245, %v735
      %v1278 = vsub.f32 %v1246, %v736
      %v1279 = vsub.f32 %v1247, %v737
      %v1280 = vsub.f32 %v1248, %v738
      %v1281 = vsub.f32 %v1249, %v739
      %v1282 = vadd.f32 %v1266, %v1179
      %v1283 = vadd.f32 %v1267, %v1181
      %v1284 = vadd.f32 %v1268, %v1184
      %v1285 = vadd.f32 %v1269, %v1186
      %v1286 = vadd.f32 %v1270, %v1189
      %v1287 = vadd.f32 %v1271, %v1191
      %v1288 = vadd.f32 %v1272, %v1194
      %v1289 = vadd.f32 %v1273, %v1196
      %v1290 = vadd.f32 %v1274, %v1199
      %v1291 = vadd.f32 %v1275, %v1201
      %v1292 = vadd.f32 %v1276, %v1204
      %v1293 = vadd.f32 %v1277, %v1206
      %v1294 = vadd.f32 %v1278, %v1209
      %v1295 = vadd.f32 %v1279, %v1211
      %v1296 = vadd.f32 %v1280, %v1214
      %v1297 = vadd.f32 %v1281, %v1216
      %v1298 = vpack.c.bf16 %v1283, %v1282
      %v1299 = vpack.c.bf16 %v1285, %v1284
      %v1300 = vpack.c.bf16 %v1287, %v1286
      %v1301 = vpack.c.bf16 %v1289, %v1288
      %v1302 = vpack.c.bf16 %v1291, %v1290
      %v1303 = vpack.c.bf16 %v1293, %v1292
      %v1304 = vpack.c.bf16 %v1295, %v1294
      %v1305 = vpack.c.bf16 %v1297, %v1296
      %v1306 = vld [vmem:[%s9] sm:$0xf]
      %v1307 = vld [vmem:[%s9 + $0x4] sm:$0xf]
      %v1308 = vld [vmem:[%s9 + $0x8] sm:$0xf]
      %v1309 = vld [vmem:[%s9 + $0xc] sm:$0xf]
      %v1310 = vld [vmem:[%s10] sm:$0x1]
      %v1312 = vperm.slane %v1310, 0
      %v1318 = vunpack.c.l.b16 %v1306
      %v1319 = vunpack.c.l.b16 %v1307
      %v1320 = vunpack.c.l.b16 %v1308
      %v1321 = vunpack.c.l.b16 %v1309
      %v1322 = vpack.c.b16 %v1319, %v1318
      %v1323 = vpack.c.b16 %v1321, %v1320
      %v1327 = vsel %vm1144, %v1298, 0
      %v1330 = vsel %vm1144, %v1299, 0
      %v1333 = vsel %vm1144, %v1300, 0
      %v1336 = vsel %vm1144, %v1301, 0
      %v1339 = vsel %vm1144, %v1302, 0
      %v1342 = vsel %vm1144, %v1303, 0
      %v1345 = vsel %vm1144, %v1304, 0
      %v1348 = vsel %vm1144, %v1305, 0
      %1350 = vmatpush.bf16.msra.mxu0 0
      %1351 = vmatpush.bf16.msra.mxu0 0
      %1352 = vmatpush.bf16.msra.mxu0 0
      %1353 = vmatpush.bf16.msra.mxu0 0
      %1354 = vmatpush.bf16.msra.mxu0 0
      %1355 = vmatpush.bf16.msra.mxu0 0
      %1356 = vmatpush.bf16.msra.mxu0 %v1323
      %1357 = vmatpush.bf16.msra.mxu0 %v1322
      %1358 = vmatmul.bf16.gmra.mxu0 %v1327
      %v1359 = vpop.f32.mrf.mxu0
      %v1360 = vadd.f32 %v1312, %v1359
      %v1361 = vpop.f32.mrf.mxu0
      %v1362 = vadd.f32 %v1312, %v1361
      %1363 = vmatmul.bf16.gmra.mxu0 %v1330
      %v1364 = vpop.f32.mrf.mxu0
      %v1365 = vadd.f32 %v1312, %v1364
      %v1366 = vpop.f32.mrf.mxu0
      %v1367 = vadd.f32 %v1312, %v1366
      %1368 = vmatmul.bf16.gmra.mxu0 %v1333
      %v1369 = vpop.f32.mrf.mxu0
      %v1370 = vadd.f32 %v1312, %v1369
      %v1371 = vpop.f32.mrf.mxu0
      %v1372 = vadd.f32 %v1312, %v1371
      %1373 = vmatmul.bf16.gmra.mxu0 %v1336
      %v1374 = vpop.f32.mrf.mxu0
      %v1375 = vadd.f32 %v1312, %v1374
      %v1376 = vpop.f32.mrf.mxu0
      %v1377 = vadd.f32 %v1312, %v1376
      %1378 = vmatmul.bf16.gmra.mxu0 %v1339
      %v1379 = vpop.f32.mrf.mxu0
      %v1380 = vadd.f32 %v1312, %v1379
      %v1381 = vpop.f32.mrf.mxu0
      %v1382 = vadd.f32 %v1312, %v1381
      %1383 = vmatmul.bf16.gmra.mxu0 %v1342
      %v1384 = vpop.f32.mrf.mxu0
      %v1385 = vadd.f32 %v1312, %v1384
      %v1386 = vpop.f32.mrf.mxu0
      %v1387 = vadd.f32 %v1312, %v1386
      %1388 = vmatmul.bf16.gmra.mxu0 %v1345
      %v1389 = vpop.f32.mrf.mxu0
      %v1390 = vadd.f32 %v1312, %v1389
      %v1391 = vpop.f32.mrf.mxu0
      %v1392 = vadd.f32 %v1312, %v1391
      %1393 = vmatmul.bf16.gmra.mxu0 %v1348
      %v1394 = vpop.f32.mrf.mxu0
      %v1395 = vadd.f32 %v1312, %v1394
      %v1396 = vpop.f32.mrf.mxu0
      %v1397 = vadd.f32 %v1312, %v1396
      %1398 = vdwg.mxu0
      %v1399 = vmax.f32 %v1360, 0.0
      %v1400 = vmax.f32 %v1362, 0.0
      %v1401 = vmax.f32 %v1365, 0.0
      %v1402 = vmax.f32 %v1367, 0.0
      %v1403 = vmax.f32 %v1370, 0.0
      %v1404 = vmax.f32 %v1372, 0.0
      %v1405 = vmax.f32 %v1375, 0.0
      %v1406 = vmax.f32 %v1377, 0.0
      %v1407 = vmax.f32 %v1380, 0.0
      %v1408 = vmax.f32 %v1382, 0.0
      %v1409 = vmax.f32 %v1385, 0.0
      %v1410 = vmax.f32 %v1387, 0.0
      %v1411 = vmax.f32 %v1390, 0.0
      %v1412 = vmax.f32 %v1392, 0.0
      %v1413 = vmax.f32 %v1395, 0.0
      %v1414 = vmax.f32 %v1397, 0.0
      %v1415 = vpack.c.bf16 %v1400, %v1399
      %v1416 = vpack.c.bf16 %v1402, %v1401
      %v1417 = vpack.c.bf16 %v1404, %v1403
      %v1418 = vpack.c.bf16 %v1406, %v1405
      %v1419 = vpack.c.bf16 %v1408, %v1407
      %v1420 = vpack.c.bf16 %v1410, %v1409
      %v1421 = vpack.c.bf16 %v1412, %v1411
      %v1422 = vpack.c.bf16 %v1414, %v1413
      %v1423 = vld [vmem:[%s11] sm:$0xf]
      %v1424 = vld [vmem:[%s11 + $0x4] sm:$0xf]
      %v1425 = vld [vmem:[%s11 + $0x8] sm:$0xf]
      %v1426 = vld [vmem:[%s11 + $0xc] sm:$0xf]
      %v1427 = vld [vmem:[%s12] sm:$0x1]
      %v1429 = vperm.slane %v1427, 0
      %v1435 = vunpack.c.l.b16 %v1423
      %v1436 = vunpack.c.l.b16 %v1424
      %v1437 = vunpack.c.l.b16 %v1425
      %v1438 = vunpack.c.l.b16 %v1426
      %v1439 = vpack.c.b16 %v1436, %v1435
      %v1440 = vpack.c.b16 %v1438, %v1437
      %v1444 = vsel %vm1144, %v1415, 0
      %v1447 = vsel %vm1144, %v1416, 0
      %v1450 = vsel %vm1144, %v1417, 0
      %v1453 = vsel %vm1144, %v1418, 0
      %v1456 = vsel %vm1144, %v1419, 0
      %v1459 = vsel %vm1144, %v1420, 0
      %v1462 = vsel %vm1144, %v1421, 0
      %v1465 = vsel %vm1144, %v1422, 0
      %1467 = vmatpush.bf16.msra.mxu0 0
      %1468 = vmatpush.bf16.msra.mxu0 0
      %1469 = vmatpush.bf16.msra.mxu0 0
      %1470 = vmatpush.bf16.msra.mxu0 0
      %1471 = vmatpush.bf16.msra.mxu0 0
      %1472 = vmatpush.bf16.msra.mxu0 0
      %1473 = vmatpush.bf16.msra.mxu0 %v1440
      %1474 = vmatpush.bf16.msra.mxu0 %v1439
      %1475 = vmatmul.bf16.gmra.mxu0 %v1444
      %v1476 = vpop.f32.mrf.mxu0
      %v1477 = vadd.f32 %v1429, %v1476
      %v1478 = vpop.f32.mrf.mxu0
      %v1479 = vadd.f32 %v1429, %v1478
      %1480 = vmatmul.bf16.gmra.mxu0 %v1447
      %v1481 = vpop.f32.mrf.mxu0
      %v1482 = vadd.f32 %v1429, %v1481
      %v1483 = vpop.f32.mrf.mxu0
      %v1484 = vadd.f32 %v1429, %v1483
      %1485 = vmatmul.bf16.gmra.mxu0 %v1450
      %v1486 = vpop.f32.mrf.mxu0
      %v1487 = vadd.f32 %v1429, %v1486
      %v1488 = vpop.f32.mrf.mxu0
      %v1489 = vadd.f32 %v1429, %v1488
      %1490 = vmatmul.bf16.gmra.mxu0 %v1453
      %v1491 = vpop.f32.mrf.mxu0
      %v1492 = vadd.f32 %v1429, %v1491
      %v1493 = vpop.f32.mrf.mxu0
      %v1494 = vadd.f32 %v1429, %v1493
      %1495 = vmatmul.bf16.gmra.mxu0 %v1456
      %v1496 = vpop.f32.mrf.mxu0
      %v1497 = vadd.f32 %v1429, %v1496
      %v1498 = vpop.f32.mrf.mxu0
      %v1499 = vadd.f32 %v1429, %v1498
      %1500 = vmatmul.bf16.gmra.mxu0 %v1459
      %v1501 = vpop.f32.mrf.mxu0
      %v1502 = vadd.f32 %v1429, %v1501
      %v1503 = vpop.f32.mrf.mxu0
      %v1504 = vadd.f32 %v1429, %v1503
      %1505 = vmatmul.bf16.gmra.mxu0 %v1462
      %v1506 = vpop.f32.mrf.mxu0
      %v1507 = vadd.f32 %v1429, %v1506
      %v1508 = vpop.f32.mrf.mxu0
      %v1509 = vadd.f32 %v1429, %v1508
      %1510 = vmatmul.bf16.gmra.mxu0 %v1465
      %v1511 = vpop.f32.mrf.mxu0
      %v1512 = vadd.f32 %v1429, %v1511
      %v1513 = vpop.f32.mrf.mxu0
      %v1514 = vadd.f32 %v1429, %v1513
      %1515 = vdwg.mxu0
      %v1516 = vsel %vm1144, %v1477, -inf
      %v1517 = vrot.slane %v1516, 4
      %v1518 = vmax.f32 %v1516, %v1517
      %v1519 = vrot.slane %v1518, 2
      %v1520 = vmax.f32 %v1518, %v1519
      %v1521 = vrot.slane %v1520, 1
      %v1522 = vmax.f32 %v1520, %v1521
      %v1523 = vsel %vm1144, %v1479, -inf
      %v1524 = vrot.slane %v1523, 4
      %v1525 = vmax.f32 %v1523, %v1524
      %v1526 = vrot.slane %v1525, 2
      %v1527 = vmax.f32 %v1525, %v1526
      %v1528 = vrot.slane %v1527, 1
      %v1529 = vmax.f32 %v1527, %v1528
      %v1530 = vsel %vm1144, %v1482, -inf
      %v1531 = vrot.slane %v1530, 4
      %v1532 = vmax.f32 %v1530, %v1531
      %v1533 = vrot.slane %v1532, 2
      %v1534 = vmax.f32 %v1532, %v1533
      %v1535 = vrot.slane %v1534, 1
      %v1536 = vmax.f32 %v1534, %v1535
      %v1537 = vsel %vm1144, %v1484, -inf
      %v1538 = vrot.slane %v1537, 4
      %v1539 = vmax.f32 %v1537, %v1538
      %v1540 = vrot.slane %v1539, 2
      %v1541 = vmax.f32 %v1539, %v1540
      %v1542 = vrot.slane %v1541, 1
      %v1543 = vmax.f32 %v1541, %v1542
      %v1544 = vsel %vm1144, %v1487, -inf
      %v1545 = vrot.slane %v1544, 4
      %v1546 = vmax.f32 %v1544, %v1545
      %v1547 = vrot.slane %v1546, 2
      %v1548 = vmax.f32 %v1546, %v1547
      %v1549 = vrot.slane %v1548, 1
      %v1550 = vmax.f32 %v1548, %v1549
      %v1551 = vsel %vm1144, %v1489, -inf
      %v1552 = vrot.slane %v1551, 4
      %v1553 = vmax.f32 %v1551, %v1552
      %v1554 = vrot.slane %v1553, 2
      %v1555 = vmax.f32 %v1553, %v1554
      %v1556 = vrot.slane %v1555, 1
      %v1557 = vmax.f32 %v1555, %v1556
      %v1558 = vsel %vm1144, %v1492, -inf
      %v1559 = vrot.slane %v1558, 4
      %v1560 = vmax.f32 %v1558, %v1559
      %v1561 = vrot.slane %v1560, 2
      %v1562 = vmax.f32 %v1560, %v1561
      %v1563 = vrot.slane %v1562, 1
      %v1564 = vmax.f32 %v1562, %v1563
      %v1565 = vsel %vm1144, %v1494, -inf
      %v1566 = vrot.slane %v1565, 4
      %v1567 = vmax.f32 %v1565, %v1566
      %v1568 = vrot.slane %v1567, 2
      %v1569 = vmax.f32 %v1567, %v1568
      %v1570 = vrot.slane %v1569, 1
      %v1571 = vmax.f32 %v1569, %v1570
      %v1572 = vsel %vm1144, %v1497, -inf
      %v1573 = vrot.slane %v1572, 4
      %v1574 = vmax.f32 %v1572, %v1573
      %v1575 = vrot.slane %v1574, 2
      %v1576 = vmax.f32 %v1574, %v1575
      %v1577 = vrot.slane %v1576, 1
      %v1578 = vmax.f32 %v1576, %v1577
      %v1579 = vsel %vm1144, %v1499, -inf
      %v1580 = vrot.slane %v1579, 4
      %v1581 = vmax.f32 %v1579, %v1580
      %v1582 = vrot.slane %v1581, 2
      %v1583 = vmax.f32 %v1581, %v1582
      %v1584 = vrot.slane %v1583, 1
      %v1585 = vmax.f32 %v1583, %v1584
      %v1586 = vsel %vm1144, %v1502, -inf
      %v1587 = vrot.slane %v1586, 4
      %v1588 = vmax.f32 %v1586, %v1587
      %v1589 = vrot.slane %v1588, 2
      %v1590 = vmax.f32 %v1588, %v1589
      %v1591 = vrot.slane %v1590, 1
      %v1592 = vmax.f32 %v1590, %v1591
      %v1593 = vsel %vm1144, %v1504, -inf
      %v1594 = vrot.slane %v1593, 4
      %v1595 = vmax.f32 %v1593, %v1594
      %v1596 = vrot.slane %v1595, 2
      %v1597 = vmax.f32 %v1595, %v1596
      %v1598 = vrot.slane %v1597, 1
      %v1599 = vmax.f32 %v1597, %v1598
      %v1600 = vsel %vm1144, %v1507, -inf
      %v1601 = vrot.slane %v1600, 4
      %v1602 = vmax.f32 %v1600, %v1601
      %v1603 = vrot.slane %v1602, 2
      %v1604 = vmax.f32 %v1602, %v1603
      %v1605 = vrot.slane %v1604, 1
      %v1606 = vmax.f32 %v1604, %v1605
      %v1607 = vsel %vm1144, %v1509, -inf
      %v1608 = vrot.slane %v1607, 4
      %v1609 = vmax.f32 %v1607, %v1608
      %v1610 = vrot.slane %v1609, 2
      %v1611 = vmax.f32 %v1609, %v1610
      %v1612 = vrot.slane %v1611, 1
      %v1613 = vmax.f32 %v1611, %v1612
      %v1614 = vsel %vm1144, %v1512, -inf
      %v1615 = vrot.slane %v1614, 4
      %v1616 = vmax.f32 %v1614, %v1615
      %v1617 = vrot.slane %v1616, 2
      %v1618 = vmax.f32 %v1616, %v1617
      %v1619 = vrot.slane %v1618, 1
      %v1620 = vmax.f32 %v1618, %v1619
      %v1621 = vsel %vm1144, %v1514, -inf
      %v1622 = vrot.slane %v1621, 4
      %v1623 = vmax.f32 %v1621, %v1622
      %v1624 = vrot.slane %v1623, 2
      %v1625 = vmax.f32 %v1623, %v1624
      %v1626 = vrot.slane %v1625, 1
      %v1627 = vmax.f32 %v1625, %v1626
      %v1628 = vsub.f32 %v1477, %v1522
      %v1629 = vsub.f32 %v1479, %v1529
      %v1630 = vsub.f32 %v1482, %v1536
      %v1631 = vsub.f32 %v1484, %v1543
      %v1632 = vsub.f32 %v1487, %v1550
      %v1633 = vsub.f32 %v1489, %v1557
      %v1634 = vsub.f32 %v1492, %v1564
      %v1635 = vsub.f32 %v1494, %v1571
      %v1636 = vsub.f32 %v1497, %v1578
      %v1637 = vsub.f32 %v1499, %v1585
      %v1638 = vsub.f32 %v1502, %v1592
      %v1639 = vsub.f32 %v1504, %v1599
      %v1640 = vsub.f32 %v1507, %v1606
      %v1641 = vsub.f32 %v1509, %v1613
      %v1642 = vsub.f32 %v1512, %v1620
      %v1643 = vsub.f32 %v1514, %v1627
      %v1644 = vmul.f32 %v1628, 1.442695
      %v1645 = vpow.pop %v1644
      %v1646 = vmul.f32 %v1629, 1.442695
      %v1647 = vpow.pop %v1646
      %v1648 = vmul.f32 %v1630, 1.442695
      %v1649 = vpow.pop %v1648
      %v1650 = vmul.f32 %v1631, 1.442695
      %v1651 = vpow.pop %v1650
      %v1652 = vmul.f32 %v1632, 1.442695
      %v1653 = vpow.pop %v1652
      %v1654 = vmul.f32 %v1633, 1.442695
      %v1655 = vpow.pop %v1654
      %v1656 = vmul.f32 %v1634, 1.442695
      %v1657 = vpow.pop %v1656
      %v1658 = vmul.f32 %v1635, 1.442695
      %v1659 = vpow.pop %v1658
      %v1660 = vmul.f32 %v1636, 1.442695
      %v1661 = vpow.pop %v1660
      %v1662 = vmul.f32 %v1637, 1.442695
      %v1663 = vpow.pop %v1662
      %v1664 = vmul.f32 %v1638, 1.442695
      %v1665 = vpow.pop %v1664
      %v1666 = vmul.f32 %v1639, 1.442695
      %v1667 = vpow.pop %v1666
      %v1668 = vmul.f32 %v1640, 1.442695
      %v1669 = vpow.pop %v1668
      %v1670 = vmul.f32 %v1641, 1.442695
      %v1671 = vpow.pop %v1670
      %v1672 = vmul.f32 %v1642, 1.442695
      %v1673 = vpow.pop %v1672
      %v1674 = vmul.f32 %v1643, 1.442695
      %v1675 = vpow.pop %v1674
      %v1676 = vsel %vm1144, %v1645, 0.0
      %v1677 = vrot.slane %v1676, 4
      %v1678 = vadd.f32 %v1676, %v1677
      %v1679 = vrot.slane %v1678, 2
      %v1680 = vadd.f32 %v1678, %v1679
      %v1681 = vrot.slane %v1680, 1
      %v1682 = vadd.f32 %v1680, %v1681
      %v1683 = vsel %vm1144, %v1647, 0.0
      %v1684 = vrot.slane %v1683, 4
      %v1685 = vadd.f32 %v1683, %v1684
      %v1686 = vrot.slane %v1685, 2
      %v1687 = vadd.f32 %v1685, %v1686
      %v1688 = vrot.slane %v1687, 1
      %v1689 = vadd.f32 %v1687, %v1688
      %v1690 = vsel %vm1144, %v1649, 0.0
      %v1691 = vrot.slane %v1690, 4
      %v1692 = vadd.f32 %v1690, %v1691
      %v1693 = vrot.slane %v1692, 2
      %v1694 = vadd.f32 %v1692, %v1693
      %v1695 = vrot.slane %v1694, 1
      %v1696 = vadd.f32 %v1694, %v1695
      %v1697 = vsel %vm1144, %v1651, 0.0
      %v1698 = vrot.slane %v1697, 4
      %v1699 = vadd.f32 %v1697, %v1698
      %v1700 = vrot.slane %v1699, 2
      %v1701 = vadd.f32 %v1699, %v1700
      %v1702 = vrot.slane %v1701, 1
      %v1703 = vadd.f32 %v1701, %v1702
      %v1704 = vsel %vm1144, %v1653, 0.0
      %v1705 = vrot.slane %v1704, 4
      %v1706 = vadd.f32 %v1704, %v1705
      %v1707 = vrot.slane %v1706, 2
      %v1708 = vadd.f32 %v1706, %v1707
      %v1709 = vrot.slane %v1708, 1
      %v1710 = vadd.f32 %v1708, %v1709
      %v1711 = vsel %vm1144, %v1655, 0.0
      %v1712 = vrot.slane %v1711, 4
      %v1713 = vadd.f32 %v1711, %v1712
      %v1714 = vrot.slane %v1713, 2
      %v1715 = vadd.f32 %v1713, %v1714
      %v1716 = vrot.slane %v1715, 1
      %v1717 = vadd.f32 %v1715, %v1716
      %v1718 = vsel %vm1144, %v1657, 0.0
      %v1719 = vrot.slane %v1718, 4
      %v1720 = vadd.f32 %v1718, %v1719
      %v1721 = vrot.slane %v1720, 2
      %v1722 = vadd.f32 %v1720, %v1721
      %v1723 = vrot.slane %v1722, 1
      %v1724 = vadd.f32 %v1722, %v1723
      %v1725 = vsel %vm1144, %v1659, 0.0
      %v1726 = vrot.slane %v1725, 4
      %v1727 = vadd.f32 %v1725, %v1726
      %v1728 = vrot.slane %v1727, 2
      %v1729 = vadd.f32 %v1727, %v1728
      %v1730 = vrot.slane %v1729, 1
      %v1731 = vadd.f32 %v1729, %v1730
      %v1732 = vsel %vm1144, %v1661, 0.0
      %v1733 = vrot.slane %v1732, 4
      %v1734 = vadd.f32 %v1732, %v1733
      %v1735 = vrot.slane %v1734, 2
      %v1736 = vadd.f32 %v1734, %v1735
      %v1737 = vrot.slane %v1736, 1
      %v1738 = vadd.f32 %v1736, %v1737
      %v1739 = vsel %vm1144, %v1663, 0.0
      %v1740 = vrot.slane %v1739, 4
      %v1741 = vadd.f32 %v1739, %v1740
      %v1742 = vrot.slane %v1741, 2
      %v1743 = vadd.f32 %v1741, %v1742
      %v1744 = vrot.slane %v1743, 1
      %v1745 = vadd.f32 %v1743, %v1744
      %v1746 = vsel %vm1144, %v1665, 0.0
      %v1747 = vrot.slane %v1746, 4
      %v1748 = vadd.f32 %v1746, %v1747
      %v1749 = vrot.slane %v1748, 2
      %v1750 = vadd.f32 %v1748, %v1749
      %v1751 = vrot.slane %v1750, 1
      %v1752 = vadd.f32 %v1750, %v1751
      %v1753 = vsel %vm1144, %v1667, 0.0
      %v1754 = vrot.slane %v1753, 4
      %v1755 = vadd.f32 %v1753, %v1754
      %v1756 = vrot.slane %v1755, 2
      %v1757 = vadd.f32 %v1755, %v1756
      %v1758 = vrot.slane %v1757, 1
      %v1759 = vadd.f32 %v1757, %v1758
      %v1760 = vsel %vm1144, %v1669, 0.0
      %v1761 = vrot.slane %v1760, 4
      %v1762 = vadd.f32 %v1760, %v1761
      %v1763 = vrot.slane %v1762, 2
      %v1764 = vadd.f32 %v1762, %v1763
      %v1765 = vrot.slane %v1764, 1
      %v1766 = vadd.f32 %v1764, %v1765
      %v1767 = vsel %vm1144, %v1671, 0.0
      %v1768 = vrot.slane %v1767, 4
      %v1769 = vadd.f32 %v1767, %v1768
      %v1770 = vrot.slane %v1769, 2
      %v1771 = vadd.f32 %v1769, %v1770
      %v1772 = vrot.slane %v1771, 1
      %v1773 = vadd.f32 %v1771, %v1772
      %v1774 = vsel %vm1144, %v1673, 0.0
      %v1775 = vrot.slane %v1774, 4
      %v1776 = vadd.f32 %v1774, %v1775
      %v1777 = vrot.slane %v1776, 2
      %v1778 = vadd.f32 %v1776, %v1777
      %v1779 = vrot.slane %v1778, 1
      %v1780 = vadd.f32 %v1778, %v1779
      %v1781 = vsel %vm1144, %v1675, 0.0
      %v1782 = vrot.slane %v1781, 4
      %v1783 = vadd.f32 %v1781, %v1782
      %v1784 = vrot.slane %v1783, 2
      %v1785 = vadd.f32 %v1783, %v1784
      %v1786 = vrot.slane %v1785, 1
      %v1787 = vadd.f32 %v1785, %v1786
      %v1788 = vrcp.pop %v1682
      %v1789 = vrcp.pop %v1689
      %v1790 = vrcp.pop %v1696
      %v1791 = vrcp.pop %v1703
      %v1792 = vrcp.pop %v1710
      %v1793 = vrcp.pop %v1717
      %v1794 = vrcp.pop %v1724
      %v1795 = vrcp.pop %v1731
      %v1796 = vrcp.pop %v1738
      %v1797 = vrcp.pop %v1745
      %v1798 = vrcp.pop %v1752
      %v1799 = vrcp.pop %v1759
      %v1800 = vrcp.pop %v1766
      %v1801 = vrcp.pop %v1773
      %v1802 = vrcp.pop %v1780
      %v1803 = vrcp.pop %v1787
      %v1804 = vmul.f32 %v1645, %v1788
      %v1805 = vmul.f32 %v1647, %v1789
      %v1806 = vmul.f32 %v1649, %v1790
      %v1807 = vmul.f32 %v1651, %v1791
      %v1808 = vmul.f32 %v1653, %v1792
      %v1809 = vmul.f32 %v1655, %v1793
      %v1810 = vmul.f32 %v1657, %v1794
      %v1811 = vmul.f32 %v1659, %v1795
      %v1812 = vmul.f32 %v1661, %v1796
      %v1813 = vmul.f32 %v1663, %v1797
      %v1814 = vmul.f32 %v1665, %v1798
      %v1815 = vmul.f32 %v1667, %v1799
      %v1816 = vmul.f32 %v1669, %v1800
      %v1817 = vmul.f32 %v1671, %v1801
      %v1818 = vmul.f32 %v1673, %v1802
      %v1819 = vmul.f32 %v1675, %v1803
      %v1820 = vadd.f32 %v756, %v1179
      %v1821 = vadd.f32 %v757, %v1181
      %v1822 = vadd.f32 %v758, %v1184
      %v1823 = vadd.f32 %v759, %v1186
      %v1824 = vadd.f32 %v760, %v1189
      %v1825 = vadd.f32 %v761, %v1191
      %v1826 = vadd.f32 %v762, %v1194
      %v1827 = vadd.f32 %v763, %v1196
      %v1828 = vadd.f32 %v764, %v1199
      %v1829 = vadd.f32 %v765, %v1201
      %v1830 = vadd.f32 %v766, %v1204
      %v1831 = vadd.f32 %v767, %v1206
      %v1832 = vadd.f32 %v768, %v1209
      %v1833 = vadd.f32 %v769, %v1211
      %v1834 = vadd.f32 %v770, %v1214
      %v1835 = vadd.f32 %v771, %v1216
      %v1836 = vmul.f32 %v1804, %v1820
      %v1837 = vmul.f32 %v1805, %v1821
      %v1838 = vmul.f32 %v1806, %v1822
      %v1839 = vmul.f32 %v1807, %v1823
      %v1840 = vmul.f32 %v1808, %v1824
      %v1841 = vmul.f32 %v1809, %v1825
      %v1842 = vmul.f32 %v1810, %v1826
      %v1843 = vmul.f32 %v1811, %v1827
      %v1844 = vmul.f32 %v1812, %v1828
      %v1845 = vmul.f32 %v1813, %v1829
      %v1846 = vmul.f32 %v1814, %v1830
      %v1847 = vmul.f32 %v1815, %v1831
      %v1848 = vmul.f32 %v1816, %v1832
      %v1849 = vmul.f32 %v1817, %v1833
      %v1850 = vmul.f32 %v1818, %v1834
      %v1851 = vmul.f32 %v1819, %v1835
      %v1852 = vsel %vm1144, %v1836, 0.0
      %v1853 = vrot.slane %v1852, 4
      %v1854 = vadd.f32 %v1852, %v1853
      %v1855 = vrot.slane %v1854, 2
      %v1856 = vadd.f32 %v1854, %v1855
      %v1857 = vrot.slane %v1856, 1
      %v1858 = vadd.f32 %v1856, %v1857
      %v1859 = vsel %vm1144, %v1837, 0.0
      %v1860 = vrot.slane %v1859, 4
      %v1861 = vadd.f32 %v1859, %v1860
      %v1862 = vrot.slane %v1861, 2
      %v1863 = vadd.f32 %v1861, %v1862
      %v1864 = vrot.slane %v1863, 1
      %v1865 = vadd.f32 %v1863, %v1864
      %v1866 = vsel %vm1144, %v1838, 0.0
      %v1867 = vrot.slane %v1866, 4
      %v1868 = vadd.f32 %v1866, %v1867
      %v1869 = vrot.slane %v1868, 2
      %v1870 = vadd.f32 %v1868, %v1869
      %v1871 = vrot.slane %v1870, 1
      %v1872 = vadd.f32 %v1870, %v1871
      %v1873 = vsel %vm1144, %v1839, 0.0
      %v1874 = vrot.slane %v1873, 4
      %v1875 = vadd.f32 %v1873, %v1874
      %v1876 = vrot.slane %v1875, 2
      %v1877 = vadd.f32 %v1875, %v1876
      %v1878 = vrot.slane %v1877, 1
      %v1879 = vadd.f32 %v1877, %v1878
      %v1880 = vsel %vm1144, %v1840, 0.0
      %v1881 = vrot.slane %v1880, 4
      %v1882 = vadd.f32 %v1880, %v1881
      %v1883 = vrot.slane %v1882, 2
      %v1884 = vadd.f32 %v1882, %v1883
      %v1885 = vrot.slane %v1884, 1
      %v1886 = vadd.f32 %v1884, %v1885
      %v1887 = vsel %vm1144, %v1841, 0.0
      %v1888 = vrot.slane %v1887, 4
      %v1889 = vadd.f32 %v1887, %v1888
      %v1890 = vrot.slane %v1889, 2
      %v1891 = vadd.f32 %v1889, %v1890
      %v1892 = vrot.slane %v1891, 1
      %v1893 = vadd.f32 %v1891, %v1892
      %v1894 = vsel %vm1144, %v1842, 0.0
      %v1895 = vrot.slane %v1894, 4
      %v1896 = vadd.f32 %v1894, %v1895
      %v1897 = vrot.slane %v1896, 2
      %v1898 = vadd.f32 %v1896, %v1897
      %v1899 = vrot.slane %v1898, 1
      %v1900 = vadd.f32 %v1898, %v1899
      %v1901 = vsel %vm1144, %v1843, 0.0
      %v1902 = vrot.slane %v1901, 4
      %v1903 = vadd.f32 %v1901, %v1902
      %v1904 = vrot.slane %v1903, 2
      %v1905 = vadd.f32 %v1903, %v1904
      %v1906 = vrot.slane %v1905, 1
      %v1907 = vadd.f32 %v1905, %v1906
      %v1908 = vsel %vm1144, %v1844, 0.0
      %v1909 = vrot.slane %v1908, 4
      %v1910 = vadd.f32 %v1908, %v1909
      %v1911 = vrot.slane %v1910, 2
      %v1912 = vadd.f32 %v1910, %v1911
      %v1913 = vrot.slane %v1912, 1
      %v1914 = vadd.f32 %v1912, %v1913
      %v1915 = vsel %vm1144, %v1845, 0.0
      %v1916 = vrot.slane %v1915, 4
      %v1917 = vadd.f32 %v1915, %v1916
      %v1918 = vrot.slane %v1917, 2
      %v1919 = vadd.f32 %v1917, %v1918
      %v1920 = vrot.slane %v1919, 1
      %v1921 = vadd.f32 %v1919, %v1920
      %v1922 = vsel %vm1144, %v1846, 0.0
      %v1923 = vrot.slane %v1922, 4
      %v1924 = vadd.f32 %v1922, %v1923
      %v1925 = vrot.slane %v1924, 2
      %v1926 = vadd.f32 %v1924, %v1925
      %v1927 = vrot.slane %v1926, 1
      %v1928 = vadd.f32 %v1926, %v1927
      %v1929 = vsel %vm1144, %v1847, 0.0
      %v1930 = vrot.slane %v1929, 4
      %v1931 = vadd.f32 %v1929, %v1930
      %v1932 = vrot.slane %v1931, 2
      %v1933 = vadd.f32 %v1931, %v1932
      %v1934 = vrot.slane %v1933, 1
      %v1935 = vadd.f32 %v1933, %v1934
      %v1936 = vsel %vm1144, %v1848, 0.0
      %v1937 = vrot.slane %v1936, 4
      %v1938 = vadd.f32 %v1936, %v1937
      %v1939 = vrot.slane %v1938, 2
      %v1940 = vadd.f32 %v1938, %v1939
      %v1941 = vrot.slane %v1940, 1
      %v1942 = vadd.f32 %v1940, %v1941
      %v1943 = vsel %vm1144, %v1849, 0.0
      %v1944 = vrot.slane %v1943, 4
      %v1945 = vadd.f32 %v1943, %v1944
      %v1946 = vrot.slane %v1945, 2
      %v1947 = vadd.f32 %v1945, %v1946
      %v1948 = vrot.slane %v1947, 1
      %v1949 = vadd.f32 %v1947, %v1948
      %v1950 = vsel %vm1144, %v1850, 0.0
      %v1951 = vrot.slane %v1950, 4
      %v1952 = vadd.f32 %v1950, %v1951
      %v1953 = vrot.slane %v1952, 2
      %v1954 = vadd.f32 %v1952, %v1953
      %v1955 = vrot.slane %v1954, 1
      %v1956 = vadd.f32 %v1954, %v1955
      %v1957 = vsel %vm1144, %v1851, 0.0
      %v1958 = vrot.slane %v1957, 4
      %v1959 = vadd.f32 %v1957, %v1958
      %v1960 = vrot.slane %v1959, 2
      %v1961 = vadd.f32 %v1959, %v1960
      %v1962 = vrot.slane %v1961, 1
      %v1963 = vadd.f32 %v1961, %v1962
      %v1964 = vpack.c.bf16 %v1858, %v1858
      %v1965 = vpack.c.bf16 %v1865, %v1865
      %v1966 = vpack.c.bf16 %v1872, %v1872
      %v1967 = vpack.c.bf16 %v1879, %v1879
      %v1968 = vpack.c.bf16 %v1886, %v1886
      %v1969 = vpack.c.bf16 %v1893, %v1893
      %v1970 = vpack.c.bf16 %v1900, %v1900
      %v1971 = vpack.c.bf16 %v1907, %v1907
      %v1972 = vpack.c.bf16 %v1914, %v1914
      %v1973 = vpack.c.bf16 %v1921, %v1921
      %v1974 = vpack.c.bf16 %v1928, %v1928
      %v1975 = vpack.c.bf16 %v1935, %v1935
      %v1976 = vpack.c.bf16 %v1942, %v1942
      %v1977 = vpack.c.bf16 %v1949, %v1949
      %v1978 = vpack.c.bf16 %v1956, %v1956
      %v1979 = vpack.c.bf16 %v1963, %v1963
      %v1980 = vld [vmem:[%s13] sm:$0xf]
      %v1981 = vld [vmem:[%s13 + $0x4] sm:$0xf]
      %v1982 = vld [vmem:[%s13 + $0x8] sm:$0xf]
      %v1983 = vld [vmem:[%s13 + $0xc] sm:$0xf]
      %v1984 = vld [vmem:[%s653] sm:$0xff]
      %v1985 = vld [vmem:[%s653 + $0x8] sm:$0xff]
      %v1986 = vpack.c.bf16 %v1985, %v1984
      %v1987 = vld [vmem:[%s14] sm:$0xf]
      %vm1988 = vcmask 64512
      %v1990 = vsel %vm1988, %v1986, 0
      %vm1992 = vcmask 1043456
      %v1994 = vsel %vm1992, %v1987, 0
      %1996 = vmatpush.bf16.msra.mxu0 0
      %1997 = vmatpush.bf16.msra.mxu0 0
      %1998 = vmatpush.bf16.msra.mxu0 0
      %1999 = vmatpush.bf16.msra.mxu0 0
      %2000 = vmatpush.bf16.msra.mxu0 0
      %2001 = vmatpush.bf16.msra.mxu0 0
      %2002 = vmatpush.bf16.msra.mxu0 0
      %2003 = vmatpush.bf16.msra.mxu0 %v1994
      %2004 = vmatmul.bf16.gmra.mxu0 %v1990
      %v2005 = vpop.f32.mrf.mxu0
      %v2006 = vadd.f32 0.0, %v2005
      %v2007 = vpop.f32.mrf.mxu0
      %v2008 = vadd.f32 0.0, %v2007
      %2009 = vdwg.mxu0
      %v2026 = vunpack.c.l.b16 %v1964
      %v2027 = vunpack.c.l.b16 %v1965
      %v2028 = vunpack.c.l.b16 %v1966
      %v2029 = vunpack.c.l.b16 %v1967
      %v2030 = vunpack.c.l.b16 %v1968
      %v2031 = vunpack.c.l.b16 %v1969
      %v2032 = vunpack.c.l.b16 %v1970
      %v2033 = vunpack.c.l.b16 %v1971
      %v2034 = vunpack.c.l.b16 %v1972
      %v2035 = vunpack.c.l.b16 %v1973
      %v2036 = vunpack.c.l.b16 %v1974
      %v2037 = vunpack.c.l.b16 %v1975
      %v2038 = vunpack.c.l.b16 %v1976
      %v2039 = vunpack.c.l.b16 %v1977
      %v2040 = vunpack.c.l.b16 %v1978
      %v2041 = vunpack.c.l.b16 %v1979
      %vm2042 = vcmask 1041409
      %v2043 = vsel %vm2042, %v2027, %v2026
      %vm2044 = vcmask 1042434
      %v2045 = vsel %vm2044, %v2028, %v2043
      %vm2046 = vcmask 1043459
      %v2047 = vsel %vm2046, %v2029, %v2045
      %vm2048 = vcmask 1044484
      %v2049 = vsel %vm2048, %v2030, %v2047
      %vm2050 = vcmask 1045509
      %v2051 = vsel %vm2050, %v2031, %v2049
      %vm2052 = vcmask 1046534
      %v2053 = vsel %vm2052, %v2032, %v2051
      %vm2054 = vcmask 1047559
      %v2055 = vsel %vm2054, %v2033, %v2053
      %v2056 = vsel %vm2042, %v2035, %v2034
      %v2057 = vsel %vm2044, %v2036, %v2056
      %v2058 = vsel %vm2046, %v2037, %v2057
      %v2059 = vsel %vm2048, %v2038, %v2058
      %v2060 = vsel %vm2050, %v2039, %v2059
      %v2061 = vsel %vm2052, %v2040, %v2060
      %v2062 = vsel %vm2054, %v2041, %v2061
      %v2063 = vpack.c.b16 %v2062, %v2055
      %v2068 = vunpack.c.l.b16 %v1980
      %v2069 = vunpack.c.l.b16 %v1981
      %v2070 = vunpack.c.l.b16 %v1982
      %v2071 = vunpack.c.l.b16 %v1983
      %v2072 = vpack.c.b16 %v2069, %v2068
      %v2073 = vpack.c.b16 %v2071, %v2070
      %v2077 = vsel %vm1144, %v2063, 0
      %2079 = vmatpush.bf16.msra.mxu0 0
      %2080 = vmatpush.bf16.msra.mxu0 0
      %2081 = vmatpush.bf16.msra.mxu0 0
      %2082 = vmatpush.bf16.msra.mxu0 0
      %2083 = vmatpush.bf16.msra.mxu0 0
      %2084 = vmatpush.bf16.msra.mxu0 0
      %2085 = vmatpush.bf16.msra.mxu0 %v2073
      %2086 = vmatpush.bf16.msra.mxu0 %v2072
      %2087 = vmatmul.bf16.gmra.mxu0 %v2077
      %v2088 = vpop.f32.mrf.mxu0
      %v2089 = vadd.f32 %v2006, %v2088
      %v2090 = vpop.f32.mrf.mxu0
      %v2091 = vadd.f32 %v2008, %v2090
      %2092 = vdwg.mxu0
      %v2093 = vld [vmem:[%s15] sm:$0x1]
      %v2095 = vperm.slane %v2093, 0
      %v2097 = vadd.f32 %v2089, %v2095
      %v2098 = vadd.f32 %v2091, %v2095
      %2099 = vst [vmem:[%s703] sm:$0xff] %v2097
      %2100 = vst [vmem:[%s703 + $0x8] sm:$0xff] %v2098
      %s2101 = smul.u32 2, %s32
      %p2102 = scmp.lt.s32.totalorder %s31, 1
      %s2103 = scalar_select %p2102, %s31, 1
      %p2104 = scmp.lt.s32.totalorder %s2101, 7
      %s2105 = scalar_select %p2104, %s2101, 7
      %s2106 = smul.addr %s2103, 8
      %s2107 = sadd.s32 %s2105, %s2106
      %s2108 = smul.addr %s2107, 8
      %s2109 = scalar_lea.vmem %s16, %s2108
      // Predicated region
      $region85: #{transformer_block_forward.3} parent=83 // pred_check
        %p2110 = pneg %p430
      $region86: #{transformer_block_forward.3} parent=83 // pred_check_branch
        %2112 = sbr.rel (%p2110) target = $region88
      $region87: #{transformer_block_forward.3} parent=83 // pred_region
        %s2113 = smul.u32 2, %s32
      $region88: #{transformer_block_forward.3} parent=83 // pred_fallthru
        _
    $region84: #{transformer_block_forward.3} parent=5 // pred_fallthru
      _
    %p2114 = scmp.le.s32.totalorder 2, %s22
    // Predicated region
    $region89: #{transformer_block_forward.3} parent=5 // pred_check
      %p2115 = pneg %p2114
    $region90: #{transformer_block_forward.3} parent=5 // pred_check_branch
      %2117 = sbr.rel (%p2115) target = $region92
    $region91: #{transformer_block_forward.3} parent=5 // pred_region
      %s2118 = ssub.s32 %s22, 2
      // Predicated region
      $region93: #{transformer_block_forward.3} parent=91 // pred_check
        %p2119 = pneg %p436
      $region94: #{transformer_block_forward.3} parent=91 // pred_check_branch
        %2121 = sbr.rel (%p2119) target = $region96
      $region95: #{transformer_block_forward.3} parent=91 // pred_region
        %s2122 = smul.u32 2, %s34
        %p2123 = scmp.lt.s32.totalorder %s33, 1
        %s2124 = scalar_select %p2123, %s33, 1
        %p2125 = scmp.lt.s32.totalorder %s2122, 7
        %s2126 = scalar_select %p2125, %s2122, 7
        %s2127 = smul.addr %s2124, 8
        %s2128 = sadd.s32 %s2126, %s2127
        %s2129 = smul.addr %s2128, 8
        %s2130 = scalar_lea.vmem %s16, %s2129
      $region96: #{transformer_block_forward.3} parent=91 // pred_fallthru
        _
    $region92: #{transformer_block_forward.3} parent=5 // pred_fallthru
      _
  $region6: #{transformer_block_forward.3} parent=0 // loop_footer
    %s26 = sadd.s32 1, %s22
  $region7: #{transformer_block_forward.3} parent=0 // loop_footer_branch
    %21 = sbr.rel target = $region3
  $region8: #{transformer_block_forward.3} parent=0 // loop_exit
    _

</llo_original>
